<compile_context>
chip_gen: v7x
topology: tpu7x:2x2x1
jax: 0.10.0
libtpu: 0.0.40
codegen_flags: <defaults>
</compile_context>

<pallas_src>
import functools

import jax
import jax.numpy as jnp
from jax.experimental import pallas as pl
from jax.experimental.pallas import tpu as pltpu


def make_lstm_kernel(T, B, L, V, use_bf16_act):
    """Builds the single-invocation LSTM kernel (static shapes baked in)."""

    def kernel(tok_ref, emb_ref, wx_ref, b_ref, h0_ref, wh_ref, out_ref, xp_ref):
        # ---- Prologue (runs once): x-side projection for every (t, b) token.
        # proj_table[v] = emb[v] @ Wx + b          (V, 4L)
        proj = (
            jnp.dot(emb_ref[...], wx_ref[...], preferred_element_type=jnp.float32)
            + b_ref[...]
        )
        # Token gather as a one-hot matmul on the MXU (exact: rows are 0/1).
        onehot = (
            tok_ref[...] == jax.lax.broadcasted_iota(jnp.int32, (T * B, V), 1)
        ).astype(jnp.float32)                                     # (T*B, V)
        xp_ref[...] = jnp.dot(onehot, proj, preferred_element_type=jnp.float32)

        h0 = h0_ref[...]
        c0 = jnp.zeros_like(h0)      # matches `self.c = torch.zeros(h.shape)`

        def step(t, carry):
            h, c = carry
            row = pl.multiple_of(t * B, B)
            xp_t = xp_ref[pl.ds(row, B), :]                       # (B, 4L) f32

            # Recurrent matmul in bf16 (wh_ref is already bf16); f32 accumulate.
            # Note: wh_ref[...] is loaded inside the step on purpose — do NOT
            # hoist it into a value that stays live across the unrolled loop.
            hw = jnp.dot(
                h.astype(jnp.bfloat16), wh_ref[...],
                preferred_element_type=jnp.float32,
            )                                                     # (B, 4L) f32
            gates = xp_t + hw

            if use_bf16_act:
                gates_act = gates.astype(jnp.bfloat16)
            else:
                gates_act = gates

            f = jax.nn.sigmoid(gates_act[:, 0 * L:1 * L])
            i = jax.nn.sigmoid(gates_act[:, 1 * L:2 * L])
            o = jax.nn.sigmoid(gates_act[:, 2 * L:3 * L])
            g = jnp.tanh(gates_act[:, 3 * L:4 * L])
            if use_bf16_act:
                f = f.astype(jnp.float32)
                i = i.astype(jnp.float32)
                o = o.astype(jnp.float32)
                g = g.astype(jnp.float32)

            c_new = f * c + i * g                                 # f32 carry
            if use_bf16_act:
                tanh_c = jnp.tanh(c_new.astype(jnp.bfloat16)).astype(jnp.float32)
            else:
                tanh_c = jnp.tanh(c_new)
            h_new = o * tanh_c

            # B=8, L=128 -> one full unmasked (8,128) vst per step.
            out_ref[t] = h_new.astype(out_ref.dtype)
            return (h_new, c_new)

        # Static trip count -> fully unrolled; the LLO scheduler sees the whole
        # recurrence and h/c live only in vregs.
        jax.lax.fori_loop(0, T, step, (h0, c0), unroll=True)

    return kernel


@jax.jit
def lstm_forward(tokens, h0, emb_table, wx, wh, b):
    T, B = tokens.shape
    L = h0.shape[1]
    V = emb_table.shape[0]

    # bf16 EUP/VPU exists on v6e/v7x only; keep f32 activations on v5e & older.
    kind = jax.devices()[0].device_kind.lower()
    use_bf16_act = ("v6" in kind) or ("v7" in kind)

    kernel = make_lstm_kernel(T, B, L, V, use_bf16_act)

    tok_flat = tokens.reshape(T * B, 1).astype(jnp.int32)
    wh_bf16 = wh.astype(jnp.bfloat16)   # half the weight bytes / MXU pushes

    # VMEM residency (v7x budget, 32 MiB default scoped): emb+wx+b ~12 KiB,
    # wh 128 KiB (bf16), x_proj scratch 128 KiB, out 32 KiB — tiny.  If V or T
    # grows, tile the proj/x_proj over T with a BlockSpec grid instead.
    return pl.pallas_call(
        kernel,
        out_shape=jax.ShapeDtypeStruct((T, B, L), jnp.float32),
        in_specs=[
            pl.BlockSpec(memory_space=pltpu.MemorySpace.VMEM),  # tokens (T*B,1) i32
            pl.BlockSpec(memory_space=pltpu.MemorySpace.VMEM),  # emb    (V,E)
            pl.BlockSpec(memory_space=pltpu.MemorySpace.VMEM),  # wx     (E,4L)
            pl.BlockSpec(memory_space=pltpu.MemorySpace.VMEM),  # b      (1,4L)
            pl.BlockSpec(memory_space=pltpu.MemorySpace.VMEM),  # h0     (B,L)
            pl.BlockSpec(memory_space=pltpu.MemorySpace.VMEM),  # wh     (L,4L) bf16
        ],
        out_specs=pl.BlockSpec(memory_space=pltpu.MemorySpace.VMEM),
        scratch_shapes=[pltpu.VMEM((T * B, 4 * L), jnp.float32)],  # x_proj slab
    )(tok_flat, emb_table, wx, b, h0, wh_bf16)


def lstm_reference(tokens, h0, emb_table, wx, wh, b):
    """Pure-JAX f32 reference matching the PyTorch module semantics."""
    x_emb = jnp.take(emb_table, tokens, axis=0)  # (T, B, E)
    L = h0.shape[1]

    def step(carry, xt):
        h, c = carry
        gates = xt @ wx + h @ wh + b
        f = jax.nn.sigmoid(gates[:, 0 * L:1 * L])
        i = jax.nn.sigmoid(gates[:, 1 * L:2 * L])
        o = jax.nn.sigmoid(gates[:, 2 * L:3 * L])
        c_in = jnp.tanh(gates[:, 3 * L:4 * L])
        c_new = f * c + i * c_in
        h_new = o * jnp.tanh(c_new)
        return (h_new, c_new), h_new

    (_, _), hs = jax.lax.scan(step, (h0, jnp.zeros_like(h0)), x_emb)
    return hs


if __name__ == "__main__":
    # Small shapes consistent with the module's forward().
    DICO = 64      # vocabulary size
    EMB = 32       # embedding size
    LATENT = 128   # hidden size
    T = 8          # sequence length
    B = 8          # batch size

    key = jax.random.PRNGKey(0)
    k_tok, k_h0, k_emb, kf, ki, ko, kc, kb = jax.random.split(key, 8)

    # Deterministic synthetic parameters (PyTorch-like uniform scale).
    bound = 1.0 / jnp.sqrt(EMB + LATENT)
    emb_table = jax.random.normal(k_emb, (DICO, EMB), jnp.float32) * 0.1
    # Per-gate weights as (E+L, L) == nn.Linear(E+L, L).weight.T ; gate order [f, i, o, c]
    w_f = jax.random.uniform(kf, (EMB + LATENT, LATENT), jnp.float32, -bound, bound)
    w_i = jax.random.uniform(ki, (EMB + LATENT, LATENT), jnp.float32, -bound, bound)
    w_o = jax.random.uniform(ko, (EMB + LATENT, LATENT), jnp.float32, -bound, bound)
    w_c = jax.random.uniform(kc, (EMB + LATENT, LATENT), jnp.float32, -bound, bound)
    b_all = jax.random.uniform(kb, (1, 4 * LATENT), jnp.float32, -bound, bound)

    w_all = jnp.concatenate([w_f, w_i, w_o, w_c], axis=1)   # (E+L, 4L)
    wx = w_all[:EMB, :]                                      # (E, 4L)
    wh = w_all[EMB:, :]                                      # (L, 4L)

    tokens = jax.random.randint(k_tok, (T, B), 0, DICO, dtype=jnp.int32)
    h0 = jax.random.normal(k_h0, (B, LATENT), jnp.float32) * 0.1

    out = lstm_forward(tokens, h0, emb_table, wx, wh, b_all)
    out = jax.block_until_ready(out)

    ref = lstm_reference(tokens, h0, emb_table, wx, wh, b_all)
    assert out.shape == (T, B, LATENT)
    # bf16 recurrent matmul (and bf16 activations on v6e/v7x) -> ~1e-2 tolerance.
    assert jnp.allclose(out, ref, atol=2e-2, rtol=2e-2), "Pallas output mismatch vs reference"

    print("KERNEL_OK")
</pallas_src>

<mosaic_0001>
module attributes {stable_mosaic.version = 11 : i64} {
  func.func @kernel(%arg0: memref<64x1xi32, #tpu.memory_space<vmem>>, %arg1: memref<64x32xf32, #tpu.memory_space<vmem>>, %arg2: memref<32x512xf32, #tpu.memory_space<vmem>>, %arg3: memref<1x512xf32, #tpu.memory_space<vmem>>, %arg4: memref<8x128xf32, #tpu.memory_space<vmem>>, %arg5: memref<128x512xbf16, #tpu.memory_space<vmem>>, %arg6: memref<8x8x128xf32, #tpu.memory_space<vmem>>, %arg7: memref<64x512xf32, #tpu.memory_space<vmem>>) attributes {dimension_semantics = [], scalar_prefetch = 0 : i64, scratch_operands = 1 : i64, tpu.core_type = #tpu.core_type<tc>} {
    %c0 = arith.constant 0 : index
    %c0_0 = arith.constant 0 : index
    %0 = vector.load %arg1[%c0, %c0_0] : memref<64x32xf32, #tpu.memory_space<vmem>>, vector<64x32xf32>
    %c0_1 = arith.constant 0 : index
    %c0_2 = arith.constant 0 : index
    %1 = vector.load %arg2[%c0_1, %c0_2] : memref<32x512xf32, #tpu.memory_space<vmem>>, vector<32x512xf32>
    %cst = arith.constant dense<0.000000e+00> : vector<64x512xf32>
    %2 = tpu.matmul %0, %1, %cst {dimension_numbers = #tpu.dot_dimension_numbers<[1], [0], [0], [1], [0, 0, 1, 1], [], []>} : vector<64x32xf32>, vector<32x512xf32>, vector<64x512xf32> -> vector<64x512xf32>
    %c0_3 = arith.constant 0 : index
    %c0_4 = arith.constant 0 : index
    %3 = vector.load %arg3[%c0_3, %c0_4] : memref<1x512xf32, #tpu.memory_space<vmem>>, vector<1x512xf32>
    %4 = vector.broadcast %3 : vector<1x512xf32> to vector<64x512xf32>
    %5 = arith.addf %2, %4 : vector<64x512xf32>
    %c0_5 = arith.constant 0 : index
    %c0_6 = arith.constant 0 : index
    %6 = vector.load %arg0[%c0_5, %c0_6] : memref<64x1xi32, #tpu.memory_space<vmem>>, vector<64x1xi32>
    %7 = tpu.iota {dimensions = array<i32: 1>} : vector<64x64xi32>
    %8 = vector.broadcast %6 : vector<64x1xi32> to vector<64x64xi32>
    %9 = arith.cmpi eq, %8, %7 : vector<64x64xi32>
    %10 = arith.extui %9 : vector<64x64xi1> to vector<64x64xi32>
    %11 = arith.sitofp %10 : vector<64x64xi32> to vector<64x64xf32>
    %cst_7 = arith.constant dense<0.000000e+00> : vector<64x512xf32>
    %12 = tpu.matmul %11, %5, %cst_7 {dimension_numbers = #tpu.dot_dimension_numbers<[1], [0], [0], [1], [0, 0, 1, 1], [], []>} : vector<64x64xf32>, vector<64x512xf32>, vector<64x512xf32> -> vector<64x512xf32>
    %c0_8 = arith.constant 0 : index
    %c0_9 = arith.constant 0 : index
    %13 = vector.load %arg7[%c0_8, %c0_9] : memref<64x512xf32, #tpu.memory_space<vmem>>, vector<64x512xf32>
    tpu.vector_store %arg7[%c0_8, %c0_9], %12 {strides = array<i32>} : memref<64x512xf32, #tpu.memory_space<vmem>>, vector<64x512xf32>,
    %c0_10 = arith.constant 0 : index
    %c0_11 = arith.constant 0 : index
    %14 = vector.load %arg4[%c0_10, %c0_11] : memref<8x128xf32, #tpu.memory_space<vmem>>, vector<8x128xf32>
    %cst_12 = arith.constant 0.000000e+00 : f32
    %15 = vector.broadcast %cst_12 : f32 to vector<8x128xf32>
    %c0_i32 = arith.constant 0 : i32
    %c8_i32 = arith.constant 8 : i32
    %16 = arith.muli %c0_i32, %c8_i32 : i32
    %17 = tpu.assume_multiple %16, 8 : i32
    %18 = arith.index_cast %17 : i32 to index
    %c0_13 = arith.constant 0 : index
    %19 = vector.load %arg7[%18, %c0_13] : memref<64x512xf32, #tpu.memory_space<vmem>>, vector<8x512xf32>
    %20 = arith.truncf %14 : vector<8x128xf32> to vector<8x128xbf16>
    %c0_14 = arith.constant 0 : index
    %c0_15 = arith.constant 0 : index
    %21 = vector.load %arg5[%c0_14, %c0_15] : memref<128x512xbf16, #tpu.memory_space<vmem>>, vector<128x512xbf16>
    %cst_16 = arith.constant dense<0.000000e+00> : vector<8x512xf32>
    %22 = tpu.matmul %20, %21, %cst_16 {dimension_numbers = #tpu.dot_dimension_numbers<[1], [0], [0], [1], [0, 0, 1, 1], [], []>} : vector<8x128xbf16>, vector<128x512xbf16>, vector<8x512xf32> -> vector<8x512xf32>
    %23 = arith.addf %19, %22 : vector<8x512xf32>
    %24 = vector.extract_strided_slice %23 {offsets = [0, 0], sizes = [8, 128], strides = [1, 1]} : vector<8x512xf32> to vector<8x128xf32>
    %25 = arith.negf %24 : vector<8x128xf32>
    %26 = math.exp %25 : vector<8x128xf32>
    %cst_17 = arith.constant 1.000000e+00 : f32
    %27 = vector.broadcast %cst_17 : f32 to vector<8x128xf32>
    %28 = arith.addf %27, %26 : vector<8x128xf32>
    %29 = arith.divf %27, %28 : vector<8x128xf32>
    %30 = vector.extract_strided_slice %23 {offsets = [0, 128], sizes = [8, 128], strides = [1, 1]} : vector<8x512xf32> to vector<8x128xf32>
    %31 = arith.negf %30 : vector<8x128xf32>
    %32 = math.exp %31 : vector<8x128xf32>
    %cst_18 = arith.constant 1.000000e+00 : f32
    %33 = vector.broadcast %cst_18 : f32 to vector<8x128xf32>
    %34 = arith.addf %33, %32 : vector<8x128xf32>
    %35 = arith.divf %33, %34 : vector<8x128xf32>
    %36 = vector.extract_strided_slice %23 {offsets = [0, 256], sizes = [8, 128], strides = [1, 1]} : vector<8x512xf32> to vector<8x128xf32>
    %37 = arith.negf %36 : vector<8x128xf32>
    %38 = math.exp %37 : vector<8x128xf32>
    %cst_19 = arith.constant 1.000000e+00 : f32
    %39 = vector.broadcast %cst_19 : f32 to vector<8x128xf32>
    %40 = arith.addf %39, %38 : vector<8x128xf32>
    %41 = arith.divf %39, %40 : vector<8x128xf32>
    %42 = vector.extract_strided_slice %23 {offsets = [0, 384], sizes = [8, 128], strides = [1, 1]} : vector<8x512xf32> to vector<8x128xf32>
    %43 = math.tanh %42 : vector<8x128xf32>
    %44 = arith.mulf %29, %15 : vector<8x128xf32>
    %45 = arith.mulf %35, %43 : vector<8x128xf32>
    %46 = arith.addf %44, %45 : vector<8x128xf32>
    %47 = math.tanh %46 : vector<8x128xf32>
    %48 = arith.mulf %41, %47 : vector<8x128xf32>
    %49 = arith.index_cast %c0_i32 : i32 to index
    %c0_20 = arith.constant 0 : index
    %c0_21 = arith.constant 0 : index
    %50 = vector.load %arg6[%49, %c0_20, %c0_21] : memref<8x8x128xf32, #tpu.memory_space<vmem>>, vector<1x8x128xf32>
    %51 = vector.shape_cast %50 : vector<1x8x128xf32> to vector<8x128xf32>
    %52 = vector.shape_cast %48 : vector<8x128xf32> to vector<1x8x128xf32>
    tpu.vector_store %arg6[%49, %c0_20, %c0_21], %52 {strides = array<i32>} : memref<8x8x128xf32, #tpu.memory_space<vmem>>, vector<1x8x128xf32>,
    %c1_i32 = arith.constant 1 : i32
    %c8_i32_22 = arith.constant 8 : i32
    %53 = arith.muli %c1_i32, %c8_i32_22 : i32
    %54 = tpu.assume_multiple %53, 8 : i32
    %55 = arith.index_cast %54 : i32 to index
    %c0_23 = arith.constant 0 : index
    %56 = vector.load %arg7[%55, %c0_23] : memref<64x512xf32, #tpu.memory_space<vmem>>, vector<8x512xf32>
    %57 = arith.truncf %48 : vector<8x128xf32> to vector<8x128xbf16>
    %c0_24 = arith.constant 0 : index
    %c0_25 = arith.constant 0 : index
    %58 = vector.load %arg5[%c0_24, %c0_25] : memref<128x512xbf16, #tpu.memory_space<vmem>>, vector<128x512xbf16>
    %cst_26 = arith.constant dense<0.000000e+00> : vector<8x512xf32>
    %59 = tpu.matmul %57, %58, %cst_26 {dimension_numbers = #tpu.dot_dimension_numbers<[1], [0], [0], [1], [0, 0, 1, 1], [], []>} : vector<8x128xbf16>, vector<128x512xbf16>, vector<8x512xf32> -> vector<8x512xf32>
    %60 = arith.addf %56, %59 : vector<8x512xf32>
    %61 = vector.extract_strided_slice %60 {offsets = [0, 0], sizes = [8, 128], strides = [1, 1]} : vector<8x512xf32> to vector<8x128xf32>
    %62 = arith.negf %61 : vector<8x128xf32>
    %63 = math.exp %62 : vector<8x128xf32>
    %cst_27 = arith.constant 1.000000e+00 : f32
    %64 = vector.broadcast %cst_27 : f32 to vector<8x128xf32>
    %65 = arith.addf %64, %63 : vector<8x128xf32>
    %66 = arith.divf %64, %65 : vector<8x128xf32>
    %67 = vector.extract_strided_slice %60 {offsets = [0, 128], sizes = [8, 128], strides = [1, 1]} : vector<8x512xf32> to vector<8x128xf32>
    %68 = arith.negf %67 : vector<8x128xf32>
    %69 = math.exp %68 : vector<8x128xf32>
    %cst_28 = arith.constant 1.000000e+00 : f32
    %70 = vector.broadcast %cst_28 : f32 to vector<8x128xf32>
    %71 = arith.addf %70, %69 : vector<8x128xf32>
    %72 = arith.divf %70, %71 : vector<8x128xf32>
    %73 = vector.extract_strided_slice %60 {offsets = [0, 256], sizes = [8, 128], strides = [1, 1]} : vector<8x512xf32> to vector<8x128xf32>
    %74 = arith.negf %73 : vector<8x128xf32>
    %75 = math.exp %74 : vector<8x128xf32>
    %cst_29 = arith.constant 1.000000e+00 : f32
    %76 = vector.broadcast %cst_29 : f32 to vector<8x128xf32>
    %77 = arith.addf %76, %75 : vector<8x128xf32>
    %78 = arith.divf %76, %77 : vector<8x128xf32>
    %79 = vector.extract_strided_slice %60 {offsets = [0, 384], sizes = [8, 128], strides = [1, 1]} : vector<8x512xf32> to vector<8x128xf32>
    %80 = math.tanh %79 : vector<8x128xf32>
    %81 = arith.mulf %66, %46 : vector<8x128xf32>
    %82 = arith.mulf %72, %80 : vector<8x128xf32>
    %83 = arith.addf %81, %82 : vector<8x128xf32>
    %84 = math.tanh %83 : vector<8x128xf32>
    %85 = arith.mulf %78, %84 : vector<8x128xf32>
    %86 = arith.index_cast %c1_i32 : i32 to index
    %c0_30 = arith.constant 0 : index
    %c0_31 = arith.constant 0 : index
    %87 = vector.load %arg6[%86, %c0_30, %c0_31] : memref<8x8x128xf32, #tpu.memory_space<vmem>>, vector<1x8x128xf32>
    %88 = vector.shape_cast %87 : vector<1x8x128xf32> to vector<8x128xf32>
    %89 = vector.shape_cast %85 : vector<8x128xf32> to vector<1x8x128xf32>
    tpu.vector_store %arg6[%86, %c0_30, %c0_31], %89 {strides = array<i32>} : memref<8x8x128xf32, #tpu.memory_space<vmem>>, vector<1x8x128xf32>,
    %c2_i32 = arith.constant 2 : i32
    %c8_i32_32 = arith.constant 8 : i32
    %90 = arith.muli %c2_i32, %c8_i32_32 : i32
    %91 = tpu.assume_multiple %90, 8 : i32
    %92 = arith.index_cast %91 : i32 to index
    %c0_33 = arith.constant 0 : index
    %93 = vector.load %arg7[%92, %c0_33] : memref<64x512xf32, #tpu.memory_space<vmem>>, vector<8x512xf32>
    %94 = arith.truncf %85 : vector<8x128xf32> to vector<8x128xbf16>
    %c0_34 = arith.constant 0 : index
    %c0_35 = arith.constant 0 : index
    %95 = vector.load %arg5[%c0_34, %c0_35] : memref<128x512xbf16, #tpu.memory_space<vmem>>, vector<128x512xbf16>
    %cst_36 = arith.constant dense<0.000000e+00> : vector<8x512xf32>
    %96 = tpu.matmul %94, %95, %cst_36 {dimension_numbers = #tpu.dot_dimension_numbers<[1], [0], [0], [1], [0, 0, 1, 1], [], []>} : vector<8x128xbf16>, vector<128x512xbf16>, vector<8x512xf32> -> vector<8x512xf32>
    %97 = arith.addf %93, %96 : vector<8x512xf32>
    %98 = vector.extract_strided_slice %97 {offsets = [0, 0], sizes = [8, 128], strides = [1, 1]} : vector<8x512xf32> to vector<8x128xf32>
    %99 = arith.negf %98 : vector<8x128xf32>
    %100 = math.exp %99 : vector<8x128xf32>
    %cst_37 = arith.constant 1.000000e+00 : f32
    %101 = vector.broadcast %cst_37 : f32 to vector<8x128xf32>
    %102 = arith.addf %101, %100 : vector<8x128xf32>
    %103 = arith.divf %101, %102 : vector<8x128xf32>
    %104 = vector.extract_strided_slice %97 {offsets = [0, 128], sizes = [8, 128], strides = [1, 1]} : vector<8x512xf32> to vector<8x128xf32>
    %105 = arith.negf %104 : vector<8x128xf32>
    %106 = math.exp %105 : vector<8x128xf32>
    %cst_38 = arith.constant 1.000000e+00 : f32
    %107 = vector.broadcast %cst_38 : f32 to vector<8x128xf32>
    %108 = arith.addf %107, %106 : vector<8x128xf32>
    %109 = arith.divf %107, %108 : vector<8x128xf32>
    %110 = vector.extract_strided_slice %97 {offsets = [0, 256], sizes = [8, 128], strides = [1, 1]} : vector<8x512xf32> to vector<8x128xf32>
    %111 = arith.negf %110 : vector<8x128xf32>
    %112 = math.exp %111 : vector<8x128xf32>
    %cst_39 = arith.constant 1.000000e+00 : f32
    %113 = vector.broadcast %cst_39 : f32 to vector<8x128xf32>
    %114 = arith.addf %113, %112 : vector<8x128xf32>
    %115 = arith.divf %113, %114 : vector<8x128xf32>
    %116 = vector.extract_strided_slice %97 {offsets = [0, 384], sizes = [8, 128], strides = [1, 1]} : vector<8x512xf32> to vector<8x128xf32>
    %117 = math.tanh %116 : vector<8x128xf32>
    %118 = arith.mulf %103, %83 : vector<8x128xf32>
    %119 = arith.mulf %109, %117 : vector<8x128xf32>
    %120 = arith.addf %118, %119 : vector<8x128xf32>
    %121 = math.tanh %120 : vector<8x128xf32>
    %122 = arith.mulf %115, %121 : vector<8x128xf32>
    %123 = arith.index_cast %c2_i32 : i32 to index
    %c0_40 = arith.constant 0 : index
    %c0_41 = arith.constant 0 : index
    %124 = vector.load %arg6[%123, %c0_40, %c0_41] : memref<8x8x128xf32, #tpu.memory_space<vmem>>, vector<1x8x128xf32>
    %125 = vector.shape_cast %124 : vector<1x8x128xf32> to vector<8x128xf32>
    %126 = vector.shape_cast %122 : vector<8x128xf32> to vector<1x8x128xf32>
    tpu.vector_store %arg6[%123, %c0_40, %c0_41], %126 {strides = array<i32>} : memref<8x8x128xf32, #tpu.memory_space<vmem>>, vector<1x8x128xf32>,
    %c3_i32 = arith.constant 3 : i32
    %c8_i32_42 = arith.constant 8 : i32
    %127 = arith.muli %c3_i32, %c8_i32_42 : i32
    %128 = tpu.assume_multiple %127, 8 : i32
    %129 = arith.index_cast %128 : i32 to index
    %c0_43 = arith.constant 0 : index
    %130 = vector.load %arg7[%129, %c0_43] : memref<64x512xf32, #tpu.memory_space<vmem>>, vector<8x512xf32>
    %131 = arith.truncf %122 : vector<8x128xf32> to vector<8x128xbf16>
    %c0_44 = arith.constant 0 : index
    %c0_45 = arith.constant 0 : index
    %132 = vector.load %arg5[%c0_44, %c0_45] : memref<128x512xbf16, #tpu.memory_space<vmem>>, vector<128x512xbf16>
    %cst_46 = arith.constant dense<0.000000e+00> : vector<8x512xf32>
    %133 = tpu.matmul %131, %132, %cst_46 {dimension_numbers = #tpu.dot_dimension_numbers<[1], [0], [0], [1], [0, 0, 1, 1], [], []>} : vector<8x128xbf16>, vector<128x512xbf16>, vector<8x512xf32> -> vector<8x512xf32>
    %134 = arith.addf %130, %133 : vector<8x512xf32>
    %135 = vector.extract_strided_slice %134 {offsets = [0, 0], sizes = [8, 128], strides = [1, 1]} : vector<8x512xf32> to vector<8x128xf32>
    %136 = arith.negf %135 : vector<8x128xf32>
    %137 = math.exp %136 : vector<8x128xf32>
    %cst_47 = arith.constant 1.000000e+00 : f32
    %138 = vector.broadcast %cst_47 : f32 to vector<8x128xf32>
    %139 = arith.addf %138, %137 : vector<8x128xf32>
    %140 = arith.divf %138, %139 : vector<8x128xf32>
    %141 = vector.extract_strided_slice %134 {offsets = [0, 128], sizes = [8, 128], strides = [1, 1]} : vector<8x512xf32> to vector<8x128xf32>
    %142 = arith.negf %141 : vector<8x128xf32>
    %143 = math.exp %142 : vector<8x128xf32>
    %cst_48 = arith.constant 1.000000e+00 : f32
    %144 = vector.broadcast %cst_48 : f32 to vector<8x128xf32>
    %145 = arith.addf %144, %143 : vector<8x128xf32>
    %146 = arith.divf %144, %145 : vector<8x128xf32>
    %147 = vector.extract_strided_slice %134 {offsets = [0, 256], sizes = [8, 128], strides = [1, 1]} : vector<8x512xf32> to vector<8x128xf32>
    %148 = arith.negf %147 : vector<8x128xf32>
    %149 = math.exp %148 : vector<8x128xf32>
    %cst_49 = arith.constant 1.000000e+00 : f32
    %150 = vector.broadcast %cst_49 : f32 to vector<8x128xf32>
    %151 = arith.addf %150, %149 : vector<8x128xf32>
    %152 = arith.divf %150, %151 : vector<8x128xf32>
    %153 = vector.extract_strided_slice %134 {offsets = [0, 384], sizes = [8, 128], strides = [1, 1]} : vector<8x512xf32> to vector<8x128xf32>
    %154 = math.tanh %153 : vector<8x128xf32>
    %155 = arith.mulf %140, %120 : vector<8x128xf32>
    %156 = arith.mulf %146, %154 : vector<8x128xf32>
    %157 = arith.addf %155, %156 : vector<8x128xf32>
    %158 = math.tanh %157 : vector<8x128xf32>
    %159 = arith.mulf %152, %158 : vector<8x128xf32>
    %160 = arith.index_cast %c3_i32 : i32 to index
    %c0_50 = arith.constant 0 : index
    %c0_51 = arith.constant 0 : index
    %161 = vector.load %arg6[%160, %c0_50, %c0_51] : memref<8x8x128xf32, #tpu.memory_space<vmem>>, vector<1x8x128xf32>
    %162 = vector.shape_cast %161 : vector<1x8x128xf32> to vector<8x128xf32>
    %163 = vector.shape_cast %159 : vector<8x128xf32> to vector<1x8x128xf32>
    tpu.vector_store %arg6[%160, %c0_50, %c0_51], %163 {strides = array<i32>} : memref<8x8x128xf32, #tpu.memory_space<vmem>>, vector<1x8x128xf32>,
    %c4_i32 = arith.constant 4 : i32
    %c8_i32_52 = arith.constant 8 : i32
    %164 = arith.muli %c4_i32, %c8_i32_52 : i32
    %165 = tpu.assume_multiple %164, 8 : i32
    %166 = arith.index_cast %165 : i32 to index
    %c0_53 = arith.constant 0 : index
    %167 = vector.load %arg7[%166, %c0_53] : memref<64x512xf32, #tpu.memory_space<vmem>>, vector<8x512xf32>
    %168 = arith.truncf %159 : vector<8x128xf32> to vector<8x128xbf16>
    %c0_54 = arith.constant 0 : index
    %c0_55 = arith.constant 0 : index
    %169 = vector.load %arg5[%c0_54, %c0_55] : memref<128x512xbf16, #tpu.memory_space<vmem>>, vector<128x512xbf16>
    %cst_56 = arith.constant dense<0.000000e+00> : vector<8x512xf32>
    %170 = tpu.matmul %168, %169, %cst_56 {dimension_numbers = #tpu.dot_dimension_numbers<[1], [0], [0], [1], [0, 0, 1, 1], [], []>} : vector<8x128xbf16>, vector<128x512xbf16>, vector<8x512xf32> -> vector<8x512xf32>
    %171 = arith.addf %167, %170 : vector<8x512xf32>
    %172 = vector.extract_strided_slice %171 {offsets = [0, 0], sizes = [8, 128], strides = [1, 1]} : vector<8x512xf32> to vector<8x128xf32>
    %173 = arith.negf %172 : vector<8x128xf32>
    %174 = math.exp %173 : vector<8x128xf32>
    %cst_57 = arith.constant 1.000000e+00 : f32
    %175 = vector.broadcast %cst_57 : f32 to vector<8x128xf32>
    %176 = arith.addf %175, %174 : vector<8x128xf32>
    %177 = arith.divf %175, %176 : vector<8x128xf32>
    %178 = vector.extract_strided_slice %171 {offsets = [0, 128], sizes = [8, 128], strides = [1, 1]} : vector<8x512xf32> to vector<8x128xf32>
    %179 = arith.negf %178 : vector<8x128xf32>
    %180 = math.exp %179 : vector<8x128xf32>
    %cst_58 = arith.constant 1.000000e+00 : f32
    %181 = vector.broadcast %cst_58 : f32 to vector<8x128xf32>
    %182 = arith.addf %181, %180 : vector<8x128xf32>
    %183 = arith.divf %181, %182 : vector<8x128xf32>
    %184 = vector.extract_strided_slice %171 {offsets = [0, 256], sizes = [8, 128], strides = [1, 1]} : vector<8x512xf32> to vector<8x128xf32>
    %185 = arith.negf %184 : vector<8x128xf32>
    %186 = math.exp %185 : vector<8x128xf32>
    %cst_59 = arith.constant 1.000000e+00 : f32
    %187 = vector.broadcast %cst_59 : f32 to vector<8x128xf32>
    %188 = arith.addf %187, %186 : vector<8x128xf32>
    %189 = arith.divf %187, %188 : vector<8x128xf32>
    %190 = vector.extract_strided_slice %171 {offsets = [0, 384], sizes = [8, 128], strides = [1, 1]} : vector<8x512xf32> to vector<8x128xf32>
    %191 = math.tanh %190 : vector<8x128xf32>
    %192 = arith.mulf %177, %157 : vector<8x128xf32>
    %193 = arith.mulf %183, %191 : vector<8x128xf32>
    %194 = arith.addf %192, %193 : vector<8x128xf32>
    %195 = math.tanh %194 : vector<8x128xf32>
    %196 = arith.mulf %189, %195 : vector<8x128xf32>
    %197 = arith.index_cast %c4_i32 : i32 to index
    %c0_60 = arith.constant 0 : index
    %c0_61 = arith.constant 0 : index
    %198 = vector.load %arg6[%197, %c0_60, %c0_61] : memref<8x8x128xf32, #tpu.memory_space<vmem>>, vector<1x8x128xf32>
    %199 = vector.shape_cast %198 : vector<1x8x128xf32> to vector<8x128xf32>
    %200 = vector.shape_cast %196 : vector<8x128xf32> to vector<1x8x128xf32>
    tpu.vector_store %arg6[%197, %c0_60, %c0_61], %200 {strides = array<i32>} : memref<8x8x128xf32, #tpu.memory_space<vmem>>, vector<1x8x128xf32>,
    %c5_i32 = arith.constant 5 : i32
    %c8_i32_62 = arith.constant 8 : i32
    %201 = arith.muli %c5_i32, %c8_i32_62 : i32
    %202 = tpu.assume_multiple %201, 8 : i32
    %203 = arith.index_cast %202 : i32 to index
    %c0_63 = arith.constant 0 : index
    %204 = vector.load %arg7[%203, %c0_63] : memref<64x512xf32, #tpu.memory_space<vmem>>, vector<8x512xf32>
    %205 = arith.truncf %196 : vector<8x128xf32> to vector<8x128xbf16>
    %c0_64 = arith.constant 0 : index
    %c0_65 = arith.constant 0 : index
    %206 = vector.load %arg5[%c0_64, %c0_65] : memref<128x512xbf16, #tpu.memory_space<vmem>>, vector<128x512xbf16>
    %cst_66 = arith.constant dense<0.000000e+00> : vector<8x512xf32>
    %207 = tpu.matmul %205, %206, %cst_66 {dimension_numbers = #tpu.dot_dimension_numbers<[1], [0], [0], [1], [0, 0, 1, 1], [], []>} : vector<8x128xbf16>, vector<128x512xbf16>, vector<8x512xf32> -> vector<8x512xf32>
    %208 = arith.addf %204, %207 : vector<8x512xf32>
    %209 = vector.extract_strided_slice %208 {offsets = [0, 0], sizes = [8, 128], strides = [1, 1]} : vector<8x512xf32> to vector<8x128xf32>
    %210 = arith.negf %209 : vector<8x128xf32>
    %211 = math.exp %210 : vector<8x128xf32>
    %cst_67 = arith.constant 1.000000e+00 : f32
    %212 = vector.broadcast %cst_67 : f32 to vector<8x128xf32>
    %213 = arith.addf %212, %211 : vector<8x128xf32>
    %214 = arith.divf %212, %213 : vector<8x128xf32>
    %215 = vector.extract_strided_slice %208 {offsets = [0, 128], sizes = [8, 128], strides = [1, 1]} : vector<8x512xf32> to vector<8x128xf32>
    %216 = arith.negf %215 : vector<8x128xf32>
    %217 = math.exp %216 : vector<8x128xf32>
    %cst_68 = arith.constant 1.000000e+00 : f32
    %218 = vector.broadcast %cst_68 : f32 to vector<8x128xf32>
    %219 = arith.addf %218, %217 : vector<8x128xf32>
    %220 = arith.divf %218, %219 : vector<8x128xf32>
    %221 = vector.extract_strided_slice %208 {offsets = [0, 256], sizes = [8, 128], strides = [1, 1]} : vector<8x512xf32> to vector<8x128xf32>
    %222 = arith.negf %221 : vector<8x128xf32>
    %223 = math.exp %222 : vector<8x128xf32>
    %cst_69 = arith.constant 1.000000e+00 : f32
    %224 = vector.broadcast %cst_69 : f32 to vector<8x128xf32>
    %225 = arith.addf %224, %223 : vector<8x128xf32>
    %226 = arith.divf %224, %225 : vector<8x128xf32>
    %227 = vector.extract_strided_slice %208 {offsets = [0, 384], sizes = [8, 128], strides = [1, 1]} : vector<8x512xf32> to vector<8x128xf32>
    %228 = math.tanh %227 : vector<8x128xf32>
    %229 = arith.mulf %214, %194 : vector<8x128xf32>
    %230 = arith.mulf %220, %228 : vector<8x128xf32>
    %231 = arith.addf %229, %230 : vector<8x128xf32>
    %232 = math.tanh %231 : vector<8x128xf32>
    %233 = arith.mulf %226, %232 : vector<8x128xf32>
    %234 = arith.index_cast %c5_i32 : i32 to index
    %c0_70 = arith.constant 0 : index
    %c0_71 = arith.constant 0 : index
    %235 = vector.load %arg6[%234, %c0_70, %c0_71] : memref<8x8x128xf32, #tpu.memory_space<vmem>>, vector<1x8x128xf32>
    %236 = vector.shape_cast %235 : vector<1x8x128xf32> to vector<8x128xf32>
    %237 = vector.shape_cast %233 : vector<8x128xf32> to vector<1x8x128xf32>
    tpu.vector_store %arg6[%234, %c0_70, %c0_71], %237 {strides = array<i32>} : memref<8x8x128xf32, #tpu.memory_space<vmem>>, vector<1x8x128xf32>,
    %c6_i32 = arith.constant 6 : i32
    %c8_i32_72 = arith.constant 8 : i32
    %238 = arith.muli %c6_i32, %c8_i32_72 : i32
    %239 = tpu.assume_multiple %238, 8 : i32
    %240 = arith.index_cast %239 : i32 to index
    %c0_73 = arith.constant 0 : index
    %241 = vector.load %arg7[%240, %c0_73] : memref<64x512xf32, #tpu.memory_space<vmem>>, vector<8x512xf32>
    %242 = arith.truncf %233 : vector<8x128xf32> to vector<8x128xbf16>
    %c0_74 = arith.constant 0 : index
    %c0_75 = arith.constant 0 : index
    %243 = vector.load %arg5[%c0_74, %c0_75] : memref<128x512xbf16, #tpu.memory_space<vmem>>, vector<128x512xbf16>
    %cst_76 = arith.constant dense<0.000000e+00> : vector<8x512xf32>
    %244 = tpu.matmul %242, %243, %cst_76 {dimension_numbers = #tpu.dot_dimension_numbers<[1], [0], [0], [1], [0, 0, 1, 1], [], []>} : vector<8x128xbf16>, vector<128x512xbf16>, vector<8x512xf32> -> vector<8x512xf32>
    %245 = arith.addf %241, %244 : vector<8x512xf32>
    %246 = vector.extract_strided_slice %245 {offsets = [0, 0], sizes = [8, 128], strides = [1, 1]} : vector<8x512xf32> to vector<8x128xf32>
    %247 = arith.negf %246 : vector<8x128xf32>
    %248 = math.exp %247 : vector<8x128xf32>
    %cst_77 = arith.constant 1.000000e+00 : f32
    %249 = vector.broadcast %cst_77 : f32 to vector<8x128xf32>
    %250 = arith.addf %249, %248 : vector<8x128xf32>
    %251 = arith.divf %249, %250 : vector<8x128xf32>
    %252 = vector.extract_strided_slice %245 {offsets = [0, 128], sizes = [8, 128], strides = [1, 1]} : vector<8x512xf32> to vector<8x128xf32>
    %253 = arith.negf %252 : vector<8x128xf32>
    %254 = math.exp %253 : vector<8x128xf32>
    %cst_78 = arith.constant 1.000000e+00 : f32
    %255 = vector.broadcast %cst_78 : f32 to vector<8x128xf32>
    %256 = arith.addf %255, %254 : vector<8x128xf32>
    %257 = arith.divf %255, %256 : vector<8x128xf32>
    %258 = vector.extract_strided_slice %245 {offsets = [0, 256], sizes = [8, 128], strides = [1, 1]} : vector<8x512xf32> to vector<8x128xf32>
    %259 = arith.negf %258 : vector<8x128xf32>
    %260 = math.exp %259 : vector<8x128xf32>
    %cst_79 = arith.constant 1.000000e+00 : f32
    %261 = vector.broadcast %cst_79 : f32 to vector<8x128xf32>
    %262 = arith.addf %261, %260 : vector<8x128xf32>
    %263 = arith.divf %261, %262 : vector<8x128xf32>
    %264 = vector.extract_strided_slice %245 {offsets = [0, 384], sizes = [8, 128], strides = [1, 1]} : vector<8x512xf32> to vector<8x128xf32>
    %265 = math.tanh %264 : vector<8x128xf32>
    %266 = arith.mulf %251, %231 : vector<8x128xf32>
    %267 = arith.mulf %257, %265 : vector<8x128xf32>
    %268 = arith.addf %266, %267 : vector<8x128xf32>
    %269 = math.tanh %268 : vector<8x128xf32>
    %270 = arith.mulf %263, %269 : vector<8x128xf32>
    %271 = arith.index_cast %c6_i32 : i32 to index
    %c0_80 = arith.constant 0 : index
    %c0_81 = arith.constant 0 : index
    %272 = vector.load %arg6[%271, %c0_80, %c0_81] : memref<8x8x128xf32, #tpu.memory_space<vmem>>, vector<1x8x128xf32>
    %273 = vector.shape_cast %272 : vector<1x8x128xf32> to vector<8x128xf32>
    %274 = vector.shape_cast %270 : vector<8x128xf32> to vector<1x8x128xf32>
    tpu.vector_store %arg6[%271, %c0_80, %c0_81], %274 {strides = array<i32>} : memref<8x8x128xf32, #tpu.memory_space<vmem>>, vector<1x8x128xf32>,
    %c7_i32 = arith.constant 7 : i32
    %c8_i32_82 = arith.constant 8 : i32
    %275 = arith.muli %c7_i32, %c8_i32_82 : i32
    %276 = tpu.assume_multiple %275, 8 : i32
    %277 = arith.index_cast %276 : i32 to index
    %c0_83 = arith.constant 0 : index
    %278 = vector.load %arg7[%277, %c0_83] : memref<64x512xf32, #tpu.memory_space<vmem>>, vector<8x512xf32>
    %279 = arith.truncf %270 : vector<8x128xf32> to vector<8x128xbf16>
    %c0_84 = arith.constant 0 : index
    %c0_85 = arith.constant 0 : index
    %280 = vector.load %arg5[%c0_84, %c0_85] : memref<128x512xbf16, #tpu.memory_space<vmem>>, vector<128x512xbf16>
    %cst_86 = arith.constant dense<0.000000e+00> : vector<8x512xf32>
    %281 = tpu.matmul %279, %280, %cst_86 {dimension_numbers = #tpu.dot_dimension_numbers<[1], [0], [0], [1], [0, 0, 1, 1], [], []>} : vector<8x128xbf16>, vector<128x512xbf16>, vector<8x512xf32> -> vector<8x512xf32>
    %282 = arith.addf %278, %281 : vector<8x512xf32>
    %283 = vector.extract_strided_slice %282 {offsets = [0, 0], sizes = [8, 128], strides = [1, 1]} : vector<8x512xf32> to vector<8x128xf32>
    %284 = arith.negf %283 : vector<8x128xf32>
    %285 = math.exp %284 : vector<8x128xf32>
    %cst_87 = arith.constant 1.000000e+00 : f32
    %286 = vector.broadcast %cst_87 : f32 to vector<8x128xf32>
    %287 = arith.addf %286, %285 : vector<8x128xf32>
    %288 = arith.divf %286, %287 : vector<8x128xf32>
    %289 = vector.extract_strided_slice %282 {offsets = [0, 128], sizes = [8, 128], strides = [1, 1]} : vector<8x512xf32> to vector<8x128xf32>
    %290 = arith.negf %289 : vector<8x128xf32>
    %291 = math.exp %290 : vector<8x128xf32>
    %cst_88 = arith.constant 1.000000e+00 : f32
    %292 = vector.broadcast %cst_88 : f32 to vector<8x128xf32>
    %293 = arith.addf %292, %291 : vector<8x128xf32>
    %294 = arith.divf %292, %293 : vector<8x128xf32>
    %295 = vector.extract_strided_slice %282 {offsets = [0, 256], sizes = [8, 128], strides = [1, 1]} : vector<8x512xf32> to vector<8x128xf32>
    %296 = arith.negf %295 : vector<8x128xf32>
    %297 = math.exp %296 : vector<8x128xf32>
    %cst_89 = arith.constant 1.000000e+00 : f32
    %298 = vector.broadcast %cst_89 : f32 to vector<8x128xf32>
    %299 = arith.addf %298, %297 : vector<8x128xf32>
    %300 = arith.divf %298, %299 : vector<8x128xf32>
    %301 = vector.extract_strided_slice %282 {offsets = [0, 384], sizes = [8, 128], strides = [1, 1]} : vector<8x512xf32> to vector<8x128xf32>
    %302 = math.tanh %301 : vector<8x128xf32>
    %303 = arith.mulf %288, %268 : vector<8x128xf32>
    %304 = arith.mulf %294, %302 : vector<8x128xf32>
    %305 = arith.addf %303, %304 : vector<8x128xf32>
    %306 = math.tanh %305 : vector<8x128xf32>
    %307 = arith.mulf %300, %306 : vector<8x128xf32>
    %308 = arith.index_cast %c7_i32 : i32 to index
    %c0_90 = arith.constant 0 : index
    %c0_91 = arith.constant 0 : index
    %309 = vector.load %arg6[%308, %c0_90, %c0_91] : memref<8x8x128xf32, #tpu.memory_space<vmem>>, vector<1x8x128xf32>
    %310 = vector.shape_cast %309 : vector<1x8x128xf32> to vector<8x128xf32>
    %311 = vector.shape_cast %307 : vector<8x128xf32> to vector<1x8x128xf32>
    tpu.vector_store %arg6[%308, %c0_90, %c0_91], %311 {strides = array<i32>} : memref<8x8x128xf32, #tpu.memory_space<vmem>>, vector<1x8x128xf32>,
    %c8_i32_92 = arith.constant 8 : i32
    return
  }
}

</mosaic_0001>

<llo_original>
// kernel: lstm_forward.1
$region0: #{lstm_forward.1}
  #allocation0 [shape = 'u32[]', space=smem, size = 0x4, offset = 0x4, fixed_abs, tag = 'smem constant byte address 0x4 - core index']
  #allocation1 [shape = 'u32[144,128]{1,0:T(1,128)}', space=vmem, size = 0x12000, scoped, tag = 'internal scratch']
  #allocation2 [shape = 'f32[64,512]{1,0:T(8,128)}', space=vmem, size = 0x20000, scoped, tag = 'scratch operand']
  %s0 = inlined_call_operand.vmem [shape: s32[64,1], index: 0, kind: input, shape index: {}]
  %s1 = inlined_call_operand.vmem [shape: f32[64,32], index: 1, kind: input, shape index: {}]
  %s2 = inlined_call_operand.vmem [shape: f32[32,512], index: 2, kind: input, shape index: {}]
  %s3 = inlined_call_operand.vmem [shape: f32[1,512], index: 3, kind: input, shape index: {}]
  %s4 = inlined_call_operand.vmem [shape: f32[8,128], index: 4, kind: input, shape index: {}]
  %s5 = inlined_call_operand.vmem [shape: bf16[128,512], index: 5, kind: input, shape index: {}]
  %s6 = inlined_call_operand.hbm [shape: f32[8,8,128], index: 6, kind: output, shape index: {}]
  %s7 = sld [smem:[#allocation0]]
  $region34: #{lstm_forward.1} parent=0
    _
  %s9 = ssub.s32 1, %s7
  %s10 = scalar_select 0, %s9, %s7
  $region1: #{lstm_forward.1} parent=0
    #allocation3 [shape = 'u8[32768]{0}', space=vmem, size = 0x8000, scoped, tag = 'output window, operand 0, single buffered']
    #allocation4 [shape = 's32[1]{0}', space=sflag, size = 0x4, scoped, tag = 'scoped memory for lstm_forward.1']
    %11 = vsyncpa [#allocation4], 0
    // Predicated region
    $region2: #{lstm_forward.1} parent=1 // pred_check
      _
    $region3: #{lstm_forward.1} parent=1 // pred_check_branch
      %13 = sbr.rel (0) target = $region5
    $region4: #{lstm_forward.1} parent=1 // pred_region
      _
    $region5: #{lstm_forward.1} parent=1 // pred_fallthru
      _
    // Predicated region
    $region6: #{lstm_forward.1} parent=1 // pred_check
      _
    $region7: #{lstm_forward.1} parent=1 // pred_check_branch
      %15 = sbr.rel (0) target = $region9
    $region8: #{lstm_forward.1} parent=1 // pred_region
      _
    $region9: #{lstm_forward.1} parent=1 // pred_fallthru
      _
    // Predicated region
    $region10: #{lstm_forward.1} parent=1 // pred_check
      _
    $region11: #{lstm_forward.1} parent=1 // pred_check_branch
      %17 = sbr.rel (0) target = $region13
    $region12: #{lstm_forward.1} parent=1 // pred_region
      _
    $region13: #{lstm_forward.1} parent=1 // pred_fallthru
      _
    // Predicated region
    $region14: #{lstm_forward.1} parent=1 // pred_check
      _
    $region15: #{lstm_forward.1} parent=1 // pred_check_branch
      %19 = sbr.rel (0) target = $region17
    $region16: #{lstm_forward.1} parent=1 // pred_region
      _
    $region17: #{lstm_forward.1} parent=1 // pred_fallthru
      _
    // Predicated region
    $region18: #{lstm_forward.1} parent=1 // pred_check
      _
    $region19: #{lstm_forward.1} parent=1 // pred_check_branch
      %21 = sbr.rel (0) target = $region21
    $region20: #{lstm_forward.1} parent=1 // pred_region
      _
    $region21: #{lstm_forward.1} parent=1 // pred_fallthru
      _
    // Predicated region
    $region22: #{lstm_forward.1} parent=1 // pred_check
      _
    $region23: #{lstm_forward.1} parent=1 // pred_check_branch
      %23 = sbr.rel (0) target = $region25
    $region24: #{lstm_forward.1} parent=1 // pred_region
      _
    $region25: #{lstm_forward.1} parent=1 // pred_fallthru
      _
    %v25 = vld [vmem:[%s1] sm:$0xff]
    %v26 = vld [vmem:[%s1 + $0x8] sm:$0xff]
    %v27 = vld [vmem:[%s1 + $0x10] sm:$0xff]
    %v28 = vld [vmem:[%s1 + $0x18] sm:$0xff]
    %v29 = vld [vmem:[%s1 + $0x20] sm:$0xff]
    %v30 = vld [vmem:[%s1 + $0x28] sm:$0xff]
    %v31 = vld [vmem:[%s1 + $0x30] sm:$0xff]
    %v32 = vld [vmem:[%s1 + $0x38] sm:$0xff]
    %v33 = vld [vmem:[%s2] sm:$0xff]
    %v34 = vld [vmem:[%s2 + $0x8] sm:$0xff]
    %v35 = vld [vmem:[%s2 + $0x10] sm:$0xff]
    %v36 = vld [vmem:[%s2 + $0x18] sm:$0xff]
    %v37 = vld [vmem:[%s2 + $0x20] sm:$0xff]
    %v38 = vld [vmem:[%s2 + $0x28] sm:$0xff]
    %v39 = vld [vmem:[%s2 + $0x30] sm:$0xff]
    %v40 = vld [vmem:[%s2 + $0x38] sm:$0xff]
    %v41 = vld [vmem:[%s2 + $0x40] sm:$0xff]
    %v42 = vld [vmem:[%s2 + $0x48] sm:$0xff]
    %v43 = vld [vmem:[%s2 + $0x50] sm:$0xff]
    %v44 = vld [vmem:[%s2 + $0x58] sm:$0xff]
    %v45 = vld [vmem:[%s2 + $0x60] sm:$0xff]
    %v46 = vld [vmem:[%s2 + $0x68] sm:$0xff]
    %v47 = vld [vmem:[%s2 + $0x70] sm:$0xff]
    %v48 = vld [vmem:[%s2 + $0x78] sm:$0xff]
    %v49 = vld [vmem:[%s3] sm:$0xf]
    %v51 = vlaneseq
    %v52 = vshrl.u32 %v51, 7
    %v53 = vsub.s32 0, %v52
    %v54 = vrot.slane %v49, %v53
    %v55 = vlaneseq
    %v56 = vshrl.u32 %v55, 7
    %v57 = vsub.s32 1, %v56
    %v58 = vrot.slane %v49, %v57
    %v59 = vlaneseq
    %v60 = vshrl.u32 %v59, 7
    %v61 = vsub.s32 2, %v60
    %v62 = vrot.slane %v49, %v61
    %v63 = vlaneseq
    %v64 = vshrl.u32 %v63, 7
    %v65 = vsub.s32 3, %v64
    %v66 = vrot.slane %v49, %v65
    %vm71 = vcmask 261120
    %v73 = vsel %vm71, %v25, 0
    %v76 = vsel %vm71, %v26, 0
    %v79 = vsel %vm71, %v27, 0
    %v82 = vsel %vm71, %v28, 0
    %v85 = vsel %vm71, %v29, 0
    %v88 = vsel %vm71, %v30, 0
    %v91 = vsel %vm71, %v31, 0
    %v94 = vsel %vm71, %v32, 0
    %96 = vmatprep.subr.mxu0 %v34
    %97 = vmatpush1.msra.mxu0 %v33
    %98 = vmatprep.subr.mxu0 %v38
    %99 = vmatpush1.msra.mxu0 %v37
    %100 = vmatprep.subr.mxu0 %v42
    %101 = vmatpush1.msra.mxu0 %v41
    %102 = vmatprep.subr.mxu0 %v46
    %103 = vmatpush1.msra.mxu0 %v45
    %104 = vmatprep.subr.mxu0 0.0
    %105 = vmatpush1.msra.mxu0 0.0
    %106 = vmatprep.subr.mxu0 0.0
    %107 = vmatpush1.msra.mxu0 0.0
    %108 = vmatprep.subr.mxu0 0.0
    %109 = vmatpush1.msra.mxu0 0.0
    %110 = vmatprep.subr.mxu0 0.0
    %111 = vmatpush1.msra.mxu0 0.0
    %112 = vmatprep.subr.mxu0 0.0
    %113 = vmatpush1.msra.mxu0 0.0
    %114 = vmatprep.subr.mxu0 0.0
    %115 = vmatpush1.msra.mxu0 0.0
    %116 = vmatprep.subr.mxu0 0.0
    %117 = vmatpush1.msra.mxu0 0.0
    %118 = vmatprep.subr.mxu0 0.0
    %119 = vmatpush1.msra.mxu0 0.0
    %120 = vmatprep.subr.mxu0 0.0
    %121 = vmatpush1.msra.mxu0 0.0
    %122 = vmatprep.subr.mxu0 0.0
    %123 = vmatpush1.msra.mxu0 0.0
    %124 = vmatprep.subr.mxu0 0.0
    %125 = vmatpush1.msra.mxu0 0.0
    %126 = vmatprep.subr.mxu0 0.0
    %127 = vmatpush1.msra.mxu0 0.0
    %128 = vmatprep.subr.mxu0 0.0
    %129 = vmatpush1.msra.mxu0 0.0
    %130 = vmatprep.subr.mxu0 0.0
    %131 = vmatpush1.msra.mxu0 0.0
    %132 = vmatprep.subr.mxu0 0.0
    %133 = vmatpush1.msra.mxu0 0.0
    %134 = vmatprep.subr.mxu0 0.0
    %135 = vmatpush1.msra.mxu0 0.0
    %136 = vmatprep.subr.mxu0 0.0
    %137 = vmatpush1.msra.mxu0 0.0
    %138 = vmatprep.subr.mxu0 0.0
    %139 = vmatpush1.msra.mxu0 0.0
    %140 = vmatprep.subr.mxu0 0.0
    %141 = vmatpush1.msra.mxu0 0.0
    %142 = vmatprep.subr.mxu0 0.0
    %143 = vmatpush1.msra.mxu0 0.0
    %144 = vmatprep.subr.mxu0 0.0
    %145 = vmatpush1.msra.mxu0 0.0
    %146 = vmatprep.subr.mxu0 0.0
    %147 = vmatpush1.msra.mxu0 0.0
    %148 = vmatprep.subr.mxu0 0.0
    %149 = vmatpush1.msra.mxu0 0.0
    %150 = vmatprep.subr.mxu0 0.0
    %151 = vmatpush1.msra.mxu0 0.0
    %152 = vmatprep.subr.mxu0 0.0
    %153 = vmatpush1.msra.mxu0 0.0
    %154 = vmatprep.subr.mxu0 0.0
    %155 = vmatpush1.msra.mxu0 0.0
    %156 = vmatprep.subr.mxu0 0.0
    %157 = vmatpush1.msra.mxu0 0.0
    %158 = vmatprep.subr.mxu0 0.0
    %159 = vmatpush1.msra.mxu0 0.0
    %160 = vmatprep.mubr.f32.mxu0 0.0
    %161 = vmatmul.mubr.f32.gmra.mrb[0].mxu0 %v73
    %v162 = vpop.f32.mrb[0].mxu0
    %v163 = vadd.f32 %v54, %v162
    %v164 = vpop.f32.mrb[0].mxu0
    %v165 = vadd.f32 %v58, %v164
    %166 = vmatprep.mubr.f32.mxu0 0.0
    %167 = vmatmul.mubr.f32.gmra.mrb[0].mxu0 %v76
    %v168 = vpop.f32.mrb[0].mxu0
    %v169 = vadd.f32 %v54, %v168
    %v170 = vpop.f32.mrb[0].mxu0
    %v171 = vadd.f32 %v58, %v170
    %172 = vmatprep.mubr.f32.mxu0 0.0
    %173 = vmatmul.mubr.f32.gmra.mrb[0].mxu0 %v79
    %v174 = vpop.f32.mrb[0].mxu0
    %v175 = vadd.f32 %v54, %v174
    %v176 = vpop.f32.mrb[0].mxu0
    %v177 = vadd.f32 %v58, %v176
    %178 = vmatprep.mubr.f32.mxu0 0.0
    %179 = vmatmul.mubr.f32.gmra.mrb[0].mxu0 %v82
    %v180 = vpop.f32.mrb[0].mxu0
    %v181 = vadd.f32 %v54, %v180
    %v182 = vpop.f32.mrb[0].mxu0
    %v183 = vadd.f32 %v58, %v182
    %184 = vmatprep.mubr.f32.mxu0 0.0
    %185 = vmatmul.mubr.f32.gmra.mrb[0].mxu0 %v85
    %v186 = vpop.f32.mrb[0].mxu0
    %v187 = vadd.f32 %v54, %v186
    %v188 = vpop.f32.mrb[0].mxu0
    %v189 = vadd.f32 %v58, %v188
    %190 = vmatprep.mubr.f32.mxu0 0.0
    %191 = vmatmul.mubr.f32.gmra.mrb[0].mxu0 %v88
    %v192 = vpop.f32.mrb[0].mxu0
    %v193 = vadd.f32 %v54, %v192
    %v194 = vpop.f32.mrb[0].mxu0
    %v195 = vadd.f32 %v58, %v194
    %196 = vmatprep.mubr.f32.mxu0 0.0
    %197 = vmatmul.mubr.f32.gmra.mrb[0].mxu0 %v91
    %v198 = vpop.f32.mrb[0].mxu0
    %v199 = vadd.f32 %v54, %v198
    %v200 = vpop.f32.mrb[0].mxu0
    %v201 = vadd.f32 %v58, %v200
    %202 = vmatprep.mubr.f32.mxu0 0.0
    %203 = vmatmul.mubr.f32.gmra.mrb[0].mxu0 %v94
    %v204 = vpop.f32.mrb[0].mxu0
    %v205 = vadd.f32 %v54, %v204
    %v206 = vpop.f32.mrb[0].mxu0
    %v207 = vadd.f32 %v58, %v206
    %208 = vdwg.mxu0
    %209 = vmatprep.subr.mxu0 %v36
    %210 = vmatpush1.msra.mxu0 %v35
    %211 = vmatprep.subr.mxu0 %v40
    %212 = vmatpush1.msra.mxu0 %v39
    %213 = vmatprep.subr.mxu0 %v44
    %214 = vmatpush1.msra.mxu0 %v43
    %215 = vmatprep.subr.mxu0 %v48
    %216 = vmatpush1.msra.mxu0 %v47
    %217 = vmatprep.subr.mxu0 0.0
    %218 = vmatpush1.msra.mxu0 0.0
    %219 = vmatprep.subr.mxu0 0.0
    %220 = vmatpush1.msra.mxu0 0.0
    %221 = vmatprep.subr.mxu0 0.0
    %222 = vmatpush1.msra.mxu0 0.0
    %223 = vmatprep.subr.mxu0 0.0
    %224 = vmatpush1.msra.mxu0 0.0
    %225 = vmatprep.subr.mxu0 0.0
    %226 = vmatpush1.msra.mxu0 0.0
    %227 = vmatprep.subr.mxu0 0.0
    %228 = vmatpush1.msra.mxu0 0.0
    %229 = vmatprep.subr.mxu0 0.0
    %230 = vmatpush1.msra.mxu0 0.0
    %231 = vmatprep.subr.mxu0 0.0
    %232 = vmatpush1.msra.mxu0 0.0
    %233 = vmatprep.subr.mxu0 0.0
    %234 = vmatpush1.msra.mxu0 0.0
    %235 = vmatprep.subr.mxu0 0.0
    %236 = vmatpush1.msra.mxu0 0.0
    %237 = vmatprep.subr.mxu0 0.0
    %238 = vmatpush1.msra.mxu0 0.0
    %239 = vmatprep.subr.mxu0 0.0
    %240 = vmatpush1.msra.mxu0 0.0
    %241 = vmatprep.subr.mxu0 0.0
    %242 = vmatpush1.msra.mxu0 0.0
    %243 = vmatprep.subr.mxu0 0.0
    %244 = vmatpush1.msra.mxu0 0.0
    %245 = vmatprep.subr.mxu0 0.0
    %246 = vmatpush1.msra.mxu0 0.0
    %247 = vmatprep.subr.mxu0 0.0
    %248 = vmatpush1.msra.mxu0 0.0
    %249 = vmatprep.subr.mxu0 0.0
    %250 = vmatpush1.msra.mxu0 0.0
    %251 = vmatprep.subr.mxu0 0.0
    %252 = vmatpush1.msra.mxu0 0.0
    %253 = vmatprep.subr.mxu0 0.0
    %254 = vmatpush1.msra.mxu0 0.0
    %255 = vmatprep.subr.mxu0 0.0
    %256 = vmatpush1.msra.mxu0 0.0
    %257 = vmatprep.subr.mxu0 0.0
    %258 = vmatpush1.msra.mxu0 0.0
    %259 = vmatprep.subr.mxu0 0.0
    %260 = vmatpush1.msra.mxu0 0.0
    %261 = vmatprep.subr.mxu0 0.0
    %262 = vmatpush1.msra.mxu0 0.0
    %263 = vmatprep.subr.mxu0 0.0
    %264 = vmatpush1.msra.mxu0 0.0
    %265 = vmatprep.subr.mxu0 0.0
    %266 = vmatpush1.msra.mxu0 0.0
    %267 = vmatprep.subr.mxu0 0.0
    %268 = vmatpush1.msra.mxu0 0.0
    %269 = vmatprep.subr.mxu0 0.0
    %270 = vmatpush1.msra.mxu0 0.0
    %271 = vmatprep.subr.mxu0 0.0
    %272 = vmatpush1.msra.mxu0 0.0
    %273 = vmatprep.mubr.f32.mxu0 0.0
    %274 = vmatmul.mubr.f32.gmra.mrb[0].mxu0 %v73
    %v275 = vpop.f32.mrb[0].mxu0
    %v276 = vadd.f32 %v62, %v275
    %v277 = vpop.f32.mrb[0].mxu0
    %v278 = vadd.f32 %v66, %v277
    %279 = vmatprep.mubr.f32.mxu0 0.0
    %280 = vmatmul.mubr.f32.gmra.mrb[0].mxu0 %v76
    %v281 = vpop.f32.mrb[0].mxu0
    %v282 = vadd.f32 %v62, %v281
    %v283 = vpop.f32.mrb[0].mxu0
    %v284 = vadd.f32 %v66, %v283
    %285 = vmatprep.mubr.f32.mxu0 0.0
    %286 = vmatmul.mubr.f32.gmra.mrb[0].mxu0 %v79
    %v287 = vpop.f32.mrb[0].mxu0
    %v288 = vadd.f32 %v62, %v287
    %v289 = vpop.f32.mrb[0].mxu0
    %v290 = vadd.f32 %v66, %v289
    %291 = vmatprep.mubr.f32.mxu0 0.0
    %292 = vmatmul.mubr.f32.gmra.mrb[0].mxu0 %v82
    %v293 = vpop.f32.mrb[0].mxu0
    %v294 = vadd.f32 %v62, %v293
    %v295 = vpop.f32.mrb[0].mxu0
    %v296 = vadd.f32 %v66, %v295
    %297 = vmatprep.mubr.f32.mxu0 0.0
    %298 = vmatmul.mubr.f32.gmra.mrb[0].mxu0 %v85
    %v299 = vpop.f32.mrb[0].mxu0
    %v300 = vadd.f32 %v62, %v299
    %v301 = vpop.f32.mrb[0].mxu0
    %v302 = vadd.f32 %v66, %v301
    %303 = vmatprep.mubr.f32.mxu0 0.0
    %304 = vmatmul.mubr.f32.gmra.mrb[0].mxu0 %v88
    %v305 = vpop.f32.mrb[0].mxu0
    %v306 = vadd.f32 %v62, %v305
    %v307 = vpop.f32.mrb[0].mxu0
    %v308 = vadd.f32 %v66, %v307
    %309 = vmatprep.mubr.f32.mxu0 0.0
    %310 = vmatmul.mubr.f32.gmra.mrb[0].mxu0 %v91
    %v311 = vpop.f32.mrb[0].mxu0
    %v312 = vadd.f32 %v62, %v311
    %v313 = vpop.f32.mrb[0].mxu0
    %v314 = vadd.f32 %v66, %v313
    %315 = vmatprep.mubr.f32.mxu0 0.0
    %316 = vmatmul.mubr.f32.gmra.mrb[0].mxu0 %v94
    %v317 = vpop.f32.mrb[0].mxu0
    %v318 = vadd.f32 %v62, %v317
    %v319 = vpop.f32.mrb[0].mxu0
    %v320 = vadd.f32 %v66, %v319
    %321 = vdwg.mxu0
    %v322 = vld [vmem:[%s0] sm:$0xff]
    %v323 = vld [vmem:[%s0 + $0x8] sm:$0xff]
    %v324 = vld [vmem:[%s0 + $0x10] sm:$0xff]
    %v325 = vld [vmem:[%s0 + $0x18] sm:$0xff]
    %v326 = vld [vmem:[%s0 + $0x20] sm:$0xff]
    %v327 = vld [vmem:[%s0 + $0x28] sm:$0xff]
    %v328 = vld [vmem:[%s0 + $0x30] sm:$0xff]
    %v329 = vld [vmem:[%s0 + $0x38] sm:$0xff]
    %v330 = vlaneseq
    %v331 = vand.u32 %v330, 127
    %332 = vset.pattern.permute.xlu0 0
    %333 = vperm.xlu0 %332, %v322
    %v334 = vpop.permute.xlu0 %333
    %335 = vset.pattern.permute.xlu0 0
    %336 = vperm.xlu0 %335, %v323
    %v337 = vpop.permute.xlu0 %336
    %338 = vset.pattern.permute.xlu0 0
    %339 = vperm.xlu0 %338, %v324
    %v340 = vpop.permute.xlu0 %339
    %341 = vset.pattern.permute.xlu0 0
    %342 = vperm.xlu0 %341, %v325
    %v343 = vpop.permute.xlu0 %342
    %344 = vset.pattern.permute.xlu0 0
    %345 = vperm.xlu0 %344, %v326
    %v346 = vpop.permute.xlu0 %345
    %347 = vset.pattern.permute.xlu0 0
    %348 = vperm.xlu0 %347, %v327
    %v349 = vpop.permute.xlu0 %348
    %350 = vset.pattern.permute.xlu0 0
    %351 = vperm.xlu0 %350, %v328
    %v352 = vpop.permute.xlu0 %351
    %353 = vset.pattern.permute.xlu0 0
    %354 = vperm.xlu0 %353, %v329
    %v355 = vpop.permute.xlu0 %354
    %vm356 = vcmp.eq.s32.totalorder %v334, %v331
    %vm357 = vcmp.eq.s32.totalorder %v337, %v331
    %vm358 = vcmp.eq.s32.totalorder %v340, %v331
    %vm359 = vcmp.eq.s32.totalorder %v343, %v331
    %vm360 = vcmp.eq.s32.totalorder %v346, %v331
    %vm361 = vcmp.eq.s32.totalorder %v349, %v331
    %vm362 = vcmp.eq.s32.totalorder %v352, %v331
    %vm363 = vcmp.eq.s32.totalorder %v355, %v331
    %v364 = vsel %vm356, 1, 0
    %v365 = vsel %vm357, 1, 0
    %v366 = vsel %vm358, 1, 0
    %v367 = vsel %vm359, 1, 0
    %v368 = vsel %vm360, 1, 0
    %v369 = vsel %vm361, 1, 0
    %v370 = vsel %vm362, 1, 0
    %v371 = vsel %vm363, 1, 0
    %v372 = vcvt.s32.f32 %v364
    %v373 = vcvt.s32.f32 %v365
    %v374 = vcvt.s32.f32 %v366
    %v375 = vcvt.s32.f32 %v367
    %v376 = vcvt.s32.f32 %v368
    %v377 = vcvt.s32.f32 %v369
    %v378 = vcvt.s32.f32 %v370
    %v379 = vcvt.s32.f32 %v371
    %vm380 = vcmask 523264
    %v382 = vsel %vm380, %v372, 0
    %v385 = vsel %vm380, %v373, 0
    %v388 = vsel %vm380, %v374, 0
    %v391 = vsel %vm380, %v375, 0
    %v394 = vsel %vm380, %v376, 0
    %v397 = vsel %vm380, %v377, 0
    %v400 = vsel %vm380, %v378, 0
    %v403 = vsel %vm380, %v379, 0
    %405 = vmatprep.subr.mxu0 %v165
    %406 = vmatpush1.msra.mxu0 %v163
    %407 = vmatprep.subr.mxu0 %v171
    %408 = vmatpush1.msra.mxu0 %v169
    %409 = vmatprep.subr.mxu0 %v177
    %410 = vmatpush1.msra.mxu0 %v175
    %411 = vmatprep.subr.mxu0 %v183
    %412 = vmatpush1.msra.mxu0 %v181
    %413 = vmatprep.subr.mxu0 %v189
    %414 = vmatpush1.msra.mxu0 %v187
    %415 = vmatprep.subr.mxu0 %v195
    %416 = vmatpush1.msra.mxu0 %v193
    %417 = vmatprep.subr.mxu0 %v201
    %418 = vmatpush1.msra.mxu0 %v199
    %419 = vmatprep.subr.mxu0 %v207
    %420 = vmatpush1.msra.mxu0 %v205
    %421 = vmatprep.subr.mxu0 0.0
    %422 = vmatpush1.msra.mxu0 0.0
    %423 = vmatprep.subr.mxu0 0.0
    %424 = vmatpush1.msra.mxu0 0.0
    %425 = vmatprep.subr.mxu0 0.0
    %426 = vmatpush1.msra.mxu0 0.0
    %427 = vmatprep.subr.mxu0 0.0
    %428 = vmatpush1.msra.mxu0 0.0
    %429 = vmatprep.subr.mxu0 0.0
    %430 = vmatpush1.msra.mxu0 0.0
    %431 = vmatprep.subr.mxu0 0.0
    %432 = vmatpush1.msra.mxu0 0.0
    %433 = vmatprep.subr.mxu0 0.0
    %434 = vmatpush1.msra.mxu0 0.0
    %435 = vmatprep.subr.mxu0 0.0
    %436 = vmatpush1.msra.mxu0 0.0
    %437 = vmatprep.subr.mxu0 0.0
    %438 = vmatpush1.msra.mxu0 0.0
    %439 = vmatprep.subr.mxu0 0.0
    %440 = vmatpush1.msra.mxu0 0.0
    %441 = vmatprep.subr.mxu0 0.0
    %442 = vmatpush1.msra.mxu0 0.0
    %443 = vmatprep.subr.mxu0 0.0
    %444 = vmatpush1.msra.mxu0 0.0
    %445 = vmatprep.subr.mxu0 0.0
    %446 = vmatpush1.msra.mxu0 0.0
    %447 = vmatprep.subr.mxu0 0.0
    %448 = vmatpush1.msra.mxu0 0.0
    %449 = vmatprep.subr.mxu0 0.0
    %450 = vmatpush1.msra.mxu0 0.0
    %451 = vmatprep.subr.mxu0 0.0
    %452 = vmatpush1.msra.mxu0 0.0
    %453 = vmatprep.subr.mxu0 0.0
    %454 = vmatpush1.msra.mxu0 0.0
    %455 = vmatprep.subr.mxu0 0.0
    %456 = vmatpush1.msra.mxu0 0.0
    %457 = vmatprep.subr.mxu0 0.0
    %458 = vmatpush1.msra.mxu0 0.0
    %459 = vmatprep.subr.mxu0 0.0
    %460 = vmatpush1.msra.mxu0 0.0
    %461 = vmatprep.subr.mxu0 0.0
    %462 = vmatpush1.msra.mxu0 0.0
    %463 = vmatprep.subr.mxu0 0.0
    %464 = vmatpush1.msra.mxu0 0.0
    %465 = vmatprep.subr.mxu0 0.0
    %466 = vmatpush1.msra.mxu0 0.0
    %467 = vmatprep.subr.mxu0 0.0
    %468 = vmatpush1.msra.mxu0 0.0
    %469 = vmatprep.mubr.f32.mxu0 0.0
    %470 = vmatmul.mubr.f32.gmra.mrb[0].mxu0 %v382
    %v471 = vpop.f32.mrb[0].mxu0
    %v472 = vadd.f32 0.0, %v471
    %v473 = vpop.f32.mrb[0].mxu0
    %v474 = vadd.f32 0.0, %v473
    %475 = vmatprep.mubr.f32.mxu0 0.0
    %476 = vmatmul.mubr.f32.gmra.mrb[0].mxu0 %v385
    %v477 = vpop.f32.mrb[0].mxu0
    %v478 = vadd.f32 0.0, %v477
    %v479 = vpop.f32.mrb[0].mxu0
    %v480 = vadd.f32 0.0, %v479
    %481 = vmatprep.mubr.f32.mxu0 0.0
    %482 = vmatmul.mubr.f32.gmra.mrb[0].mxu0 %v388
    %v483 = vpop.f32.mrb[0].mxu0
    %v484 = vadd.f32 0.0, %v483
    %v485 = vpop.f32.mrb[0].mxu0
    %v486 = vadd.f32 0.0, %v485
    %487 = vmatprep.mubr.f32.mxu0 0.0
    %488 = vmatmul.mubr.f32.gmra.mrb[0].mxu0 %v391
    %v489 = vpop.f32.mrb[0].mxu0
    %v490 = vadd.f32 0.0, %v489
    %v491 = vpop.f32.mrb[0].mxu0
    %v492 = vadd.f32 0.0, %v491
    %493 = vmatprep.mubr.f32.mxu0 0.0
    %494 = vmatmul.mubr.f32.gmra.mrb[0].mxu0 %v394
    %v495 = vpop.f32.mrb[0].mxu0
    %v496 = vadd.f32 0.0, %v495
    %v497 = vpop.f32.mrb[0].mxu0
    %v498 = vadd.f32 0.0, %v497
    %499 = vmatprep.mubr.f32.mxu0 0.0
    %500 = vmatmul.mubr.f32.gmra.mrb[0].mxu0 %v397
    %v501 = vpop.f32.mrb[0].mxu0
    %v502 = vadd.f32 0.0, %v501
    %v503 = vpop.f32.mrb[0].mxu0
    %v504 = vadd.f32 0.0, %v503
    %505 = vmatprep.mubr.f32.mxu0 0.0
    %506 = vmatmul.mubr.f32.gmra.mrb[0].mxu0 %v400
    %v507 = vpop.f32.mrb[0].mxu0
    %v508 = vadd.f32 0.0, %v507
    %v509 = vpop.f32.mrb[0].mxu0
    %v510 = vadd.f32 0.0, %v509
    %511 = vmatprep.mubr.f32.mxu0 0.0
    %512 = vmatmul.mubr.f32.gmra.mrb[0].mxu0 %v403
    %v513 = vpop.f32.mrb[0].mxu0
    %v514 = vadd.f32 0.0, %v513
    %v515 = vpop.f32.mrb[0].mxu0
    %v516 = vadd.f32 0.0, %v515
    %517 = vdwg.mxu0
    %518 = vmatprep.subr.mxu0 %v278
    %519 = vmatpush1.msra.mxu0 %v276
    %520 = vmatprep.subr.mxu0 %v284
    %521 = vmatpush1.msra.mxu0 %v282
    %522 = vmatprep.subr.mxu0 %v290
    %523 = vmatpush1.msra.mxu0 %v288
    %524 = vmatprep.subr.mxu0 %v296
    %525 = vmatpush1.msra.mxu0 %v294
    %526 = vmatprep.subr.mxu0 %v302
    %527 = vmatpush1.msra.mxu0 %v300
    %528 = vmatprep.subr.mxu0 %v308
    %529 = vmatpush1.msra.mxu0 %v306
    %530 = vmatprep.subr.mxu0 %v314
    %531 = vmatpush1.msra.mxu0 %v312
    %532 = vmatprep.subr.mxu0 %v320
    %533 = vmatpush1.msra.mxu0 %v318
    %534 = vmatprep.subr.mxu0 0.0
    %535 = vmatpush1.msra.mxu0 0.0
    %536 = vmatprep.subr.mxu0 0.0
    %537 = vmatpush1.msra.mxu0 0.0
    %538 = vmatprep.subr.mxu0 0.0
    %539 = vmatpush1.msra.mxu0 0.0
    %540 = vmatprep.subr.mxu0 0.0
    %541 = vmatpush1.msra.mxu0 0.0
    %542 = vmatprep.subr.mxu0 0.0
    %543 = vmatpush1.msra.mxu0 0.0
    %544 = vmatprep.subr.mxu0 0.0
    %545 = vmatpush1.msra.mxu0 0.0
    %546 = vmatprep.subr.mxu0 0.0
    %547 = vmatpush1.msra.mxu0 0.0
    %548 = vmatprep.subr.mxu0 0.0
    %549 = vmatpush1.msra.mxu0 0.0
    %550 = vmatprep.subr.mxu0 0.0
    %551 = vmatpush1.msra.mxu0 0.0
    %552 = vmatprep.subr.mxu0 0.0
    %553 = vmatpush1.msra.mxu0 0.0
    %554 = vmatprep.subr.mxu0 0.0
    %555 = vmatpush1.msra.mxu0 0.0
    %556 = vmatprep.subr.mxu0 0.0
    %557 = vmatpush1.msra.mxu0 0.0
    %558 = vmatprep.subr.mxu0 0.0
    %559 = vmatpush1.msra.mxu0 0.0
    %560 = vmatprep.subr.mxu0 0.0
    %561 = vmatpush1.msra.mxu0 0.0
    %562 = vmatprep.subr.mxu0 0.0
    %563 = vmatpush1.msra.mxu0 0.0
    %564 = vmatprep.subr.mxu0 0.0
    %565 = vmatpush1.msra.mxu0 0.0
    %566 = vmatprep.subr.mxu0 0.0
    %567 = vmatpush1.msra.mxu0 0.0
    %568 = vmatprep.subr.mxu0 0.0
    %569 = vmatpush1.msra.mxu0 0.0
    %570 = vmatprep.subr.mxu0 0.0
    %571 = vmatpush1.msra.mxu0 0.0
    %572 = vmatprep.subr.mxu0 0.0
    %573 = vmatpush1.msra.mxu0 0.0
    %574 = vmatprep.subr.mxu0 0.0
    %575 = vmatpush1.msra.mxu0 0.0
    %576 = vmatprep.subr.mxu0 0.0
    %577 = vmatpush1.msra.mxu0 0.0
    %578 = vmatprep.subr.mxu0 0.0
    %579 = vmatpush1.msra.mxu0 0.0
    %580 = vmatprep.subr.mxu0 0.0
    %581 = vmatpush1.msra.mxu0 0.0
    %582 = vmatprep.mubr.f32.mxu0 0.0
    %583 = vmatmul.mubr.f32.gmra.mrb[0].mxu0 %v382
    %v584 = vpop.f32.mrb[0].mxu0
    %v585 = vadd.f32 0.0, %v584
    %v586 = vpop.f32.mrb[0].mxu0
    %v587 = vadd.f32 0.0, %v586
    %588 = vmatprep.mubr.f32.mxu0 0.0
    %589 = vmatmul.mubr.f32.gmra.mrb[0].mxu0 %v385
    %v590 = vpop.f32.mrb[0].mxu0
    %v591 = vadd.f32 0.0, %v590
    %v592 = vpop.f32.mrb[0].mxu0
    %v593 = vadd.f32 0.0, %v592
    %594 = vmatprep.mubr.f32.mxu0 0.0
    %595 = vmatmul.mubr.f32.gmra.mrb[0].mxu0 %v388
    %v596 = vpop.f32.mrb[0].mxu0
    %v597 = vadd.f32 0.0, %v596
    %v598 = vpop.f32.mrb[0].mxu0
    %v599 = vadd.f32 0.0, %v598
    %600 = vmatprep.mubr.f32.mxu0 0.0
    %601 = vmatmul.mubr.f32.gmra.mrb[0].mxu0 %v391
    %v602 = vpop.f32.mrb[0].mxu0
    %v603 = vadd.f32 0.0, %v602
    %v604 = vpop.f32.mrb[0].mxu0
    %v605 = vadd.f32 0.0, %v604
    %606 = vmatprep.mubr.f32.mxu0 0.0
    %607 = vmatmul.mubr.f32.gmra.mrb[0].mxu0 %v394
    %v608 = vpop.f32.mrb[0].mxu0
    %v609 = vadd.f32 0.0, %v608
    %v610 = vpop.f32.mrb[0].mxu0
    %v611 = vadd.f32 0.0, %v610
    %612 = vmatprep.mubr.f32.mxu0 0.0
    %613 = vmatmul.mubr.f32.gmra.mrb[0].mxu0 %v397
    %v614 = vpop.f32.mrb[0].mxu0
    %v615 = vadd.f32 0.0, %v614
    %v616 = vpop.f32.mrb[0].mxu0
    %v617 = vadd.f32 0.0, %v616
    %618 = vmatprep.mubr.f32.mxu0 0.0
    %619 = vmatmul.mubr.f32.gmra.mrb[0].mxu0 %v400
    %v620 = vpop.f32.mrb[0].mxu0
    %v621 = vadd.f32 0.0, %v620
    %v622 = vpop.f32.mrb[0].mxu0
    %v623 = vadd.f32 0.0, %v622
    %624 = vmatprep.mubr.f32.mxu0 0.0
    %625 = vmatmul.mubr.f32.gmra.mrb[0].mxu0 %v403
    %v626 = vpop.f32.mrb[0].mxu0
    %v627 = vadd.f32 0.0, %v626
    %v628 = vpop.f32.mrb[0].mxu0
    %v629 = vadd.f32 0.0, %v628
    %630 = vdwg.mxu0
    %631 = vst [vmem:[#allocation2] sm:$0xff] %v472
    %632 = vst [vmem:[#allocation2 + $0x8] sm:$0xff] %v474
    %633 = vst [vmem:[#allocation2 + $0x10] sm:$0xff] %v585
    %634 = vst [vmem:[#allocation2 + $0x18] sm:$0xff] %v587
    %635 = vst [vmem:[#allocation2 + $0x20] sm:$0xff] %v478
    %636 = vst [vmem:[#allocation2 + $0x28] sm:$0xff] %v480
    %637 = vst [vmem:[#allocation2 + $0x30] sm:$0xff] %v591
    %638 = vst [vmem:[#allocation2 + $0x38] sm:$0xff] %v593
    %639 = vst [vmem:[#allocation2 + $0x40] sm:$0xff] %v484
    %640 = vst [vmem:[#allocation2 + $0x48] sm:$0xff] %v486
    %641 = vst [vmem:[#allocation2 + $0x50] sm:$0xff] %v597
    %642 = vst [vmem:[#allocation2 + $0x58] sm:$0xff] %v599
    %643 = vst [vmem:[#allocation2 + $0x60] sm:$0xff] %v490
    %644 = vst [vmem:[#allocation2 + $0x68] sm:$0xff] %v492
    %645 = vst [vmem:[#allocation2 + $0x70] sm:$0xff] %v603
    %646 = vst [vmem:[#allocation2 + $0x78] sm:$0xff] %v605
    %647 = vst [vmem:[#allocation2 + $0x80] sm:$0xff] %v496
    %648 = vst [vmem:[#allocation2 + $0x88] sm:$0xff] %v498
    %649 = vst [vmem:[#allocation2 + $0x90] sm:$0xff] %v609
    %650 = vst [vmem:[#allocation2 + $0x98] sm:$0xff] %v611
    %651 = vst [vmem:[#allocation2 + $0xa0] sm:$0xff] %v502
    %652 = vst [vmem:[#allocation2 + $0xa8] sm:$0xff] %v504
    %653 = vst [vmem:[#allocation2 + $0xb0] sm:$0xff] %v615
    %654 = vst [vmem:[#allocation2 + $0xb8] sm:$0xff] %v617
    %655 = vst [vmem:[#allocation2 + $0xc0] sm:$0xff] %v508
    %656 = vst [vmem:[#allocation2 + $0xc8] sm:$0xff] %v510
    %657 = vst [vmem:[#allocation2 + $0xd0] sm:$0xff] %v621
    %658 = vst [vmem:[#allocation2 + $0xd8] sm:$0xff] %v623
    %659 = vst [vmem:[#allocation2 + $0xe0] sm:$0xff] %v514
    %660 = vst [vmem:[#allocation2 + $0xe8] sm:$0xff] %v516
    %661 = vst [vmem:[#allocation2 + $0xf0] sm:$0xff] %v627
    %662 = vst [vmem:[#allocation2 + $0xf8] sm:$0xff] %v629
    %v663 = vld [vmem:[%s4] sm:$0xff]
    %s664 = smul.u32 0, 4
    %s665 = smul.addr %s664, 8
    %s666 = scalar_lea.vmem [#allocation2], %s665
    %v667 = vld [vmem:[%s666] sm:$0xff]
    %v668 = vld [vmem:[%s666 + $0x8] sm:$0xff]
    %v669 = vld [vmem:[%s666 + $0x10] sm:$0xff]
    %v670 = vld [vmem:[%s666 + $0x18] sm:$0xff]
    %v671 = vpack.c.bf16 %v663, %v663
    %v672 = vld [vmem:[%s5] sm:$0xff]
    %v673 = vld [vmem:[%s5 + $0x8] sm:$0xff]
    %v674 = vld [vmem:[%s5 + $0x10] sm:$0xff]
    %v675 = vld [vmem:[%s5 + $0x18] sm:$0xff]
    %v676 = vld [vmem:[%s5 + $0x20] sm:$0xff]
    %v677 = vld [vmem:[%s5 + $0x28] sm:$0xff]
    %v678 = vld [vmem:[%s5 + $0x30] sm:$0xff]
    %v679 = vld [vmem:[%s5 + $0x38] sm:$0xff]
    %v680 = vld [vmem:[%s5 + $0x40] sm:$0xff]
    %v681 = vld [vmem:[%s5 + $0x48] sm:$0xff]
    %v682 = vld [vmem:[%s5 + $0x50] sm:$0xff]
    %v683 = vld [vmem:[%s5 + $0x58] sm:$0xff]
    %v684 = vld [vmem:[%s5 + $0x60] sm:$0xff]
    %v685 = vld [vmem:[%s5 + $0x68] sm:$0xff]
    %v686 = vld [vmem:[%s5 + $0x70] sm:$0xff]
    %v687 = vld [vmem:[%s5 + $0x78] sm:$0xff]
    %v688 = vld [vmem:[%s5 + $0x80] sm:$0xff]
    %v689 = vld [vmem:[%s5 + $0x88] sm:$0xff]
    %v690 = vld [vmem:[%s5 + $0x90] sm:$0xff]
    %v691 = vld [vmem:[%s5 + $0x98] sm:$0xff]
    %v692 = vld [vmem:[%s5 + $0xa0] sm:$0xff]
    %v693 = vld [vmem:[%s5 + $0xa8] sm:$0xff]
    %v694 = vld [vmem:[%s5 + $0xb0] sm:$0xff]
    %v695 = vld [vmem:[%s5 + $0xb8] sm:$0xff]
    %v696 = vld [vmem:[%s5 + $0xc0] sm:$0xff]
    %v697 = vld [vmem:[%s5 + $0xc8] sm:$0xff]
    %v698 = vld [vmem:[%s5 + $0xd0] sm:$0xff]
    %v699 = vld [vmem:[%s5 + $0xd8] sm:$0xff]
    %v700 = vld [vmem:[%s5 + $0xe0] sm:$0xff]
    %v701 = vld [vmem:[%s5 + $0xe8] sm:$0xff]
    %v702 = vld [vmem:[%s5 + $0xf0] sm:$0xff]
    %v703 = vld [vmem:[%s5 + $0xf8] sm:$0xff]
    %v736 = vunpack.c.l.b16 %v672
    %v737 = vunpack.c.h.b16 %v672
    %v738 = vunpack.c.l.b16 %v673
    %v739 = vunpack.c.h.b16 %v673
    %v740 = vunpack.c.l.b16 %v674
    %v741 = vunpack.c.h.b16 %v674
    %v742 = vunpack.c.l.b16 %v675
    %v743 = vunpack.c.h.b16 %v675
    %v744 = vunpack.c.l.b16 %v676
    %v745 = vunpack.c.h.b16 %v676
    %v746 = vunpack.c.l.b16 %v677
    %v747 = vunpack.c.h.b16 %v677
    %v748 = vunpack.c.l.b16 %v678
    %v749 = vunpack.c.h.b16 %v678
    %v750 = vunpack.c.l.b16 %v679
    %v751 = vunpack.c.h.b16 %v679
    %v752 = vunpack.c.l.b16 %v680
    %v753 = vunpack.c.h.b16 %v680
    %v754 = vunpack.c.l.b16 %v681
    %v755 = vunpack.c.h.b16 %v681
    %v756 = vunpack.c.l.b16 %v682
    %v757 = vunpack.c.h.b16 %v682
    %v758 = vunpack.c.l.b16 %v683
    %v759 = vunpack.c.h.b16 %v683
    %v760 = vunpack.c.l.b16 %v684
    %v761 = vunpack.c.h.b16 %v684
    %v762 = vunpack.c.l.b16 %v685
    %v763 = vunpack.c.h.b16 %v685
    %v764 = vunpack.c.l.b16 %v686
    %v765 = vunpack.c.h.b16 %v686
    %v766 = vunpack.c.l.b16 %v687
    %v767 = vunpack.c.h.b16 %v687
    %v768 = vunpack.c.l.b16 %v688
    %v769 = vunpack.c.h.b16 %v688
    %v770 = vunpack.c.l.b16 %v689
    %v771 = vunpack.c.h.b16 %v689
    %v772 = vunpack.c.l.b16 %v690
    %v773 = vunpack.c.h.b16 %v690
    %v774 = vunpack.c.l.b16 %v691
    %v775 = vunpack.c.h.b16 %v691
    %v776 = vunpack.c.l.b16 %v692
    %v777 = vunpack.c.h.b16 %v692
    %v778 = vunpack.c.l.b16 %v693
    %v779 = vunpack.c.h.b16 %v693
    %v780 = vunpack.c.l.b16 %v694
    %v781 = vunpack.c.h.b16 %v694
    %v782 = vunpack.c.l.b16 %v695
    %v783 = vunpack.c.h.b16 %v695
    %v784 = vunpack.c.l.b16 %v696
    %v785 = vunpack.c.h.b16 %v696
    %v786 = vunpack.c.l.b16 %v697
    %v787 = vunpack.c.h.b16 %v697
    %v788 = vunpack.c.l.b16 %v698
    %v789 = vunpack.c.h.b16 %v698
    %v790 = vunpack.c.l.b16 %v699
    %v791 = vunpack.c.h.b16 %v699
    %v792 = vunpack.c.l.b16 %v700
    %v793 = vunpack.c.h.b16 %v700
    %v794 = vunpack.c.l.b16 %v701
    %v795 = vunpack.c.h.b16 %v701
    %v796 = vunpack.c.l.b16 %v702
    %v797 = vunpack.c.h.b16 %v702
    %v798 = vunpack.c.l.b16 %v703
    %v799 = vunpack.c.h.b16 %v703
    %v800 = vpack.c.b16 %v740, %v736
    %v801 = vpack.c.b16 %v741, %v737
    %v802 = vpack.c.b16 %v742, %v738
    %v803 = vpack.c.b16 %v743, %v739
    %v804 = vpack.c.b16 %v748, %v744
    %v805 = vpack.c.b16 %v749, %v745
    %v806 = vpack.c.b16 %v750, %v746
    %v807 = vpack.c.b16 %v751, %v747
    %v808 = vpack.c.b16 %v756, %v752
    %v809 = vpack.c.b16 %v757, %v753
    %v810 = vpack.c.b16 %v758, %v754
    %v811 = vpack.c.b16 %v759, %v755
    %v812 = vpack.c.b16 %v764, %v760
    %v813 = vpack.c.b16 %v765, %v761
    %v814 = vpack.c.b16 %v766, %v762
    %v815 = vpack.c.b16 %v767, %v763
    %v816 = vpack.c.b16 %v772, %v768
    %v817 = vpack.c.b16 %v773, %v769
    %v818 = vpack.c.b16 %v774, %v770
    %v819 = vpack.c.b16 %v775, %v771
    %v820 = vpack.c.b16 %v780, %v776
    %v821 = vpack.c.b16 %v781, %v777
    %v822 = vpack.c.b16 %v782, %v778
    %v823 = vpack.c.b16 %v783, %v779
    %v824 = vpack.c.b16 %v788, %v784
    %v825 = vpack.c.b16 %v789, %v785
    %v826 = vpack.c.b16 %v790, %v786
    %v827 = vpack.c.b16 %v791, %v787
    %v828 = vpack.c.b16 %v796, %v792
    %v829 = vpack.c.b16 %v797, %v793
    %v830 = vpack.c.b16 %v798, %v794
    %v831 = vpack.c.b16 %v799, %v795
    %864 = vmatprep.subr.bf16.mxu0 %v801
    %865 = vmatpush1.bf16.msra.mxu0 %v800
    %866 = vmatprep.subr.bf16.mxu0 %v805
    %867 = vmatpush1.bf16.msra.mxu0 %v804
    %868 = vmatprep.subr.bf16.mxu0 %v809
    %869 = vmatpush1.bf16.msra.mxu0 %v808
    %870 = vmatprep.subr.bf16.mxu0 %v813
    %871 = vmatpush1.bf16.msra.mxu0 %v812
    %872 = vmatprep.subr.bf16.mxu0 %v817
    %873 = vmatpush1.bf16.msra.mxu0 %v816
    %874 = vmatprep.subr.bf16.mxu0 %v821
    %875 = vmatpush1.bf16.msra.mxu0 %v820
    %876 = vmatprep.subr.bf16.mxu0 %v825
    %877 = vmatpush1.bf16.msra.mxu0 %v824
    %878 = vmatprep.subr.bf16.mxu0 %v829
    %879 = vmatpush1.bf16.msra.mxu0 %v828
    %880 = vmatprep.subr.bf16.mxu0 0
    %881 = vmatpush1.bf16.msra.mxu0 0
    %882 = vmatprep.subr.bf16.mxu0 0
    %883 = vmatpush1.bf16.msra.mxu0 0
    %884 = vmatprep.subr.bf16.mxu0 0
    %885 = vmatpush1.bf16.msra.mxu0 0
    %886 = vmatprep.subr.bf16.mxu0 0
    %887 = vmatpush1.bf16.msra.mxu0 0
    %888 = vmatprep.subr.bf16.mxu0 0
    %889 = vmatpush1.bf16.msra.mxu0 0
    %890 = vmatprep.subr.bf16.mxu0 0
    %891 = vmatpush1.bf16.msra.mxu0 0
    %892 = vmatprep.subr.bf16.mxu0 0
    %893 = vmatpush1.bf16.msra.mxu0 0
    %894 = vmatprep.subr.bf16.mxu0 0
    %895 = vmatpush1.bf16.msra.mxu0 0
    %896 = vmatprep.mubr.bf16.mxu0 0
    %897 = vmatmul.mubr.bf16.gmra.mrb[0].mxu0 %v671
    %v898 = vpop.f32.mrb[0].mxu0
    %v899 = vadd.f32 0.0, %v898
    %v900 = vpop.f32.mrb[0].mxu0
    %v901 = vadd.f32 0.0, %v900
    %v902 = vpop.f32.mrb[0].mxu0
    %v903 = vpop.f32.mrb[0].mxu0
    %904 = vdwg.mxu0
    %905 = vmatprep.subr.bf16.mxu0 %v803
    %906 = vmatpush1.bf16.msra.mxu0 %v802
    %907 = vmatprep.subr.bf16.mxu0 %v807
    %908 = vmatpush1.bf16.msra.mxu0 %v806
    %909 = vmatprep.subr.bf16.mxu0 %v811
    %910 = vmatpush1.bf16.msra.mxu0 %v810
    %911 = vmatprep.subr.bf16.mxu0 %v815
    %912 = vmatpush1.bf16.msra.mxu0 %v814
    %913 = vmatprep.subr.bf16.mxu0 %v819
    %914 = vmatpush1.bf16.msra.mxu0 %v818
    %915 = vmatprep.subr.bf16.mxu0 %v823
    %916 = vmatpush1.bf16.msra.mxu0 %v822
    %917 = vmatprep.subr.bf16.mxu0 %v827
    %918 = vmatpush1.bf16.msra.mxu0 %v826
    %919 = vmatprep.subr.bf16.mxu0 %v831
    %920 = vmatpush1.bf16.msra.mxu0 %v830
    %921 = vmatprep.subr.bf16.mxu0 0
    %922 = vmatpush1.bf16.msra.mxu0 0
    %923 = vmatprep.subr.bf16.mxu0 0
    %924 = vmatpush1.bf16.msra.mxu0 0
    %925 = vmatprep.subr.bf16.mxu0 0
    %926 = vmatpush1.bf16.msra.mxu0 0
    %927 = vmatprep.subr.bf16.mxu0 0
    %928 = vmatpush1.bf16.msra.mxu0 0
    %929 = vmatprep.subr.bf16.mxu0 0
    %930 = vmatpush1.bf16.msra.mxu0 0
    %931 = vmatprep.subr.bf16.mxu0 0
    %932 = vmatpush1.bf16.msra.mxu0 0
    %933 = vmatprep.subr.bf16.mxu0 0
    %934 = vmatpush1.bf16.msra.mxu0 0
    %935 = vmatprep.subr.bf16.mxu0 0
    %936 = vmatpush1.bf16.msra.mxu0 0
    %937 = vmatprep.mubr.bf16.mxu0 0
    %938 = vmatmul.mubr.bf16.gmra.mrb[0].mxu0 %v671
    %v939 = vpop.f32.mrb[0].mxu0
    %v940 = vadd.f32 0.0, %v939
    %v941 = vpop.f32.mrb[0].mxu0
    %v942 = vadd.f32 0.0, %v941
    %v943 = vpop.f32.mrb[0].mxu0
    %v944 = vpop.f32.mrb[0].mxu0
    %945 = vdwg.mxu0
    %v946 = vadd.f32 %v667, %v899
    %v947 = vadd.f32 %v668, %v901
    %v948 = vadd.f32 %v669, %v940
    %v949 = vadd.f32 %v670, %v942
    %v950 = vxor.u32 %v946, 2147483648
    %v951 = vmul.f32 %v950, 1.442695
    %v952 = vpow.pop %v951
    %v953 = vadd.f32 %v952, 1.0
    %v954 = vrcp.pop %v953
    %v955 = vmul.f32 1.0, %v954
    %v956 = vxor.u32 %v947, 2147483648
    %v957 = vmul.f32 %v956, 1.442695
    %v958 = vpow.pop %v957
    %v959 = vadd.f32 %v958, 1.0
    %v960 = vrcp.pop %v959
    %v961 = vmul.f32 1.0, %v960
    %v962 = vxor.u32 %v948, 2147483648
    %v963 = vmul.f32 %v962, 1.442695
    %v964 = vpow.pop %v963
    %v965 = vadd.f32 %v964, 1.0
    %v966 = vrcp.pop %v965
    %v967 = vmul.f32 1.0, %v966
    %v968 = vtanh.pop %v949
    %v969 = vmul.f32 %v955, 0.0
    %v970 = vmul.f32 %v961, %v968
    %v971 = vadd.f32 %v969, %v970
    %v972 = vtanh.pop %v971
    %v973 = vmul.f32 %v967, %v972
    %974 = vst [vmem:[#allocation3] sm:$0xff] %v973
    %s975 = smul.u32 1, 4
    %s976 = smul.addr %s975, 8
    %s977 = scalar_lea.vmem [#allocation2], %s976
    %v978 = vld [vmem:[%s977] sm:$0xff]
    %v979 = vld [vmem:[%s977 + $0x8] sm:$0xff]
    %v980 = vld [vmem:[%s977 + $0x10] sm:$0xff]
    %v981 = vld [vmem:[%s977 + $0x18] sm:$0xff]
    %v982 = vpack.c.bf16 %v973, %v973
    %v983 = vld [vmem:[%s5] sm:$0xff]
    %v984 = vld [vmem:[%s5 + $0x8] sm:$0xff]
    %v985 = vld [vmem:[%s5 + $0x10] sm:$0xff]
    %v986 = vld [vmem:[%s5 + $0x18] sm:$0xff]
    %v987 = vld [vmem:[%s5 + $0x20] sm:$0xff]
    %v988 = vld [vmem:[%s5 + $0x28] sm:$0xff]
    %v989 = vld [vmem:[%s5 + $0x30] sm:$0xff]
    %v990 = vld [vmem:[%s5 + $0x38] sm:$0xff]
    %v991 = vld [vmem:[%s5 + $0x40] sm:$0xff]
    %v992 = vld [vmem:[%s5 + $0x48] sm:$0xff]
    %v993 = vld [vmem:[%s5 + $0x50] sm:$0xff]
    %v994 = vld [vmem:[%s5 + $0x58] sm:$0xff]
    %v995 = vld [vmem:[%s5 + $0x60] sm:$0xff]
    %v996 = vld [vmem:[%s5 + $0x68] sm:$0xff]
    %v997 = vld [vmem:[%s5 + $0x70] sm:$0xff]
    %v998 = vld [vmem:[%s5 + $0x78] sm:$0xff]
    %v999 = vld [vmem:[%s5 + $0x80] sm:$0xff]
    %v1000 = vld [vmem:[%s5 + $0x88] sm:$0xff]
    %v1001 = vld [vmem:[%s5 + $0x90] sm:$0xff]
    %v1002 = vld [vmem:[%s5 + $0x98] sm:$0xff]
    %v1003 = vld [vmem:[%s5 + $0xa0] sm:$0xff]
    %v1004 = vld [vmem:[%s5 + $0xa8] sm:$0xff]
    %v1005 = vld [vmem:[%s5 + $0xb0] sm:$0xff]
    %v1006 = vld [vmem:[%s5 + $0xb8] sm:$0xff]
    %v1007 = vld [vmem:[%s5 + $0xc0] sm:$0xff]
    %v1008 = vld [vmem:[%s5 + $0xc8] sm:$0xff]
    %v1009 = vld [vmem:[%s5 + $0xd0] sm:$0xff]
    %v1010 = vld [vmem:[%s5 + $0xd8] sm:$0xff]
    %v1011 = vld [vmem:[%s5 + $0xe0] sm:$0xff]
    %v1012 = vld [vmem:[%s5 + $0xe8] sm:$0xff]
    %v1013 = vld [vmem:[%s5 + $0xf0] sm:$0xff]
    %v1014 = vld [vmem:[%s5 + $0xf8] sm:$0xff]
    %v1047 = vunpack.c.l.b16 %v983
    %v1048 = vunpack.c.h.b16 %v983
    %v1049 = vunpack.c.l.b16 %v984
    %v1050 = vunpack.c.h.b16 %v984
    %v1051 = vunpack.c.l.b16 %v985
    %v1052 = vunpack.c.h.b16 %v985
    %v1053 = vunpack.c.l.b16 %v986
    %v1054 = vunpack.c.h.b16 %v986
    %v1055 = vunpack.c.l.b16 %v987
    %v1056 = vunpack.c.h.b16 %v987
    %v1057 = vunpack.c.l.b16 %v988
    %v1058 = vunpack.c.h.b16 %v988
    %v1059 = vunpack.c.l.b16 %v989
    %v1060 = vunpack.c.h.b16 %v989
    %v1061 = vunpack.c.l.b16 %v990
    %v1062 = vunpack.c.h.b16 %v990
    %v1063 = vunpack.c.l.b16 %v991
    %v1064 = vunpack.c.h.b16 %v991
    %v1065 = vunpack.c.l.b16 %v992
    %v1066 = vunpack.c.h.b16 %v992
    %v1067 = vunpack.c.l.b16 %v993
    %v1068 = vunpack.c.h.b16 %v993
    %v1069 = vunpack.c.l.b16 %v994
    %v1070 = vunpack.c.h.b16 %v994
    %v1071 = vunpack.c.l.b16 %v995
    %v1072 = vunpack.c.h.b16 %v995
    %v1073 = vunpack.c.l.b16 %v996
    %v1074 = vunpack.c.h.b16 %v996
    %v1075 = vunpack.c.l.b16 %v997
    %v1076 = vunpack.c.h.b16 %v997
    %v1077 = vunpack.c.l.b16 %v998
    %v1078 = vunpack.c.h.b16 %v998
    %v1079 = vunpack.c.l.b16 %v999
    %v1080 = vunpack.c.h.b16 %v999
    %v1081 = vunpack.c.l.b16 %v1000
    %v1082 = vunpack.c.h.b16 %v1000
    %v1083 = vunpack.c.l.b16 %v1001
    %v1084 = vunpack.c.h.b16 %v1001
    %v1085 = vunpack.c.l.b16 %v1002
    %v1086 = vunpack.c.h.b16 %v1002
    %v1087 = vunpack.c.l.b16 %v1003
    %v1088 = vunpack.c.h.b16 %v1003
    %v1089 = vunpack.c.l.b16 %v1004
    %v1090 = vunpack.c.h.b16 %v1004
    %v1091 = vunpack.c.l.b16 %v1005
    %v1092 = vunpack.c.h.b16 %v1005
    %v1093 = vunpack.c.l.b16 %v1006
    %v1094 = vunpack.c.h.b16 %v1006
    %v1095 = vunpack.c.l.b16 %v1007
    %v1096 = vunpack.c.h.b16 %v1007
    %v1097 = vunpack.c.l.b16 %v1008
    %v1098 = vunpack.c.h.b16 %v1008
    %v1099 = vunpack.c.l.b16 %v1009
    %v1100 = vunpack.c.h.b16 %v1009
    %v1101 = vunpack.c.l.b16 %v1010
    %v1102 = vunpack.c.h.b16 %v1010
    %v1103 = vunpack.c.l.b16 %v1011
    %v1104 = vunpack.c.h.b16 %v1011
    %v1105 = vunpack.c.l.b16 %v1012
    %v1106 = vunpack.c.h.b16 %v1012
    %v1107 = vunpack.c.l.b16 %v1013
    %v1108 = vunpack.c.h.b16 %v1013
    %v1109 = vunpack.c.l.b16 %v1014
    %v1110 = vunpack.c.h.b16 %v1014
    %v1111 = vpack.c.b16 %v1051, %v1047
    %v1112 = vpack.c.b16 %v1052, %v1048
    %v1113 = vpack.c.b16 %v1053, %v1049
    %v1114 = vpack.c.b16 %v1054, %v1050
    %v1115 = vpack.c.b16 %v1059, %v1055
    %v1116 = vpack.c.b16 %v1060, %v1056
    %v1117 = vpack.c.b16 %v1061, %v1057
    %v1118 = vpack.c.b16 %v1062, %v1058
    %v1119 = vpack.c.b16 %v1067, %v1063
    %v1120 = vpack.c.b16 %v1068, %v1064
    %v1121 = vpack.c.b16 %v1069, %v1065
    %v1122 = vpack.c.b16 %v1070, %v1066
    %v1123 = vpack.c.b16 %v1075, %v1071
    %v1124 = vpack.c.b16 %v1076, %v1072
    %v1125 = vpack.c.b16 %v1077, %v1073
    %v1126 = vpack.c.b16 %v1078, %v1074
    %v1127 = vpack.c.b16 %v1083, %v1079
    %v1128 = vpack.c.b16 %v1084, %v1080
    %v1129 = vpack.c.b16 %v1085, %v1081
    %v1130 = vpack.c.b16 %v1086, %v1082
    %v1131 = vpack.c.b16 %v1091, %v1087
    %v1132 = vpack.c.b16 %v1092, %v1088
    %v1133 = vpack.c.b16 %v1093, %v1089
    %v1134 = vpack.c.b16 %v1094, %v1090
    %v1135 = vpack.c.b16 %v1099, %v1095
    %v1136 = vpack.c.b16 %v1100, %v1096
    %v1137 = vpack.c.b16 %v1101, %v1097
    %v1138 = vpack.c.b16 %v1102, %v1098
    %v1139 = vpack.c.b16 %v1107, %v1103
    %v1140 = vpack.c.b16 %v1108, %v1104
    %v1141 = vpack.c.b16 %v1109, %v1105
    %v1142 = vpack.c.b16 %v1110, %v1106
    %1175 = vmatprep.subr.bf16.mxu0 %v1112
    %1176 = vmatpush1.bf16.msra.mxu0 %v1111
    %1177 = vmatprep.subr.bf16.mxu0 %v1116
    %1178 = vmatpush1.bf16.msra.mxu0 %v1115
    %1179 = vmatprep.subr.bf16.mxu0 %v1120
    %1180 = vmatpush1.bf16.msra.mxu0 %v1119
    %1181 = vmatprep.subr.bf16.mxu0 %v1124
    %1182 = vmatpush1.bf16.msra.mxu0 %v1123
    %1183 = vmatprep.subr.bf16.mxu0 %v1128
    %1184 = vmatpush1.bf16.msra.mxu0 %v1127
    %1185 = vmatprep.subr.bf16.mxu0 %v1132
    %1186 = vmatpush1.bf16.msra.mxu0 %v1131
    %1187 = vmatprep.subr.bf16.mxu0 %v1136
    %1188 = vmatpush1.bf16.msra.mxu0 %v1135
    %1189 = vmatprep.subr.bf16.mxu0 %v1140
    %1190 = vmatpush1.bf16.msra.mxu0 %v1139
    %1191 = vmatprep.subr.bf16.mxu0 0
    %1192 = vmatpush1.bf16.msra.mxu0 0
    %1193 = vmatprep.subr.bf16.mxu0 0
    %1194 = vmatpush1.bf16.msra.mxu0 0
    %1195 = vmatprep.subr.bf16.mxu0 0
    %1196 = vmatpush1.bf16.msra.mxu0 0
    %1197 = vmatprep.subr.bf16.mxu0 0
    %1198 = vmatpush1.bf16.msra.mxu0 0
    %1199 = vmatprep.subr.bf16.mxu0 0
    %1200 = vmatpush1.bf16.msra.mxu0 0
    %1201 = vmatprep.subr.bf16.mxu0 0
    %1202 = vmatpush1.bf16.msra.mxu0 0
    %1203 = vmatprep.subr.bf16.mxu0 0
    %1204 = vmatpush1.bf16.msra.mxu0 0
    %1205 = vmatprep.subr.bf16.mxu0 0
    %1206 = vmatpush1.bf16.msra.mxu0 0
    %1207 = vmatprep.mubr.bf16.mxu0 0
    %1208 = vmatmul.mubr.bf16.gmra.mrb[0].mxu0 %v982
    %v1209 = vpop.f32.mrb[0].mxu0
    %v1210 = vadd.f32 0.0, %v1209
    %v1211 = vpop.f32.mrb[0].mxu0
    %v1212 = vadd.f32 0.0, %v1211
    %v1213 = vpop.f32.mrb[0].mxu0
    %v1214 = vpop.f32.mrb[0].mxu0
    %1215 = vdwg.mxu0
    %1216 = vmatprep.subr.bf16.mxu0 %v1114
    %1217 = vmatpush1.bf16.msra.mxu0 %v1113
    %1218 = vmatprep.subr.bf16.mxu0 %v1118
    %1219 = vmatpush1.bf16.msra.mxu0 %v1117
    %1220 = vmatprep.subr.bf16.mxu0 %v1122
    %1221 = vmatpush1.bf16.msra.mxu0 %v1121
    %1222 = vmatprep.subr.bf16.mxu0 %v1126
    %1223 = vmatpush1.bf16.msra.mxu0 %v1125
    %1224 = vmatprep.subr.bf16.mxu0 %v1130
    %1225 = vmatpush1.bf16.msra.mxu0 %v1129
    %1226 = vmatprep.subr.bf16.mxu0 %v1134
    %1227 = vmatpush1.bf16.msra.mxu0 %v1133
    %1228 = vmatprep.subr.bf16.mxu0 %v1138
    %1229 = vmatpush1.bf16.msra.mxu0 %v1137
    %1230 = vmatprep.subr.bf16.mxu0 %v1142
    %1231 = vmatpush1.bf16.msra.mxu0 %v1141
    %1232 = vmatprep.subr.bf16.mxu0 0
    %1233 = vmatpush1.bf16.msra.mxu0 0
    %1234 = vmatprep.subr.bf16.mxu0 0
    %1235 = vmatpush1.bf16.msra.mxu0 0
    %1236 = vmatprep.subr.bf16.mxu0 0
    %1237 = vmatpush1.bf16.msra.mxu0 0
    %1238 = vmatprep.subr.bf16.mxu0 0
    %1239 = vmatpush1.bf16.msra.mxu0 0
    %1240 = vmatprep.subr.bf16.mxu0 0
    %1241 = vmatpush1.bf16.msra.mxu0 0
    %1242 = vmatprep.subr.bf16.mxu0 0
    %1243 = vmatpush1.bf16.msra.mxu0 0
    %1244 = vmatprep.subr.bf16.mxu0 0
    %1245 = vmatpush1.bf16.msra.mxu0 0
    %1246 = vmatprep.subr.bf16.mxu0 0
    %1247 = vmatpush1.bf16.msra.mxu0 0
    %1248 = vmatprep.mubr.bf16.mxu0 0
    %1249 = vmatmul.mubr.bf16.gmra.mrb[0].mxu0 %v982
    %v1250 = vpop.f32.mrb[0].mxu0
    %v1251 = vadd.f32 0.0, %v1250
    %v1252 = vpop.f32.mrb[0].mxu0
    %v1253 = vadd.f32 0.0, %v1252
    %v1254 = vpop.f32.mrb[0].mxu0
    %v1255 = vpop.f32.mrb[0].mxu0
    %1256 = vdwg.mxu0
    %v1257 = vadd.f32 %v978, %v1210
    %v1258 = vadd.f32 %v979, %v1212
    %v1259 = vadd.f32 %v980, %v1251
    %v1260 = vadd.f32 %v981, %v1253
    %v1261 = vxor.u32 %v1257, 2147483648
    %v1262 = vmul.f32 %v1261, 1.442695
    %v1263 = vpow.pop %v1262
    %v1264 = vadd.f32 %v1263, 1.0
    %v1265 = vrcp.pop %v1264
    %v1266 = vmul.f32 1.0, %v1265
    %v1267 = vxor.u32 %v1258, 2147483648
    %v1268 = vmul.f32 %v1267, 1.442695
    %v1269 = vpow.pop %v1268
    %v1270 = vadd.f32 %v1269, 1.0
    %v1271 = vrcp.pop %v1270
    %v1272 = vmul.f32 1.0, %v1271
    %v1273 = vxor.u32 %v1259, 2147483648
    %v1274 = vmul.f32 %v1273, 1.442695
    %v1275 = vpow.pop %v1274
    %v1276 = vadd.f32 %v1275, 1.0
    %v1277 = vrcp.pop %v1276
    %v1278 = vmul.f32 1.0, %v1277
    %v1279 = vtanh.pop %v1260
    %v1280 = vmul.f32 %v1266, %v971
    %v1281 = vmul.f32 %v1272, %v1279
    %v1282 = vadd.f32 %v1280, %v1281
    %v1283 = vtanh.pop %v1282
    %v1284 = vmul.f32 %v1278, %v1283
    %s1285 = scalar_lea.vmem [#allocation3], 8
    %1286 = vst [vmem:[%s1285] sm:$0xff] %v1284
    %s1287 = smul.u32 2, 4
    %s1288 = smul.addr %s1287, 8
    %s1289 = scalar_lea.vmem [#allocation2], %s1288
    %v1290 = vld [vmem:[%s1289] sm:$0xff]
    %v1291 = vld [vmem:[%s1289 + $0x8] sm:$0xff]
    %v1292 = vld [vmem:[%s1289 + $0x10] sm:$0xff]
    %v1293 = vld [vmem:[%s1289 + $0x18] sm:$0xff]
    %v1294 = vpack.c.bf16 %v1284, %v1284
    %v1295 = vld [vmem:[%s5] sm:$0xff]
    %v1296 = vld [vmem:[%s5 + $0x8] sm:$0xff]
    %v1297 = vld [vmem:[%s5 + $0x10] sm:$0xff]
    %v1298 = vld [vmem:[%s5 + $0x18] sm:$0xff]
    %v1299 = vld [vmem:[%s5 + $0x20] sm:$0xff]
    %v1300 = vld [vmem:[%s5 + $0x28] sm:$0xff]
    %v1301 = vld [vmem:[%s5 + $0x30] sm:$0xff]
    %v1302 = vld [vmem:[%s5 + $0x38] sm:$0xff]
    %v1303 = vld [vmem:[%s5 + $0x40] sm:$0xff]
    %v1304 = vld [vmem:[%s5 + $0x48] sm:$0xff]
    %v1305 = vld [vmem:[%s5 + $0x50] sm:$0xff]
    %v1306 = vld [vmem:[%s5 + $0x58] sm:$0xff]
    %v1307 = vld [vmem:[%s5 + $0x60] sm:$0xff]
    %v1308 = vld [vmem:[%s5 + $0x68] sm:$0xff]
    %v1309 = vld [vmem:[%s5 + $0x70] sm:$0xff]
    %v1310 = vld [vmem:[%s5 + $0x78] sm:$0xff]
    %v1311 = vld [vmem:[%s5 + $0x80] sm:$0xff]
    %v1312 = vld [vmem:[%s5 + $0x88] sm:$0xff]
    %v1313 = vld [vmem:[%s5 + $0x90] sm:$0xff]
    %v1314 = vld [vmem:[%s5 + $0x98] sm:$0xff]
    %v1315 = vld [vmem:[%s5 + $0xa0] sm:$0xff]
    %v1316 = vld [vmem:[%s5 + $0xa8] sm:$0xff]
    %v1317 = vld [vmem:[%s5 + $0xb0] sm:$0xff]
    %v1318 = vld [vmem:[%s5 + $0xb8] sm:$0xff]
    %v1319 = vld [vmem:[%s5 + $0xc0] sm:$0xff]
    %v1320 = vld [vmem:[%s5 + $0xc8] sm:$0xff]
    %v1321 = vld [vmem:[%s5 + $0xd0] sm:$0xff]
    %v1322 = vld [vmem:[%s5 + $0xd8] sm:$0xff]
    %v1323 = vld [vmem:[%s5 + $0xe0] sm:$0xff]
    %v1324 = vld [vmem:[%s5 + $0xe8] sm:$0xff]
    %v1325 = vld [vmem:[%s5 + $0xf0] sm:$0xff]
    %v1326 = vld [vmem:[%s5 + $0xf8] sm:$0xff]
    %v1359 = vunpack.c.l.b16 %v1295
    %v1360 = vunpack.c.h.b16 %v1295
    %v1361 = vunpack.c.l.b16 %v1296
    %v1362 = vunpack.c.h.b16 %v1296
    %v1363 = vunpack.c.l.b16 %v1297
    %v1364 = vunpack.c.h.b16 %v1297
    %v1365 = vunpack.c.l.b16 %v1298
    %v1366 = vunpack.c.h.b16 %v1298
    %v1367 = vunpack.c.l.b16 %v1299
    %v1368 = vunpack.c.h.b16 %v1299
    %v1369 = vunpack.c.l.b16 %v1300
    %v1370 = vunpack.c.h.b16 %v1300
    %v1371 = vunpack.c.l.b16 %v1301
    %v1372 = vunpack.c.h.b16 %v1301
    %v1373 = vunpack.c.l.b16 %v1302
    %v1374 = vunpack.c.h.b16 %v1302
    %v1375 = vunpack.c.l.b16 %v1303
    %v1376 = vunpack.c.h.b16 %v1303
    %v1377 = vunpack.c.l.b16 %v1304
    %v1378 = vunpack.c.h.b16 %v1304
    %v1379 = vunpack.c.l.b16 %v1305
    %v1380 = vunpack.c.h.b16 %v1305
    %v1381 = vunpack.c.l.b16 %v1306
    %v1382 = vunpack.c.h.b16 %v1306
    %v1383 = vunpack.c.l.b16 %v1307
    %v1384 = vunpack.c.h.b16 %v1307
    %v1385 = vunpack.c.l.b16 %v1308
    %v1386 = vunpack.c.h.b16 %v1308
    %v1387 = vunpack.c.l.b16 %v1309
    %v1388 = vunpack.c.h.b16 %v1309
    %v1389 = vunpack.c.l.b16 %v1310
    %v1390 = vunpack.c.h.b16 %v1310
    %v1391 = vunpack.c.l.b16 %v1311
    %v1392 = vunpack.c.h.b16 %v1311
    %v1393 = vunpack.c.l.b16 %v1312
    %v1394 = vunpack.c.h.b16 %v1312
    %v1395 = vunpack.c.l.b16 %v1313
    %v1396 = vunpack.c.h.b16 %v1313
    %v1397 = vunpack.c.l.b16 %v1314
    %v1398 = vunpack.c.h.b16 %v1314
    %v1399 = vunpack.c.l.b16 %v1315
    %v1400 = vunpack.c.h.b16 %v1315
    %v1401 = vunpack.c.l.b16 %v1316
    %v1402 = vunpack.c.h.b16 %v1316
    %v1403 = vunpack.c.l.b16 %v1317
    %v1404 = vunpack.c.h.b16 %v1317
    %v1405 = vunpack.c.l.b16 %v1318
    %v1406 = vunpack.c.h.b16 %v1318
    %v1407 = vunpack.c.l.b16 %v1319
    %v1408 = vunpack.c.h.b16 %v1319
    %v1409 = vunpack.c.l.b16 %v1320
    %v1410 = vunpack.c.h.b16 %v1320
    %v1411 = vunpack.c.l.b16 %v1321
    %v1412 = vunpack.c.h.b16 %v1321
    %v1413 = vunpack.c.l.b16 %v1322
    %v1414 = vunpack.c.h.b16 %v1322
    %v1415 = vunpack.c.l.b16 %v1323
    %v1416 = vunpack.c.h.b16 %v1323
    %v1417 = vunpack.c.l.b16 %v1324
    %v1418 = vunpack.c.h.b16 %v1324
    %v1419 = vunpack.c.l.b16 %v1325
    %v1420 = vunpack.c.h.b16 %v1325
    %v1421 = vunpack.c.l.b16 %v1326
    %v1422 = vunpack.c.h.b16 %v1326
    %v1423 = vpack.c.b16 %v1363, %v1359
    %v1424 = vpack.c.b16 %v1364, %v1360
    %v1425 = vpack.c.b16 %v1365, %v1361
    %v1426 = vpack.c.b16 %v1366, %v1362
    %v1427 = vpack.c.b16 %v1371, %v1367
    %v1428 = vpack.c.b16 %v1372, %v1368
    %v1429 = vpack.c.b16 %v1373, %v1369
    %v1430 = vpack.c.b16 %v1374, %v1370
    %v1431 = vpack.c.b16 %v1379, %v1375
    %v1432 = vpack.c.b16 %v1380, %v1376
    %v1433 = vpack.c.b16 %v1381, %v1377
    %v1434 = vpack.c.b16 %v1382, %v1378
    %v1435 = vpack.c.b16 %v1387, %v1383
    %v1436 = vpack.c.b16 %v1388, %v1384
    %v1437 = vpack.c.b16 %v1389, %v1385
    %v1438 = vpack.c.b16 %v1390, %v1386
    %v1439 = vpack.c.b16 %v1395, %v1391
    %v1440 = vpack.c.b16 %v1396, %v1392
    %v1441 = vpack.c.b16 %v1397, %v1393
    %v1442 = vpack.c.b16 %v1398, %v1394
    %v1443 = vpack.c.b16 %v1403, %v1399
    %v1444 = vpack.c.b16 %v1404, %v1400
    %v1445 = vpack.c.b16 %v1405, %v1401
    %v1446 = vpack.c.b16 %v1406, %v1402
    %v1447 = vpack.c.b16 %v1411, %v1407
    %v1448 = vpack.c.b16 %v1412, %v1408
    %v1449 = vpack.c.b16 %v1413, %v1409
    %v1450 = vpack.c.b16 %v1414, %v1410
    %v1451 = vpack.c.b16 %v1419, %v1415
    %v1452 = vpack.c.b16 %v1420, %v1416
    %v1453 = vpack.c.b16 %v1421, %v1417
    %v1454 = vpack.c.b16 %v1422, %v1418
    %1487 = vmatprep.subr.bf16.mxu0 %v1424
    %1488 = vmatpush1.bf16.msra.mxu0 %v1423
    %1489 = vmatprep.subr.bf16.mxu0 %v1428
    %1490 = vmatpush1.bf16.msra.mxu0 %v1427
    %1491 = vmatprep.subr.bf16.mxu0 %v1432
    %1492 = vmatpush1.bf16.msra.mxu0 %v1431
    %1493 = vmatprep.subr.bf16.mxu0 %v1436
    %1494 = vmatpush1.bf16.msra.mxu0 %v1435
    %1495 = vmatprep.subr.bf16.mxu0 %v1440
    %1496 = vmatpush1.bf16.msra.mxu0 %v1439
    %1497 = vmatprep.subr.bf16.mxu0 %v1444
    %1498 = vmatpush1.bf16.msra.mxu0 %v1443
    %1499 = vmatprep.subr.bf16.mxu0 %v1448
    %1500 = vmatpush1.bf16.msra.mxu0 %v1447
    %1501 = vmatprep.subr.bf16.mxu0 %v1452
    %1502 = vmatpush1.bf16.msra.mxu0 %v1451
    %1503 = vmatprep.subr.bf16.mxu0 0
    %1504 = vmatpush1.bf16.msra.mxu0 0
    %1505 = vmatprep.subr.bf16.mxu0 0
    %1506 = vmatpush1.bf16.msra.mxu0 0
    %1507 = vmatprep.subr.bf16.mxu0 0
    %1508 = vmatpush1.bf16.msra.mxu0 0
    %1509 = vmatprep.subr.bf16.mxu0 0
    %1510 = vmatpush1.bf16.msra.mxu0 0
    %1511 = vmatprep.subr.bf16.mxu0 0
    %1512 = vmatpush1.bf16.msra.mxu0 0
    %1513 = vmatprep.subr.bf16.mxu0 0
    %1514 = vmatpush1.bf16.msra.mxu0 0
    %1515 = vmatprep.subr.bf16.mxu0 0
    %1516 = vmatpush1.bf16.msra.mxu0 0
    %1517 = vmatprep.subr.bf16.mxu0 0
    %1518 = vmatpush1.bf16.msra.mxu0 0
    %1519 = vmatprep.mubr.bf16.mxu0 0
    %1520 = vmatmul.mubr.bf16.gmra.mrb[0].mxu0 %v1294
    %v1521 = vpop.f32.mrb[0].mxu0
    %v1522 = vadd.f32 0.0, %v1521
    %v1523 = vpop.f32.mrb[0].mxu0
    %v1524 = vadd.f32 0.0, %v1523
    %v1525 = vpop.f32.mrb[0].mxu0
    %v1526 = vpop.f32.mrb[0].mxu0
    %1527 = vdwg.mxu0
    %1528 = vmatprep.subr.bf16.mxu0 %v1426
    %1529 = vmatpush1.bf16.msra.mxu0 %v1425
    %1530 = vmatprep.subr.bf16.mxu0 %v1430
    %1531 = vmatpush1.bf16.msra.mxu0 %v1429
    %1532 = vmatprep.subr.bf16.mxu0 %v1434
    %1533 = vmatpush1.bf16.msra.mxu0 %v1433
    %1534 = vmatprep.subr.bf16.mxu0 %v1438
    %1535 = vmatpush1.bf16.msra.mxu0 %v1437
    %1536 = vmatprep.subr.bf16.mxu0 %v1442
    %1537 = vmatpush1.bf16.msra.mxu0 %v1441
    %1538 = vmatprep.subr.bf16.mxu0 %v1446
    %1539 = vmatpush1.bf16.msra.mxu0 %v1445
    %1540 = vmatprep.subr.bf16.mxu0 %v1450
    %1541 = vmatpush1.bf16.msra.mxu0 %v1449
    %1542 = vmatprep.subr.bf16.mxu0 %v1454
    %1543 = vmatpush1.bf16.msra.mxu0 %v1453
    %1544 = vmatprep.subr.bf16.mxu0 0
    %1545 = vmatpush1.bf16.msra.mxu0 0
    %1546 = vmatprep.subr.bf16.mxu0 0
    %1547 = vmatpush1.bf16.msra.mxu0 0
    %1548 = vmatprep.subr.bf16.mxu0 0
    %1549 = vmatpush1.bf16.msra.mxu0 0
    %1550 = vmatprep.subr.bf16.mxu0 0
    %1551 = vmatpush1.bf16.msra.mxu0 0
    %1552 = vmatprep.subr.bf16.mxu0 0
    %1553 = vmatpush1.bf16.msra.mxu0 0
    %1554 = vmatprep.subr.bf16.mxu0 0
    %1555 = vmatpush1.bf16.msra.mxu0 0
    %1556 = vmatprep.subr.bf16.mxu0 0
    %1557 = vmatpush1.bf16.msra.mxu0 0
    %1558 = vmatprep.subr.bf16.mxu0 0
    %1559 = vmatpush1.bf16.msra.mxu0 0
    %1560 = vmatprep.mubr.bf16.mxu0 0
    %1561 = vmatmul.mubr.bf16.gmra.mrb[0].mxu0 %v1294
    %v1562 = vpop.f32.mrb[0].mxu0
    %v1563 = vadd.f32 0.0, %v1562
    %v1564 = vpop.f32.mrb[0].mxu0
    %v1565 = vadd.f32 0.0, %v1564
    %v1566 = vpop.f32.mrb[0].mxu0
    %v1567 = vpop.f32.mrb[0].mxu0
    %1568 = vdwg.mxu0
    %v1569 = vadd.f32 %v1290, %v1522
    %v1570 = vadd.f32 %v1291, %v1524
    %v1571 = vadd.f32 %v1292, %v1563
    %v1572 = vadd.f32 %v1293, %v1565
    %v1573 = vxor.u32 %v1569, 2147483648
    %v1574 = vmul.f32 %v1573, 1.442695
    %v1575 = vpow.pop %v1574
    %v1576 = vadd.f32 %v1575, 1.0
    %v1577 = vrcp.pop %v1576
    %v1578 = vmul.f32 1.0, %v1577
    %v1579 = vxor.u32 %v1570, 2147483648
    %v1580 = vmul.f32 %v1579, 1.442695
    %v1581 = vpow.pop %v1580
    %v1582 = vadd.f32 %v1581, 1.0
    %v1583 = vrcp.pop %v1582
    %v1584 = vmul.f32 1.0, %v1583
    %v1585 = vxor.u32 %v1571, 2147483648
    %v1586 = vmul.f32 %v1585, 1.442695
    %v1587 = vpow.pop %v1586
    %v1588 = vadd.f32 %v1587, 1.0
    %v1589 = vrcp.pop %v1588
    %v1590 = vmul.f32 1.0, %v1589
    %v1591 = vtanh.pop %v1572
    %v1592 = vmul.f32 %v1578, %v1282
    %v1593 = vmul.f32 %v1584, %v1591
    %v1594 = vadd.f32 %v1592, %v1593
    %v1595 = vtanh.pop %v1594
    %v1596 = vmul.f32 %v1590, %v1595
    %s1597 = scalar_lea.vmem [#allocation3], 16
    %1598 = vst [vmem:[%s1597] sm:$0xff] %v1596
    %s1599 = smul.u32 3, 4
    %s1600 = smul.addr %s1599, 8
    %s1601 = scalar_lea.vmem [#allocation2], %s1600
    %v1602 = vld [vmem:[%s1601] sm:$0xff]
    %v1603 = vld [vmem:[%s1601 + $0x8] sm:$0xff]
    %v1604 = vld [vmem:[%s1601 + $0x10] sm:$0xff]
    %v1605 = vld [vmem:[%s1601 + $0x18] sm:$0xff]
    %v1606 = vpack.c.bf16 %v1596, %v1596
    %v1607 = vld [vmem:[%s5] sm:$0xff]
    %v1608 = vld [vmem:[%s5 + $0x8] sm:$0xff]
    %v1609 = vld [vmem:[%s5 + $0x10] sm:$0xff]
    %v1610 = vld [vmem:[%s5 + $0x18] sm:$0xff]
    %v1611 = vld [vmem:[%s5 + $0x20] sm:$0xff]
    %v1612 = vld [vmem:[%s5 + $0x28] sm:$0xff]
    %v1613 = vld [vmem:[%s5 + $0x30] sm:$0xff]
    %v1614 = vld [vmem:[%s5 + $0x38] sm:$0xff]
    %v1615 = vld [vmem:[%s5 + $0x40] sm:$0xff]
    %v1616 = vld [vmem:[%s5 + $0x48] sm:$0xff]
    %v1617 = vld [vmem:[%s5 + $0x50] sm:$0xff]
    %v1618 = vld [vmem:[%s5 + $0x58] sm:$0xff]
    %v1619 = vld [vmem:[%s5 + $0x60] sm:$0xff]
    %v1620 = vld [vmem:[%s5 + $0x68] sm:$0xff]
    %v1621 = vld [vmem:[%s5 + $0x70] sm:$0xff]
    %v1622 = vld [vmem:[%s5 + $0x78] sm:$0xff]
    %v1623 = vld [vmem:[%s5 + $0x80] sm:$0xff]
    %v1624 = vld [vmem:[%s5 + $0x88] sm:$0xff]
    %v1625 = vld [vmem:[%s5 + $0x90] sm:$0xff]
    %v1626 = vld [vmem:[%s5 + $0x98] sm:$0xff]
    %v1627 = vld [vmem:[%s5 + $0xa0] sm:$0xff]
    %v1628 = vld [vmem:[%s5 + $0xa8] sm:$0xff]
    %v1629 = vld [vmem:[%s5 + $0xb0] sm:$0xff]
    %v1630 = vld [vmem:[%s5 + $0xb8] sm:$0xff]
    %v1631 = vld [vmem:[%s5 + $0xc0] sm:$0xff]
    %v1632 = vld [vmem:[%s5 + $0xc8] sm:$0xff]
    %v1633 = vld [vmem:[%s5 + $0xd0] sm:$0xff]
    %v1634 = vld [vmem:[%s5 + $0xd8] sm:$0xff]
    %v1635 = vld [vmem:[%s5 + $0xe0] sm:$0xff]
    %v1636 = vld [vmem:[%s5 + $0xe8] sm:$0xff]
    %v1637 = vld [vmem:[%s5 + $0xf0] sm:$0xff]
    %v1638 = vld [vmem:[%s5 + $0xf8] sm:$0xff]
    %v1671 = vunpack.c.l.b16 %v1607
    %v1672 = vunpack.c.h.b16 %v1607
    %v1673 = vunpack.c.l.b16 %v1608
    %v1674 = vunpack.c.h.b16 %v1608
    %v1675 = vunpack.c.l.b16 %v1609
    %v1676 = vunpack.c.h.b16 %v1609
    %v1677 = vunpack.c.l.b16 %v1610
    %v1678 = vunpack.c.h.b16 %v1610
    %v1679 = vunpack.c.l.b16 %v1611
    %v1680 = vunpack.c.h.b16 %v1611
    %v1681 = vunpack.c.l.b16 %v1612
    %v1682 = vunpack.c.h.b16 %v1612
    %v1683 = vunpack.c.l.b16 %v1613
    %v1684 = vunpack.c.h.b16 %v1613
    %v1685 = vunpack.c.l.b16 %v1614
    %v1686 = vunpack.c.h.b16 %v1614
    %v1687 = vunpack.c.l.b16 %v1615
    %v1688 = vunpack.c.h.b16 %v1615
    %v1689 = vunpack.c.l.b16 %v1616
    %v1690 = vunpack.c.h.b16 %v1616
    %v1691 = vunpack.c.l.b16 %v1617
    %v1692 = vunpack.c.h.b16 %v1617
    %v1693 = vunpack.c.l.b16 %v1618
    %v1694 = vunpack.c.h.b16 %v1618
    %v1695 = vunpack.c.l.b16 %v1619
    %v1696 = vunpack.c.h.b16 %v1619
    %v1697 = vunpack.c.l.b16 %v1620
    %v1698 = vunpack.c.h.b16 %v1620
    %v1699 = vunpack.c.l.b16 %v1621
    %v1700 = vunpack.c.h.b16 %v1621
    %v1701 = vunpack.c.l.b16 %v1622
    %v1702 = vunpack.c.h.b16 %v1622
    %v1703 = vunpack.c.l.b16 %v1623
    %v1704 = vunpack.c.h.b16 %v1623
    %v1705 = vunpack.c.l.b16 %v1624
    %v1706 = vunpack.c.h.b16 %v1624
    %v1707 = vunpack.c.l.b16 %v1625
    %v1708 = vunpack.c.h.b16 %v1625
    %v1709 = vunpack.c.l.b16 %v1626
    %v1710 = vunpack.c.h.b16 %v1626
    %v1711 = vunpack.c.l.b16 %v1627
    %v1712 = vunpack.c.h.b16 %v1627
    %v1713 = vunpack.c.l.b16 %v1628
    %v1714 = vunpack.c.h.b16 %v1628
    %v1715 = vunpack.c.l.b16 %v1629
    %v1716 = vunpack.c.h.b16 %v1629
    %v1717 = vunpack.c.l.b16 %v1630
    %v1718 = vunpack.c.h.b16 %v1630
    %v1719 = vunpack.c.l.b16 %v1631
    %v1720 = vunpack.c.h.b16 %v1631
    %v1721 = vunpack.c.l.b16 %v1632
    %v1722 = vunpack.c.h.b16 %v1632
    %v1723 = vunpack.c.l.b16 %v1633
    %v1724 = vunpack.c.h.b16 %v1633
    %v1725 = vunpack.c.l.b16 %v1634
    %v1726 = vunpack.c.h.b16 %v1634
    %v1727 = vunpack.c.l.b16 %v1635
    %v1728 = vunpack.c.h.b16 %v1635
    %v1729 = vunpack.c.l.b16 %v1636
    %v1730 = vunpack.c.h.b16 %v1636
    %v1731 = vunpack.c.l.b16 %v1637
    %v1732 = vunpack.c.h.b16 %v1637
    %v1733 = vunpack.c.l.b16 %v1638
    %v1734 = vunpack.c.h.b16 %v1638
    %v1735 = vpack.c.b16 %v1675, %v1671
    %v1736 = vpack.c.b16 %v1676, %v1672
    %v1737 = vpack.c.b16 %v1677, %v1673
    %v1738 = vpack.c.b16 %v1678, %v1674
    %v1739 = vpack.c.b16 %v1683, %v1679
    %v1740 = vpack.c.b16 %v1684, %v1680
    %v1741 = vpack.c.b16 %v1685, %v1681
    %v1742 = vpack.c.b16 %v1686, %v1682
    %v1743 = vpack.c.b16 %v1691, %v1687
    %v1744 = vpack.c.b16 %v1692, %v1688
    %v1745 = vpack.c.b16 %v1693, %v1689
    %v1746 = vpack.c.b16 %v1694, %v1690
    %v1747 = vpack.c.b16 %v1699, %v1695
    %v1748 = vpack.c.b16 %v1700, %v1696
    %v1749 = vpack.c.b16 %v1701, %v1697
    %v1750 = vpack.c.b16 %v1702, %v1698
    %v1751 = vpack.c.b16 %v1707, %v1703
    %v1752 = vpack.c.b16 %v1708, %v1704
    %v1753 = vpack.c.b16 %v1709, %v1705
    %v1754 = vpack.c.b16 %v1710, %v1706
    %v1755 = vpack.c.b16 %v1715, %v1711
    %v1756 = vpack.c.b16 %v1716, %v1712
    %v1757 = vpack.c.b16 %v1717, %v1713
    %v1758 = vpack.c.b16 %v1718, %v1714
    %v1759 = vpack.c.b16 %v1723, %v1719
    %v1760 = vpack.c.b16 %v1724, %v1720
    %v1761 = vpack.c.b16 %v1725, %v1721
    %v1762 = vpack.c.b16 %v1726, %v1722
    %v1763 = vpack.c.b16 %v1731, %v1727
    %v1764 = vpack.c.b16 %v1732, %v1728
    %v1765 = vpack.c.b16 %v1733, %v1729
    %v1766 = vpack.c.b16 %v1734, %v1730
    %1799 = vmatprep.subr.bf16.mxu0 %v1736
    %1800 = vmatpush1.bf16.msra.mxu0 %v1735
    %1801 = vmatprep.subr.bf16.mxu0 %v1740
    %1802 = vmatpush1.bf16.msra.mxu0 %v1739
    %1803 = vmatprep.subr.bf16.mxu0 %v1744
    %1804 = vmatpush1.bf16.msra.mxu0 %v1743
    %1805 = vmatprep.subr.bf16.mxu0 %v1748
    %1806 = vmatpush1.bf16.msra.mxu0 %v1747
    %1807 = vmatprep.subr.bf16.mxu0 %v1752
    %1808 = vmatpush1.bf16.msra.mxu0 %v1751
    %1809 = vmatprep.subr.bf16.mxu0 %v1756
    %1810 = vmatpush1.bf16.msra.mxu0 %v1755
    %1811 = vmatprep.subr.bf16.mxu0 %v1760
    %1812 = vmatpush1.bf16.msra.mxu0 %v1759
    %1813 = vmatprep.subr.bf16.mxu0 %v1764
    %1814 = vmatpush1.bf16.msra.mxu0 %v1763
    %1815 = vmatprep.subr.bf16.mxu0 0
    %1816 = vmatpush1.bf16.msra.mxu0 0
    %1817 = vmatprep.subr.bf16.mxu0 0
    %1818 = vmatpush1.bf16.msra.mxu0 0
    %1819 = vmatprep.subr.bf16.mxu0 0
    %1820 = vmatpush1.bf16.msra.mxu0 0
    %1821 = vmatprep.subr.bf16.mxu0 0
    %1822 = vmatpush1.bf16.msra.mxu0 0
    %1823 = vmatprep.subr.bf16.mxu0 0
    %1824 = vmatpush1.bf16.msra.mxu0 0
    %1825 = vmatprep.subr.bf16.mxu0 0
    %1826 = vmatpush1.bf16.msra.mxu0 0
    %1827 = vmatprep.subr.bf16.mxu0 0
    %1828 = vmatpush1.bf16.msra.mxu0 0
    %1829 = vmatprep.subr.bf16.mxu0 0
    %1830 = vmatpush1.bf16.msra.mxu0 0
    %1831 = vmatprep.mubr.bf16.mxu0 0
    %1832 = vmatmul.mubr.bf16.gmra.mrb[0].mxu0 %v1606
    %v1833 = vpop.f32.mrb[0].mxu0
    %v1834 = vadd.f32 0.0, %v1833
    %v1835 = vpop.f32.mrb[0].mxu0
    %v1836 = vadd.f32 0.0, %v1835
    %v1837 = vpop.f32.mrb[0].mxu0
    %v1838 = vpop.f32.mrb[0].mxu0
    %1839 = vdwg.mxu0
    %1840 = vmatprep.subr.bf16.mxu0 %v1738
    %1841 = vmatpush1.bf16.msra.mxu0 %v1737
    %1842 = vmatprep.subr.bf16.mxu0 %v1742
    %1843 = vmatpush1.bf16.msra.mxu0 %v1741
    %1844 = vmatprep.subr.bf16.mxu0 %v1746
    %1845 = vmatpush1.bf16.msra.mxu0 %v1745
    %1846 = vmatprep.subr.bf16.mxu0 %v1750
    %1847 = vmatpush1.bf16.msra.mxu0 %v1749
    %1848 = vmatprep.subr.bf16.mxu0 %v1754
    %1849 = vmatpush1.bf16.msra.mxu0 %v1753
    %1850 = vmatprep.subr.bf16.mxu0 %v1758
    %1851 = vmatpush1.bf16.msra.mxu0 %v1757
    %1852 = vmatprep.subr.bf16.mxu0 %v1762
    %1853 = vmatpush1.bf16.msra.mxu0 %v1761
    %1854 = vmatprep.subr.bf16.mxu0 %v1766
    %1855 = vmatpush1.bf16.msra.mxu0 %v1765
    %1856 = vmatprep.subr.bf16.mxu0 0
    %1857 = vmatpush1.bf16.msra.mxu0 0
    %1858 = vmatprep.subr.bf16.mxu0 0
    %1859 = vmatpush1.bf16.msra.mxu0 0
    %1860 = vmatprep.subr.bf16.mxu0 0
    %1861 = vmatpush1.bf16.msra.mxu0 0
    %1862 = vmatprep.subr.bf16.mxu0 0
    %1863 = vmatpush1.bf16.msra.mxu0 0
    %1864 = vmatprep.subr.bf16.mxu0 0
    %1865 = vmatpush1.bf16.msra.mxu0 0
    %1866 = vmatprep.subr.bf16.mxu0 0
    %1867 = vmatpush1.bf16.msra.mxu0 0
    %1868 = vmatprep.subr.bf16.mxu0 0
    %1869 = vmatpush1.bf16.msra.mxu0 0
    %1870 = vmatprep.subr.bf16.mxu0 0
    %1871 = vmatpush1.bf16.msra.mxu0 0
    %1872 = vmatprep.mubr.bf16.mxu0 0
    %1873 = vmatmul.mubr.bf16.gmra.mrb[0].mxu0 %v1606
    %v1874 = vpop.f32.mrb[0].mxu0
    %v1875 = vadd.f32 0.0, %v1874
    %v1876 = vpop.f32.mrb[0].mxu0
    %v1877 = vadd.f32 0.0, %v1876
    %v1878 = vpop.f32.mrb[0].mxu0
    %v1879 = vpop.f32.mrb[0].mxu0
    %1880 = vdwg.mxu0
    %v1881 = vadd.f32 %v1602, %v1834
    %v1882 = vadd.f32 %v1603, %v1836
    %v1883 = vadd.f32 %v1604, %v1875
    %v1884 = vadd.f32 %v1605, %v1877
    %v1885 = vxor.u32 %v1881, 2147483648
    %v1886 = vmul.f32 %v1885, 1.442695
    %v1887 = vpow.pop %v1886
    %v1888 = vadd.f32 %v1887, 1.0
    %v1889 = vrcp.pop %v1888
    %v1890 = vmul.f32 1.0, %v1889
    %v1891 = vxor.u32 %v1882, 2147483648
    %v1892 = vmul.f32 %v1891, 1.442695
    %v1893 = vpow.pop %v1892
    %v1894 = vadd.f32 %v1893, 1.0
    %v1895 = vrcp.pop %v1894
    %v1896 = vmul.f32 1.0, %v1895
    %v1897 = vxor.u32 %v1883, 2147483648
    %v1898 = vmul.f32 %v1897, 1.442695
    %v1899 = vpow.pop %v1898
    %v1900 = vadd.f32 %v1899, 1.0
    %v1901 = vrcp.pop %v1900
    %v1902 = vmul.f32 1.0, %v1901
    %v1903 = vtanh.pop %v1884
    %v1904 = vmul.f32 %v1890, %v1594
    %v1905 = vmul.f32 %v1896, %v1903
    %v1906 = vadd.f32 %v1904, %v1905
    %v1907 = vtanh.pop %v1906
    %v1908 = vmul.f32 %v1902, %v1907
    %s1909 = scalar_lea.vmem [#allocation3], 24
    %1910 = vst [vmem:[%s1909] sm:$0xff] %v1908
    %s1911 = smul.u32 4, 4
    %s1912 = smul.addr %s1911, 8
    %s1913 = scalar_lea.vmem [#allocation2], %s1912
    %v1914 = vld [vmem:[%s1913] sm:$0xff]
    %v1915 = vld [vmem:[%s1913 + $0x8] sm:$0xff]
    %v1916 = vld [vmem:[%s1913 + $0x10] sm:$0xff]
    %v1917 = vld [vmem:[%s1913 + $0x18] sm:$0xff]
    %v1918 = vpack.c.bf16 %v1908, %v1908
    %v1919 = vld [vmem:[%s5] sm:$0xff]
    %v1920 = vld [vmem:[%s5 + $0x8] sm:$0xff]
    %v1921 = vld [vmem:[%s5 + $0x10] sm:$0xff]
    %v1922 = vld [vmem:[%s5 + $0x18] sm:$0xff]
    %v1923 = vld [vmem:[%s5 + $0x20] sm:$0xff]
    %v1924 = vld [vmem:[%s5 + $0x28] sm:$0xff]
    %v1925 = vld [vmem:[%s5 + $0x30] sm:$0xff]
    %v1926 = vld [vmem:[%s5 + $0x38] sm:$0xff]
    %v1927 = vld [vmem:[%s5 + $0x40] sm:$0xff]
    %v1928 = vld [vmem:[%s5 + $0x48] sm:$0xff]
    %v1929 = vld [vmem:[%s5 + $0x50] sm:$0xff]
    %v1930 = vld [vmem:[%s5 + $0x58] sm:$0xff]
    %v1931 = vld [vmem:[%s5 + $0x60] sm:$0xff]
    %v1932 = vld [vmem:[%s5 + $0x68] sm:$0xff]
    %v1933 = vld [vmem:[%s5 + $0x70] sm:$0xff]
    %v1934 = vld [vmem:[%s5 + $0x78] sm:$0xff]
    %v1935 = vld [vmem:[%s5 + $0x80] sm:$0xff]
    %v1936 = vld [vmem:[%s5 + $0x88] sm:$0xff]
    %v1937 = vld [vmem:[%s5 + $0x90] sm:$0xff]
    %v1938 = vld [vmem:[%s5 + $0x98] sm:$0xff]
    %v1939 = vld [vmem:[%s5 + $0xa0] sm:$0xff]
    %v1940 = vld [vmem:[%s5 + $0xa8] sm:$0xff]
    %v1941 = vld [vmem:[%s5 + $0xb0] sm:$0xff]
    %v1942 = vld [vmem:[%s5 + $0xb8] sm:$0xff]
    %v1943 = vld [vmem:[%s5 + $0xc0] sm:$0xff]
    %v1944 = vld [vmem:[%s5 + $0xc8] sm:$0xff]
    %v1945 = vld [vmem:[%s5 + $0xd0] sm:$0xff]
    %v1946 = vld [vmem:[%s5 + $0xd8] sm:$0xff]
    %v1947 = vld [vmem:[%s5 + $0xe0] sm:$0xff]
    %v1948 = vld [vmem:[%s5 + $0xe8] sm:$0xff]
    %v1949 = vld [vmem:[%s5 + $0xf0] sm:$0xff]
    %v1950 = vld [vmem:[%s5 + $0xf8] sm:$0xff]
    %v1983 = vunpack.c.l.b16 %v1919
    %v1984 = vunpack.c.h.b16 %v1919
    %v1985 = vunpack.c.l.b16 %v1920
    %v1986 = vunpack.c.h.b16 %v1920
    %v1987 = vunpack.c.l.b16 %v1921
    %v1988 = vunpack.c.h.b16 %v1921
    %v1989 = vunpack.c.l.b16 %v1922
    %v1990 = vunpack.c.h.b16 %v1922
    %v1991 = vunpack.c.l.b16 %v1923
    %v1992 = vunpack.c.h.b16 %v1923
    %v1993 = vunpack.c.l.b16 %v1924
    %v1994 = vunpack.c.h.b16 %v1924
    %v1995 = vunpack.c.l.b16 %v1925
    %v1996 = vunpack.c.h.b16 %v1925
    %v1997 = vunpack.c.l.b16 %v1926
    %v1998 = vunpack.c.h.b16 %v1926
    %v1999 = vunpack.c.l.b16 %v1927
    %v2000 = vunpack.c.h.b16 %v1927
    %v2001 = vunpack.c.l.b16 %v1928
    %v2002 = vunpack.c.h.b16 %v1928
    %v2003 = vunpack.c.l.b16 %v1929
    %v2004 = vunpack.c.h.b16 %v1929
    %v2005 = vunpack.c.l.b16 %v1930
    %v2006 = vunpack.c.h.b16 %v1930
    %v2007 = vunpack.c.l.b16 %v1931
    %v2008 = vunpack.c.h.b16 %v1931
    %v2009 = vunpack.c.l.b16 %v1932
    %v2010 = vunpack.c.h.b16 %v1932
    %v2011 = vunpack.c.l.b16 %v1933
    %v2012 = vunpack.c.h.b16 %v1933
    %v2013 = vunpack.c.l.b16 %v1934
    %v2014 = vunpack.c.h.b16 %v1934
    %v2015 = vunpack.c.l.b16 %v1935
    %v2016 = vunpack.c.h.b16 %v1935
    %v2017 = vunpack.c.l.b16 %v1936
    %v2018 = vunpack.c.h.b16 %v1936
    %v2019 = vunpack.c.l.b16 %v1937
    %v2020 = vunpack.c.h.b16 %v1937
    %v2021 = vunpack.c.l.b16 %v1938
    %v2022 = vunpack.c.h.b16 %v1938
    %v2023 = vunpack.c.l.b16 %v1939
    %v2024 = vunpack.c.h.b16 %v1939
    %v2025 = vunpack.c.l.b16 %v1940
    %v2026 = vunpack.c.h.b16 %v1940
    %v2027 = vunpack.c.l.b16 %v1941
    %v2028 = vunpack.c.h.b16 %v1941
    %v2029 = vunpack.c.l.b16 %v1942
    %v2030 = vunpack.c.h.b16 %v1942
    %v2031 = vunpack.c.l.b16 %v1943
    %v2032 = vunpack.c.h.b16 %v1943
    %v2033 = vunpack.c.l.b16 %v1944
    %v2034 = vunpack.c.h.b16 %v1944
    %v2035 = vunpack.c.l.b16 %v1945
    %v2036 = vunpack.c.h.b16 %v1945
    %v2037 = vunpack.c.l.b16 %v1946
    %v2038 = vunpack.c.h.b16 %v1946
    %v2039 = vunpack.c.l.b16 %v1947
    %v2040 = vunpack.c.h.b16 %v1947
    %v2041 = vunpack.c.l.b16 %v1948
    %v2042 = vunpack.c.h.b16 %v1948
    %v2043 = vunpack.c.l.b16 %v1949
    %v2044 = vunpack.c.h.b16 %v1949
    %v2045 = vunpack.c.l.b16 %v1950
    %v2046 = vunpack.c.h.b16 %v1950
    %v2047 = vpack.c.b16 %v1987, %v1983
    %v2048 = vpack.c.b16 %v1988, %v1984
    %v2049 = vpack.c.b16 %v1989, %v1985
    %v2050 = vpack.c.b16 %v1990, %v1986
    %v2051 = vpack.c.b16 %v1995, %v1991
    %v2052 = vpack.c.b16 %v1996, %v1992
    %v2053 = vpack.c.b16 %v1997, %v1993
    %v2054 = vpack.c.b16 %v1998, %v1994
    %v2055 = vpack.c.b16 %v2003, %v1999
    %v2056 = vpack.c.b16 %v2004, %v2000
    %v2057 = vpack.c.b16 %v2005, %v2001
    %v2058 = vpack.c.b16 %v2006, %v2002
    %v2059 = vpack.c.b16 %v2011, %v2007
    %v2060 = vpack.c.b16 %v2012, %v2008
    %v2061 = vpack.c.b16 %v2013, %v2009
    %v2062 = vpack.c.b16 %v2014, %v2010
    %v2063 = vpack.c.b16 %v2019, %v2015
    %v2064 = vpack.c.b16 %v2020, %v2016
    %v2065 = vpack.c.b16 %v2021, %v2017
    %v2066 = vpack.c.b16 %v2022, %v2018
    %v2067 = vpack.c.b16 %v2027, %v2023
    %v2068 = vpack.c.b16 %v2028, %v2024
    %v2069 = vpack.c.b16 %v2029, %v2025
    %v2070 = vpack.c.b16 %v2030, %v2026
    %v2071 = vpack.c.b16 %v2035, %v2031
    %v2072 = vpack.c.b16 %v2036, %v2032
    %v2073 = vpack.c.b16 %v2037, %v2033
    %v2074 = vpack.c.b16 %v2038, %v2034
    %v2075 = vpack.c.b16 %v2043, %v2039
    %v2076 = vpack.c.b16 %v2044, %v2040
    %v2077 = vpack.c.b16 %v2045, %v2041
    %v2078 = vpack.c.b16 %v2046, %v2042
    %2111 = vmatprep.subr.bf16.mxu0 %v2048
    %2112 = vmatpush1.bf16.msra.mxu0 %v2047
    %2113 = vmatprep.subr.bf16.mxu0 %v2052
    %2114 = vmatpush1.bf16.msra.mxu0 %v2051
    %2115 = vmatprep.subr.bf16.mxu0 %v2056
    %2116 = vmatpush1.bf16.msra.mxu0 %v2055
    %2117 = vmatprep.subr.bf16.mxu0 %v2060
    %2118 = vmatpush1.bf16.msra.mxu0 %v2059
    %2119 = vmatprep.subr.bf16.mxu0 %v2064
    %2120 = vmatpush1.bf16.msra.mxu0 %v2063
    %2121 = vmatprep.subr.bf16.mxu0 %v2068
    %2122 = vmatpush1.bf16.msra.mxu0 %v2067
    %2123 = vmatprep.subr.bf16.mxu0 %v2072
    %2124 = vmatpush1.bf16.msra.mxu0 %v2071
    %2125 = vmatprep.subr.bf16.mxu0 %v2076
    %2126 = vmatpush1.bf16.msra.mxu0 %v2075
    %2127 = vmatprep.subr.bf16.mxu0 0
    %2128 = vmatpush1.bf16.msra.mxu0 0
    %2129 = vmatprep.subr.bf16.mxu0 0
    %2130 = vmatpush1.bf16.msra.mxu0 0
    %2131 = vmatprep.subr.bf16.mxu0 0
    %2132 = vmatpush1.bf16.msra.mxu0 0
    %2133 = vmatprep.subr.bf16.mxu0 0
    %2134 = vmatpush1.bf16.msra.mxu0 0
    %2135 = vmatprep.subr.bf16.mxu0 0
    %2136 = vmatpush1.bf16.msra.mxu0 0
    %2137 = vmatprep.subr.bf16.mxu0 0
    %2138 = vmatpush1.bf16.msra.mxu0 0
    %2139 = vmatprep.subr.bf16.mxu0 0
    %2140 = vmatpush1.bf16.msra.mxu0 0
    %2141 = vmatprep.subr.bf16.mxu0 0
    %2142 = vmatpush1.bf16.msra.mxu0 0
    %2143 = vmatprep.mubr.bf16.mxu0 0
    %2144 = vmatmul.mubr.bf16.gmra.mrb[0].mxu0 %v1918
    %v2145 = vpop.f32.mrb[0].mxu0
    %v2146 = vadd.f32 0.0, %v2145
    %v2147 = vpop.f32.mrb[0].mxu0
    %v2148 = vadd.f32 0.0, %v2147
    %v2149 = vpop.f32.mrb[0].mxu0
    %v2150 = vpop.f32.mrb[0].mxu0
    %2151 = vdwg.mxu0
    %2152 = vmatprep.subr.bf16.mxu0 %v2050
    %2153 = vmatpush1.bf16.msra.mxu0 %v2049
    %2154 = vmatprep.subr.bf16.mxu0 %v2054
    %2155 = vmatpush1.bf16.msra.mxu0 %v2053
    %2156 = vmatprep.subr.bf16.mxu0 %v2058
    %2157 = vmatpush1.bf16.msra.mxu0 %v2057
    %2158 = vmatprep.subr.bf16.mxu0 %v2062
    %2159 = vmatpush1.bf16.msra.mxu0 %v2061
    %2160 = vmatprep.subr.bf16.mxu0 %v2066
    %2161 = vmatpush1.bf16.msra.mxu0 %v2065
    %2162 = vmatprep.subr.bf16.mxu0 %v2070
    %2163 = vmatpush1.bf16.msra.mxu0 %v2069
    %2164 = vmatprep.subr.bf16.mxu0 %v2074
    %2165 = vmatpush1.bf16.msra.mxu0 %v2073
    %2166 = vmatprep.subr.bf16.mxu0 %v2078
    %2167 = vmatpush1.bf16.msra.mxu0 %v2077
    %2168 = vmatprep.subr.bf16.mxu0 0
    %2169 = vmatpush1.bf16.msra.mxu0 0
    %2170 = vmatprep.subr.bf16.mxu0 0
    %2171 = vmatpush1.bf16.msra.mxu0 0
    %2172 = vmatprep.subr.bf16.mxu0 0
    %2173 = vmatpush1.bf16.msra.mxu0 0
    %2174 = vmatprep.subr.bf16.mxu0 0
    %2175 = vmatpush1.bf16.msra.mxu0 0
    %2176 = vmatprep.subr.bf16.mxu0 0
    %2177 = vmatpush1.bf16.msra.mxu0 0
    %2178 = vmatprep.subr.bf16.mxu0 0
    %2179 = vmatpush1.bf16.msra.mxu0 0
    %2180 = vmatprep.subr.bf16.mxu0 0
    %2181 = vmatpush1.bf16.msra.mxu0 0
    %2182 = vmatprep.subr.bf16.mxu0 0
    %2183 = vmatpush1.bf16.msra.mxu0 0
    %2184 = vmatprep.mubr.bf16.mxu0 0
    %2185 = vmatmul.mubr.bf16.gmra.mrb[0].mxu0 %v1918
    %v2186 = vpop.f32.mrb[0].mxu0
    %v2187 = vadd.f32 0.0, %v2186
    %v2188 = vpop.f32.mrb[0].mxu0
    %v2189 = vadd.f32 0.0, %v2188
    %v2190 = vpop.f32.mrb[0].mxu0
    %v2191 = vpop.f32.mrb[0].mxu0
    %2192 = vdwg.mxu0
    %v2193 = vadd.f32 %v1914, %v2146
    %v2194 = vadd.f32 %v1915, %v2148
    %v2195 = vadd.f32 %v1916, %v2187
    %v2196 = vadd.f32 %v1917, %v2189
    %v2197 = vxor.u32 %v2193, 2147483648
    %v2198 = vmul.f32 %v2197, 1.442695
    %v2199 = vpow.pop %v2198
    %v2200 = vadd.f32 %v2199, 1.0
    %v2201 = vrcp.pop %v2200
    %v2202 = vmul.f32 1.0, %v2201
    %v2203 = vxor.u32 %v2194, 2147483648
    %v2204 = vmul.f32 %v2203, 1.442695
    %v2205 = vpow.pop %v2204
    %v2206 = vadd.f32 %v2205, 1.0
    %v2207 = vrcp.pop %v2206
    %v2208 = vmul.f32 1.0, %v2207
    %v2209 = vxor.u32 %v2195, 2147483648
    %v2210 = vmul.f32 %v2209, 1.442695
    %v2211 = vpow.pop %v2210
    %v2212 = vadd.f32 %v2211, 1.0
    %v2213 = vrcp.pop %v2212
    %v2214 = vmul.f32 1.0, %v2213
    %v2215 = vtanh.pop %v2196
    %v2216 = vmul.f32 %v2202, %v1906
    %v2217 = vmul.f32 %v2208, %v2215
    %v2218 = vadd.f32 %v2216, %v2217
    %v2219 = vtanh.pop %v2218
    %v2220 = vmul.f32 %v2214, %v2219
    %s2221 = scalar_lea.vmem [#allocation3], 32
    %2222 = vst [vmem:[%s2221] sm:$0xff] %v2220
    %s2223 = smul.u32 5, 4
    %s2224 = smul.addr %s2223, 8
    %s2225 = scalar_lea.vmem [#allocation2], %s2224
    %v2226 = vld [vmem:[%s2225] sm:$0xff]
    %v2227 = vld [vmem:[%s2225 + $0x8] sm:$0xff]
    %v2228 = vld [vmem:[%s2225 + $0x10] sm:$0xff]
    %v2229 = vld [vmem:[%s2225 + $0x18] sm:$0xff]
    %v2230 = vpack.c.bf16 %v2220, %v2220
    %v2231 = vld [vmem:[%s5] sm:$0xff]
    %v2232 = vld [vmem:[%s5 + $0x8] sm:$0xff]
    %v2233 = vld [vmem:[%s5 + $0x10] sm:$0xff]
    %v2234 = vld [vmem:[%s5 + $0x18] sm:$0xff]
    %v2235 = vld [vmem:[%s5 + $0x20] sm:$0xff]
    %v2236 = vld [vmem:[%s5 + $0x28] sm:$0xff]
    %v2237 = vld [vmem:[%s5 + $0x30] sm:$0xff]
    %v2238 = vld [vmem:[%s5 + $0x38] sm:$0xff]
    %v2239 = vld [vmem:[%s5 + $0x40] sm:$0xff]
    %v2240 = vld [vmem:[%s5 + $0x48] sm:$0xff]
    %v2241 = vld [vmem:[%s5 + $0x50] sm:$0xff]
    %v2242 = vld [vmem:[%s5 + $0x58] sm:$0xff]
    %v2243 = vld [vmem:[%s5 + $0x60] sm:$0xff]
    %v2244 = vld [vmem:[%s5 + $0x68] sm:$0xff]
    %v2245 = vld [vmem:[%s5 + $0x70] sm:$0xff]
    %v2246 = vld [vmem:[%s5 + $0x78] sm:$0xff]
    %v2247 = vld [vmem:[%s5 + $0x80] sm:$0xff]
    %v2248 = vld [vmem:[%s5 + $0x88] sm:$0xff]
    %v2249 = vld [vmem:[%s5 + $0x90] sm:$0xff]
    %v2250 = vld [vmem:[%s5 + $0x98] sm:$0xff]
    %v2251 = vld [vmem:[%s5 + $0xa0] sm:$0xff]
    %v2252 = vld [vmem:[%s5 + $0xa8] sm:$0xff]
    %v2253 = vld [vmem:[%s5 + $0xb0] sm:$0xff]
    %v2254 = vld [vmem:[%s5 + $0xb8] sm:$0xff]
    %v2255 = vld [vmem:[%s5 + $0xc0] sm:$0xff]
    %v2256 = vld [vmem:[%s5 + $0xc8] sm:$0xff]
    %v2257 = vld [vmem:[%s5 + $0xd0] sm:$0xff]
    %v2258 = vld [vmem:[%s5 + $0xd8] sm:$0xff]
    %v2259 = vld [vmem:[%s5 + $0xe0] sm:$0xff]
    %v2260 = vld [vmem:[%s5 + $0xe8] sm:$0xff]
    %v2261 = vld [vmem:[%s5 + $0xf0] sm:$0xff]
    %v2262 = vld [vmem:[%s5 + $0xf8] sm:$0xff]
    %v2295 = vunpack.c.l.b16 %v2231
    %v2296 = vunpack.c.h.b16 %v2231
    %v2297 = vunpack.c.l.b16 %v2232
    %v2298 = vunpack.c.h.b16 %v2232
    %v2299 = vunpack.c.l.b16 %v2233
    %v2300 = vunpack.c.h.b16 %v2233
    %v2301 = vunpack.c.l.b16 %v2234
    %v2302 = vunpack.c.h.b16 %v2234
    %v2303 = vunpack.c.l.b16 %v2235
    %v2304 = vunpack.c.h.b16 %v2235
    %v2305 = vunpack.c.l.b16 %v2236
    %v2306 = vunpack.c.h.b16 %v2236
    %v2307 = vunpack.c.l.b16 %v2237
    %v2308 = vunpack.c.h.b16 %v2237
    %v2309 = vunpack.c.l.b16 %v2238
    %v2310 = vunpack.c.h.b16 %v2238
    %v2311 = vunpack.c.l.b16 %v2239
    %v2312 = vunpack.c.h.b16 %v2239
    %v2313 = vunpack.c.l.b16 %v2240
    %v2314 = vunpack.c.h.b16 %v2240
    %v2315 = vunpack.c.l.b16 %v2241
    %v2316 = vunpack.c.h.b16 %v2241
    %v2317 = vunpack.c.l.b16 %v2242
    %v2318 = vunpack.c.h.b16 %v2242
    %v2319 = vunpack.c.l.b16 %v2243
    %v2320 = vunpack.c.h.b16 %v2243
    %v2321 = vunpack.c.l.b16 %v2244
    %v2322 = vunpack.c.h.b16 %v2244
    %v2323 = vunpack.c.l.b16 %v2245
    %v2324 = vunpack.c.h.b16 %v2245
    %v2325 = vunpack.c.l.b16 %v2246
    %v2326 = vunpack.c.h.b16 %v2246
    %v2327 = vunpack.c.l.b16 %v2247
    %v2328 = vunpack.c.h.b16 %v2247
    %v2329 = vunpack.c.l.b16 %v2248
    %v2330 = vunpack.c.h.b16 %v2248
    %v2331 = vunpack.c.l.b16 %v2249
    %v2332 = vunpack.c.h.b16 %v2249
    %v2333 = vunpack.c.l.b16 %v2250
    %v2334 = vunpack.c.h.b16 %v2250
    %v2335 = vunpack.c.l.b16 %v2251
    %v2336 = vunpack.c.h.b16 %v2251
    %v2337 = vunpack.c.l.b16 %v2252
    %v2338 = vunpack.c.h.b16 %v2252
    %v2339 = vunpack.c.l.b16 %v2253
    %v2340 = vunpack.c.h.b16 %v2253
    %v2341 = vunpack.c.l.b16 %v2254
    %v2342 = vunpack.c.h.b16 %v2254
    %v2343 = vunpack.c.l.b16 %v2255
    %v2344 = vunpack.c.h.b16 %v2255
    %v2345 = vunpack.c.l.b16 %v2256
    %v2346 = vunpack.c.h.b16 %v2256
    %v2347 = vunpack.c.l.b16 %v2257
    %v2348 = vunpack.c.h.b16 %v2257
    %v2349 = vunpack.c.l.b16 %v2258
    %v2350 = vunpack.c.h.b16 %v2258
    %v2351 = vunpack.c.l.b16 %v2259
    %v2352 = vunpack.c.h.b16 %v2259
    %v2353 = vunpack.c.l.b16 %v2260
    %v2354 = vunpack.c.h.b16 %v2260
    %v2355 = vunpack.c.l.b16 %v2261
    %v2356 = vunpack.c.h.b16 %v2261
    %v2357 = vunpack.c.l.b16 %v2262
    %v2358 = vunpack.c.h.b16 %v2262
    %v2359 = vpack.c.b16 %v2299, %v2295
    %v2360 = vpack.c.b16 %v2300, %v2296
    %v2361 = vpack.c.b16 %v2301, %v2297
    %v2362 = vpack.c.b16 %v2302, %v2298
    %v2363 = vpack.c.b16 %v2307, %v2303
    %v2364 = vpack.c.b16 %v2308, %v2304
    %v2365 = vpack.c.b16 %v2309, %v2305
    %v2366 = vpack.c.b16 %v2310, %v2306
    %v2367 = vpack.c.b16 %v2315, %v2311
    %v2368 = vpack.c.b16 %v2316, %v2312
    %v2369 = vpack.c.b16 %v2317, %v2313
    %v2370 = vpack.c.b16 %v2318, %v2314
    %v2371 = vpack.c.b16 %v2323, %v2319
    %v2372 = vpack.c.b16 %v2324, %v2320
    %v2373 = vpack.c.b16 %v2325, %v2321
    %v2374 = vpack.c.b16 %v2326, %v2322
    %v2375 = vpack.c.b16 %v2331, %v2327
    %v2376 = vpack.c.b16 %v2332, %v2328
    %v2377 = vpack.c.b16 %v2333, %v2329
    %v2378 = vpack.c.b16 %v2334, %v2330
    %v2379 = vpack.c.b16 %v2339, %v2335
    %v2380 = vpack.c.b16 %v2340, %v2336
    %v2381 = vpack.c.b16 %v2341, %v2337
    %v2382 = vpack.c.b16 %v2342, %v2338
    %v2383 = vpack.c.b16 %v2347, %v2343
    %v2384 = vpack.c.b16 %v2348, %v2344
    %v2385 = vpack.c.b16 %v2349, %v2345
    %v2386 = vpack.c.b16 %v2350, %v2346
    %v2387 = vpack.c.b16 %v2355, %v2351
    %v2388 = vpack.c.b16 %v2356, %v2352
    %v2389 = vpack.c.b16 %v2357, %v2353
    %v2390 = vpack.c.b16 %v2358, %v2354
    %2423 = vmatprep.subr.bf16.mxu0 %v2360
    %2424 = vmatpush1.bf16.msra.mxu0 %v2359
    %2425 = vmatprep.subr.bf16.mxu0 %v2364
    %2426 = vmatpush1.bf16.msra.mxu0 %v2363
    %2427 = vmatprep.subr.bf16.mxu0 %v2368
    %2428 = vmatpush1.bf16.msra.mxu0 %v2367
    %2429 = vmatprep.subr.bf16.mxu0 %v2372
    %2430 = vmatpush1.bf16.msra.mxu0 %v2371
    %2431 = vmatprep.subr.bf16.mxu0 %v2376
    %2432 = vmatpush1.bf16.msra.mxu0 %v2375
    %2433 = vmatprep.subr.bf16.mxu0 %v2380
    %2434 = vmatpush1.bf16.msra.mxu0 %v2379
    %2435 = vmatprep.subr.bf16.mxu0 %v2384
    %2436 = vmatpush1.bf16.msra.mxu0 %v2383
    %2437 = vmatprep.subr.bf16.mxu0 %v2388
    %2438 = vmatpush1.bf16.msra.mxu0 %v2387
    %2439 = vmatprep.subr.bf16.mxu0 0
    %2440 = vmatpush1.bf16.msra.mxu0 0
    %2441 = vmatprep.subr.bf16.mxu0 0
    %2442 = vmatpush1.bf16.msra.mxu0 0
    %2443 = vmatprep.subr.bf16.mxu0 0
    %2444 = vmatpush1.bf16.msra.mxu0 0
    %2445 = vmatprep.subr.bf16.mxu0 0
    %2446 = vmatpush1.bf16.msra.mxu0 0
    %2447 = vmatprep.subr.bf16.mxu0 0
    %2448 = vmatpush1.bf16.msra.mxu0 0
    %2449 = vmatprep.subr.bf16.mxu0 0
    %2450 = vmatpush1.bf16.msra.mxu0 0
    %2451 = vmatprep.subr.bf16.mxu0 0
    %2452 = vmatpush1.bf16.msra.mxu0 0
    %2453 = vmatprep.subr.bf16.mxu0 0
    %2454 = vmatpush1.bf16.msra.mxu0 0
    %2455 = vmatprep.mubr.bf16.mxu0 0
    %2456 = vmatmul.mubr.bf16.gmra.mrb[0].mxu0 %v2230
    %v2457 = vpop.f32.mrb[0].mxu0
    %v2458 = vadd.f32 0.0, %v2457
    %v2459 = vpop.f32.mrb[0].mxu0
    %v2460 = vadd.f32 0.0, %v2459
    %v2461 = vpop.f32.mrb[0].mxu0
    %v2462 = vpop.f32.mrb[0].mxu0
    %2463 = vdwg.mxu0
    %2464 = vmatprep.subr.bf16.mxu0 %v2362
    %2465 = vmatpush1.bf16.msra.mxu0 %v2361
    %2466 = vmatprep.subr.bf16.mxu0 %v2366
    %2467 = vmatpush1.bf16.msra.mxu0 %v2365
    %2468 = vmatprep.subr.bf16.mxu0 %v2370
    %2469 = vmatpush1.bf16.msra.mxu0 %v2369
    %2470 = vmatprep.subr.bf16.mxu0 %v2374
    %2471 = vmatpush1.bf16.msra.mxu0 %v2373
    %2472 = vmatprep.subr.bf16.mxu0 %v2378
    %2473 = vmatpush1.bf16.msra.mxu0 %v2377
    %2474 = vmatprep.subr.bf16.mxu0 %v2382
    %2475 = vmatpush1.bf16.msra.mxu0 %v2381
    %2476 = vmatprep.subr.bf16.mxu0 %v2386
    %2477 = vmatpush1.bf16.msra.mxu0 %v2385
    %2478 = vmatprep.subr.bf16.mxu0 %v2390
    %2479 = vmatpush1.bf16.msra.mxu0 %v2389
    %2480 = vmatprep.subr.bf16.mxu0 0
    %2481 = vmatpush1.bf16.msra.mxu0 0
    %2482 = vmatprep.subr.bf16.mxu0 0
    %2483 = vmatpush1.bf16.msra.mxu0 0
    %2484 = vmatprep.subr.bf16.mxu0 0
    %2485 = vmatpush1.bf16.msra.mxu0 0
    %2486 = vmatprep.subr.bf16.mxu0 0
    %2487 = vmatpush1.bf16.msra.mxu0 0
    %2488 = vmatprep.subr.bf16.mxu0 0
    %2489 = vmatpush1.bf16.msra.mxu0 0
    %2490 = vmatprep.subr.bf16.mxu0 0
    %2491 = vmatpush1.bf16.msra.mxu0 0
    %2492 = vmatprep.subr.bf16.mxu0 0
    %2493 = vmatpush1.bf16.msra.mxu0 0
    %2494 = vmatprep.subr.bf16.mxu0 0
    %2495 = vmatpush1.bf16.msra.mxu0 0
    %2496 = vmatprep.mubr.bf16.mxu0 0
    %2497 = vmatmul.mubr.bf16.gmra.mrb[0].mxu0 %v2230
    %v2498 = vpop.f32.mrb[0].mxu0
    %v2499 = vadd.f32 0.0, %v2498
    %v2500 = vpop.f32.mrb[0].mxu0
    %v2501 = vadd.f32 0.0, %v2500
    %v2502 = vpop.f32.mrb[0].mxu0
    %v2503 = vpop.f32.mrb[0].mxu0
    %2504 = vdwg.mxu0
    %v2505 = vadd.f32 %v2226, %v2458
    %v2506 = vadd.f32 %v2227, %v2460
    %v2507 = vadd.f32 %v2228, %v2499
    %v2508 = vadd.f32 %v2229, %v2501
    %v2509 = vxor.u32 %v2505, 2147483648
    %v2510 = vmul.f32 %v2509, 1.442695
    %v2511 = vpow.pop %v2510
    %v2512 = vadd.f32 %v2511, 1.0
    %v2513 = vrcp.pop %v2512
    %v2514 = vmul.f32 1.0, %v2513
    %v2515 = vxor.u32 %v2506, 2147483648
    %v2516 = vmul.f32 %v2515, 1.442695
    %v2517 = vpow.pop %v2516
    %v2518 = vadd.f32 %v2517, 1.0
    %v2519 = vrcp.pop %v2518
    %v2520 = vmul.f32 1.0, %v2519
    %v2521 = vxor.u32 %v2507, 2147483648
    %v2522 = vmul.f32 %v2521, 1.442695
    %v2523 = vpow.pop %v2522
    %v2524 = vadd.f32 %v2523, 1.0
    %v2525 = vrcp.pop %v2524
    %v2526 = vmul.f32 1.0, %v2525
    %v2527 = vtanh.pop %v2508
    %v2528 = vmul.f32 %v2514, %v2218
    %v2529 = vmul.f32 %v2520, %v2527
    %v2530 = vadd.f32 %v2528, %v2529
    %v2531 = vtanh.pop %v2530
    %v2532 = vmul.f32 %v2526, %v2531
    %s2533 = scalar_lea.vmem [#allocation3], 40
    %2534 = vst [vmem:[%s2533] sm:$0xff] %v2532
    %s2535 = smul.u32 6, 4
    %s2536 = smul.addr %s2535, 8
    %s2537 = scalar_lea.vmem [#allocation2], %s2536
    %v2538 = vld [vmem:[%s2537] sm:$0xff]
    %v2539 = vld [vmem:[%s2537 + $0x8] sm:$0xff]
    %v2540 = vld [vmem:[%s2537 + $0x10] sm:$0xff]
    %v2541 = vld [vmem:[%s2537 + $0x18] sm:$0xff]
    %v2542 = vpack.c.bf16 %v2532, %v2532
    %v2543 = vld [vmem:[%s5] sm:$0xff]
    %v2544 = vld [vmem:[%s5 + $0x8] sm:$0xff]
    %v2545 = vld [vmem:[%s5 + $0x10] sm:$0xff]
    %v2546 = vld [vmem:[%s5 + $0x18] sm:$0xff]
    %v2547 = vld [vmem:[%s5 + $0x20] sm:$0xff]
    %v2548 = vld [vmem:[%s5 + $0x28] sm:$0xff]
    %v2549 = vld [vmem:[%s5 + $0x30] sm:$0xff]
    %v2550 = vld [vmem:[%s5 + $0x38] sm:$0xff]
    %v2551 = vld [vmem:[%s5 + $0x40] sm:$0xff]
    %v2552 = vld [vmem:[%s5 + $0x48] sm:$0xff]
    %v2553 = vld [vmem:[%s5 + $0x50] sm:$0xff]
    %v2554 = vld [vmem:[%s5 + $0x58] sm:$0xff]
    %v2555 = vld [vmem:[%s5 + $0x60] sm:$0xff]
    %v2556 = vld [vmem:[%s5 + $0x68] sm:$0xff]
    %v2557 = vld [vmem:[%s5 + $0x70] sm:$0xff]
    %v2558 = vld [vmem:[%s5 + $0x78] sm:$0xff]
    %v2559 = vld [vmem:[%s5 + $0x80] sm:$0xff]
    %v2560 = vld [vmem:[%s5 + $0x88] sm:$0xff]
    %v2561 = vld [vmem:[%s5 + $0x90] sm:$0xff]
    %v2562 = vld [vmem:[%s5 + $0x98] sm:$0xff]
    %v2563 = vld [vmem:[%s5 + $0xa0] sm:$0xff]
    %v2564 = vld [vmem:[%s5 + $0xa8] sm:$0xff]
    %v2565 = vld [vmem:[%s5 + $0xb0] sm:$0xff]
    %v2566 = vld [vmem:[%s5 + $0xb8] sm:$0xff]
    %v2567 = vld [vmem:[%s5 + $0xc0] sm:$0xff]
    %v2568 = vld [vmem:[%s5 + $0xc8] sm:$0xff]
    %v2569 = vld [vmem:[%s5 + $0xd0] sm:$0xff]
    %v2570 = vld [vmem:[%s5 + $0xd8] sm:$0xff]
    %v2571 = vld [vmem:[%s5 + $0xe0] sm:$0xff]
    %v2572 = vld [vmem:[%s5 + $0xe8] sm:$0xff]
    %v2573 = vld [vmem:[%s5 + $0xf0] sm:$0xff]
    %v2574 = vld [vmem:[%s5 + $0xf8] sm:$0xff]
    %v2607 = vunpack.c.l.b16 %v2543
    %v2608 = vunpack.c.h.b16 %v2543
    %v2609 = vunpack.c.l.b16 %v2544
    %v2610 = vunpack.c.h.b16 %v2544
    %v2611 = vunpack.c.l.b16 %v2545
    %v2612 = vunpack.c.h.b16 %v2545
    %v2613 = vunpack.c.l.b16 %v2546
    %v2614 = vunpack.c.h.b16 %v2546
    %v2615 = vunpack.c.l.b16 %v2547
    %v2616 = vunpack.c.h.b16 %v2547
    %v2617 = vunpack.c.l.b16 %v2548
    %v2618 = vunpack.c.h.b16 %v2548
    %v2619 = vunpack.c.l.b16 %v2549
    %v2620 = vunpack.c.h.b16 %v2549
    %v2621 = vunpack.c.l.b16 %v2550
    %v2622 = vunpack.c.h.b16 %v2550
    %v2623 = vunpack.c.l.b16 %v2551
    %v2624 = vunpack.c.h.b16 %v2551
    %v2625 = vunpack.c.l.b16 %v2552
    %v2626 = vunpack.c.h.b16 %v2552
    %v2627 = vunpack.c.l.b16 %v2553
    %v2628 = vunpack.c.h.b16 %v2553
    %v2629 = vunpack.c.l.b16 %v2554
    %v2630 = vunpack.c.h.b16 %v2554
    %v2631 = vunpack.c.l.b16 %v2555
    %v2632 = vunpack.c.h.b16 %v2555
    %v2633 = vunpack.c.l.b16 %v2556
    %v2634 = vunpack.c.h.b16 %v2556
    %v2635 = vunpack.c.l.b16 %v2557
    %v2636 = vunpack.c.h.b16 %v2557
    %v2637 = vunpack.c.l.b16 %v2558
    %v2638 = vunpack.c.h.b16 %v2558
    %v2639 = vunpack.c.l.b16 %v2559
    %v2640 = vunpack.c.h.b16 %v2559
    %v2641 = vunpack.c.l.b16 %v2560
    %v2642 = vunpack.c.h.b16 %v2560
    %v2643 = vunpack.c.l.b16 %v2561
    %v2644 = vunpack.c.h.b16 %v2561
    %v2645 = vunpack.c.l.b16 %v2562
    %v2646 = vunpack.c.h.b16 %v2562
    %v2647 = vunpack.c.l.b16 %v2563
    %v2648 = vunpack.c.h.b16 %v2563
    %v2649 = vunpack.c.l.b16 %v2564
    %v2650 = vunpack.c.h.b16 %v2564
    %v2651 = vunpack.c.l.b16 %v2565
    %v2652 = vunpack.c.h.b16 %v2565
    %v2653 = vunpack.c.l.b16 %v2566
    %v2654 = vunpack.c.h.b16 %v2566
    %v2655 = vunpack.c.l.b16 %v2567
    %v2656 = vunpack.c.h.b16 %v2567
    %v2657 = vunpack.c.l.b16 %v2568
    %v2658 = vunpack.c.h.b16 %v2568
    %v2659 = vunpack.c.l.b16 %v2569
    %v2660 = vunpack.c.h.b16 %v2569
    %v2661 = vunpack.c.l.b16 %v2570
    %v2662 = vunpack.c.h.b16 %v2570
    %v2663 = vunpack.c.l.b16 %v2571
    %v2664 = vunpack.c.h.b16 %v2571
    %v2665 = vunpack.c.l.b16 %v2572
    %v2666 = vunpack.c.h.b16 %v2572
    %v2667 = vunpack.c.l.b16 %v2573
    %v2668 = vunpack.c.h.b16 %v2573
    %v2669 = vunpack.c.l.b16 %v2574
    %v2670 = vunpack.c.h.b16 %v2574
    %v2671 = vpack.c.b16 %v2611, %v2607
    %v2672 = vpack.c.b16 %v2612, %v2608
    %v2673 = vpack.c.b16 %v2613, %v2609
    %v2674 = vpack.c.b16 %v2614, %v2610
    %v2675 = vpack.c.b16 %v2619, %v2615
    %v2676 = vpack.c.b16 %v2620, %v2616
    %v2677 = vpack.c.b16 %v2621, %v2617
    %v2678 = vpack.c.b16 %v2622, %v2618
    %v2679 = vpack.c.b16 %v2627, %v2623
    %v2680 = vpack.c.b16 %v2628, %v2624
    %v2681 = vpack.c.b16 %v2629, %v2625
    %v2682 = vpack.c.b16 %v2630, %v2626
    %v2683 = vpack.c.b16 %v2635, %v2631
    %v2684 = vpack.c.b16 %v2636, %v2632
    %v2685 = vpack.c.b16 %v2637, %v2633
    %v2686 = vpack.c.b16 %v2638, %v2634
    %v2687 = vpack.c.b16 %v2643, %v2639
    %v2688 = vpack.c.b16 %v2644, %v2640
    %v2689 = vpack.c.b16 %v2645, %v2641
    %v2690 = vpack.c.b16 %v2646, %v2642
    %v2691 = vpack.c.b16 %v2651, %v2647
    %v2692 = vpack.c.b16 %v2652, %v2648
    %v2693 = vpack.c.b16 %v2653, %v2649
    %v2694 = vpack.c.b16 %v2654, %v2650
    %v2695 = vpack.c.b16 %v2659, %v2655
    %v2696 = vpack.c.b16 %v2660, %v2656
    %v2697 = vpack.c.b16 %v2661, %v2657
    %v2698 = vpack.c.b16 %v2662, %v2658
    %v2699 = vpack.c.b16 %v2667, %v2663
    %v2700 = vpack.c.b16 %v2668, %v2664
    %v2701 = vpack.c.b16 %v2669, %v2665
    %v2702 = vpack.c.b16 %v2670, %v2666
    %2735 = vmatprep.subr.bf16.mxu0 %v2672
    %2736 = vmatpush1.bf16.msra.mxu0 %v2671
    %2737 = vmatprep.subr.bf16.mxu0 %v2676
    %2738 = vmatpush1.bf16.msra.mxu0 %v2675
    %2739 = vmatprep.subr.bf16.mxu0 %v2680
    %2740 = vmatpush1.bf16.msra.mxu0 %v2679
    %2741 = vmatprep.subr.bf16.mxu0 %v2684
    %2742 = vmatpush1.bf16.msra.mxu0 %v2683
    %2743 = vmatprep.subr.bf16.mxu0 %v2688
    %2744 = vmatpush1.bf16.msra.mxu0 %v2687
    %2745 = vmatprep.subr.bf16.mxu0 %v2692
    %2746 = vmatpush1.bf16.msra.mxu0 %v2691
    %2747 = vmatprep.subr.bf16.mxu0 %v2696
    %2748 = vmatpush1.bf16.msra.mxu0 %v2695
    %2749 = vmatprep.subr.bf16.mxu0 %v2700
    %2750 = vmatpush1.bf16.msra.mxu0 %v2699
    %2751 = vmatprep.subr.bf16.mxu0 0
    %2752 = vmatpush1.bf16.msra.mxu0 0
    %2753 = vmatprep.subr.bf16.mxu0 0
    %2754 = vmatpush1.bf16.msra.mxu0 0
    %2755 = vmatprep.subr.bf16.mxu0 0
    %2756 = vmatpush1.bf16.msra.mxu0 0
    %2757 = vmatprep.subr.bf16.mxu0 0
    %2758 = vmatpush1.bf16.msra.mxu0 0
    %2759 = vmatprep.subr.bf16.mxu0 0
    %2760 = vmatpush1.bf16.msra.mxu0 0
    %2761 = vmatprep.subr.bf16.mxu0 0
    %2762 = vmatpush1.bf16.msra.mxu0 0
    %2763 = vmatprep.subr.bf16.mxu0 0
    %2764 = vmatpush1.bf16.msra.mxu0 0
    %2765 = vmatprep.subr.bf16.mxu0 0
    %2766 = vmatpush1.bf16.msra.mxu0 0
    %2767 = vmatprep.mubr.bf16.mxu0 0
    %2768 = vmatmul.mubr.bf16.gmra.mrb[0].mxu0 %v2542
    %v2769 = vpop.f32.mrb[0].mxu0
    %v2770 = vadd.f32 0.0, %v2769
    %v2771 = vpop.f32.mrb[0].mxu0
    %v2772 = vadd.f32 0.0, %v2771
    %v2773 = vpop.f32.mrb[0].mxu0
    %v2774 = vpop.f32.mrb[0].mxu0
    %2775 = vdwg.mxu0
    %2776 = vmatprep.subr.bf16.mxu0 %v2674
    %2777 = vmatpush1.bf16.msra.mxu0 %v2673
    %2778 = vmatprep.subr.bf16.mxu0 %v2678
    %2779 = vmatpush1.bf16.msra.mxu0 %v2677
    %2780 = vmatprep.subr.bf16.mxu0 %v2682
    %2781 = vmatpush1.bf16.msra.mxu0 %v2681
    %2782 = vmatprep.subr.bf16.mxu0 %v2686
    %2783 = vmatpush1.bf16.msra.mxu0 %v2685
    %2784 = vmatprep.subr.bf16.mxu0 %v2690
    %2785 = vmatpush1.bf16.msra.mxu0 %v2689
    %2786 = vmatprep.subr.bf16.mxu0 %v2694
    %2787 = vmatpush1.bf16.msra.mxu0 %v2693
    %2788 = vmatprep.subr.bf16.mxu0 %v2698
    %2789 = vmatpush1.bf16.msra.mxu0 %v2697
    %2790 = vmatprep.subr.bf16.mxu0 %v2702
    %2791 = vmatpush1.bf16.msra.mxu0 %v2701
    %2792 = vmatprep.subr.bf16.mxu0 0
    %2793 = vmatpush1.bf16.msra.mxu0 0
    %2794 = vmatprep.subr.bf16.mxu0 0
    %2795 = vmatpush1.bf16.msra.mxu0 0
    %2796 = vmatprep.subr.bf16.mxu0 0
    %2797 = vmatpush1.bf16.msra.mxu0 0
    %2798 = vmatprep.subr.bf16.mxu0 0
    %2799 = vmatpush1.bf16.msra.mxu0 0
    %2800 = vmatprep.subr.bf16.mxu0 0
    %2801 = vmatpush1.bf16.msra.mxu0 0
    %2802 = vmatprep.subr.bf16.mxu0 0
    %2803 = vmatpush1.bf16.msra.mxu0 0
    %2804 = vmatprep.subr.bf16.mxu0 0
    %2805 = vmatpush1.bf16.msra.mxu0 0
    %2806 = vmatprep.subr.bf16.mxu0 0
    %2807 = vmatpush1.bf16.msra.mxu0 0
    %2808 = vmatprep.mubr.bf16.mxu0 0
    %2809 = vmatmul.mubr.bf16.gmra.mrb[0].mxu0 %v2542
    %v2810 = vpop.f32.mrb[0].mxu0
    %v2811 = vadd.f32 0.0, %v2810
    %v2812 = vpop.f32.mrb[0].mxu0
    %v2813 = vadd.f32 0.0, %v2812
    %v2814 = vpop.f32.mrb[0].mxu0
    %v2815 = vpop.f32.mrb[0].mxu0
    %2816 = vdwg.mxu0
    %v2817 = vadd.f32 %v2538, %v2770
    %v2818 = vadd.f32 %v2539, %v2772
    %v2819 = vadd.f32 %v2540, %v2811
    %v2820 = vadd.f32 %v2541, %v2813
    %v2821 = vxor.u32 %v2817, 2147483648
    %v2822 = vmul.f32 %v2821, 1.442695
    %v2823 = vpow.pop %v2822
    %v2824 = vadd.f32 %v2823, 1.0
    %v2825 = vrcp.pop %v2824
    %v2826 = vmul.f32 1.0, %v2825
    %v2827 = vxor.u32 %v2818, 2147483648
    %v2828 = vmul.f32 %v2827, 1.442695
    %v2829 = vpow.pop %v2828
    %v2830 = vadd.f32 %v2829, 1.0
    %v2831 = vrcp.pop %v2830
    %v2832 = vmul.f32 1.0, %v2831
    %v2833 = vxor.u32 %v2819, 2147483648
    %v2834 = vmul.f32 %v2833, 1.442695
    %v2835 = vpow.pop %v2834
    %v2836 = vadd.f32 %v2835, 1.0
    %v2837 = vrcp.pop %v2836
    %v2838 = vmul.f32 1.0, %v2837
    %v2839 = vtanh.pop %v2820
    %v2840 = vmul.f32 %v2826, %v2530
    %v2841 = vmul.f32 %v2832, %v2839
    %v2842 = vadd.f32 %v2840, %v2841
    %v2843 = vtanh.pop %v2842
    %v2844 = vmul.f32 %v2838, %v2843
    %s2845 = scalar_lea.vmem [#allocation3], 48
    %2846 = vst [vmem:[%s2845] sm:$0xff] %v2844
    %s2847 = smul.u32 7, 4
    %s2848 = smul.addr %s2847, 8
    %s2849 = scalar_lea.vmem [#allocation2], %s2848
    %v2850 = vld [vmem:[%s2849] sm:$0xff]
    %v2851 = vld [vmem:[%s2849 + $0x8] sm:$0xff]
    %v2852 = vld [vmem:[%s2849 + $0x10] sm:$0xff]
    %v2853 = vld [vmem:[%s2849 + $0x18] sm:$0xff]
    %v2854 = vpack.c.bf16 %v2844, %v2844
    %v2855 = vld [vmem:[%s5] sm:$0xff]
    %v2856 = vld [vmem:[%s5 + $0x8] sm:$0xff]
    %v2857 = vld [vmem:[%s5 + $0x10] sm:$0xff]
    %v2858 = vld [vmem:[%s5 + $0x18] sm:$0xff]
    %v2859 = vld [vmem:[%s5 + $0x20] sm:$0xff]
    %v2860 = vld [vmem:[%s5 + $0x28] sm:$0xff]
    %v2861 = vld [vmem:[%s5 + $0x30] sm:$0xff]
    %v2862 = vld [vmem:[%s5 + $0x38] sm:$0xff]
    %v2863 = vld [vmem:[%s5 + $0x40] sm:$0xff]
    %v2864 = vld [vmem:[%s5 + $0x48] sm:$0xff]
    %v2865 = vld [vmem:[%s5 + $0x50] sm:$0xff]
    %v2866 = vld [vmem:[%s5 + $0x58] sm:$0xff]
    %v2867 = vld [vmem:[%s5 + $0x60] sm:$0xff]
    %v2868 = vld [vmem:[%s5 + $0x68] sm:$0xff]
    %v2869 = vld [vmem:[%s5 + $0x70] sm:$0xff]
    %v2870 = vld [vmem:[%s5 + $0x78] sm:$0xff]
    %v2871 = vld [vmem:[%s5 + $0x80] sm:$0xff]
    %v2872 = vld [vmem:[%s5 + $0x88] sm:$0xff]
    %v2873 = vld [vmem:[%s5 + $0x90] sm:$0xff]
    %v2874 = vld [vmem:[%s5 + $0x98] sm:$0xff]
    %v2875 = vld [vmem:[%s5 + $0xa0] sm:$0xff]
    %v2876 = vld [vmem:[%s5 + $0xa8] sm:$0xff]
    %v2877 = vld [vmem:[%s5 + $0xb0] sm:$0xff]
    %v2878 = vld [vmem:[%s5 + $0xb8] sm:$0xff]
    %v2879 = vld [vmem:[%s5 + $0xc0] sm:$0xff]
    %v2880 = vld [vmem:[%s5 + $0xc8] sm:$0xff]
    %v2881 = vld [vmem:[%s5 + $0xd0] sm:$0xff]
    %v2882 = vld [vmem:[%s5 + $0xd8] sm:$0xff]
    %v2883 = vld [vmem:[%s5 + $0xe0] sm:$0xff]
    %v2884 = vld [vmem:[%s5 + $0xe8] sm:$0xff]
    %v2885 = vld [vmem:[%s5 + $0xf0] sm:$0xff]
    %v2886 = vld [vmem:[%s5 + $0xf8] sm:$0xff]
    %v2919 = vunpack.c.l.b16 %v2855
    %v2920 = vunpack.c.h.b16 %v2855
    %v2921 = vunpack.c.l.b16 %v2856
    %v2922 = vunpack.c.h.b16 %v2856
    %v2923 = vunpack.c.l.b16 %v2857
    %v2924 = vunpack.c.h.b16 %v2857
    %v2925 = vunpack.c.l.b16 %v2858
    %v2926 = vunpack.c.h.b16 %v2858
    %v2927 = vunpack.c.l.b16 %v2859
    %v2928 = vunpack.c.h.b16 %v2859
    %v2929 = vunpack.c.l.b16 %v2860
    %v2930 = vunpack.c.h.b16 %v2860
    %v2931 = vunpack.c.l.b16 %v2861
    %v2932 = vunpack.c.h.b16 %v2861
    %v2933 = vunpack.c.l.b16 %v2862
    %v2934 = vunpack.c.h.b16 %v2862
    %v2935 = vunpack.c.l.b16 %v2863
    %v2936 = vunpack.c.h.b16 %v2863
    %v2937 = vunpack.c.l.b16 %v2864
    %v2938 = vunpack.c.h.b16 %v2864
    %v2939 = vunpack.c.l.b16 %v2865
    %v2940 = vunpack.c.h.b16 %v2865
    %v2941 = vunpack.c.l.b16 %v2866
    %v2942 = vunpack.c.h.b16 %v2866
    %v2943 = vunpack.c.l.b16 %v2867
    %v2944 = vunpack.c.h.b16 %v2867
    %v2945 = vunpack.c.l.b16 %v2868
    %v2946 = vunpack.c.h.b16 %v2868
    %v2947 = vunpack.c.l.b16 %v2869
    %v2948 = vunpack.c.h.b16 %v2869
    %v2949 = vunpack.c.l.b16 %v2870
    %v2950 = vunpack.c.h.b16 %v2870
    %v2951 = vunpack.c.l.b16 %v2871
    %v2952 = vunpack.c.h.b16 %v2871
    %v2953 = vunpack.c.l.b16 %v2872
    %v2954 = vunpack.c.h.b16 %v2872
    %v2955 = vunpack.c.l.b16 %v2873
    %v2956 = vunpack.c.h.b16 %v2873
    %v2957 = vunpack.c.l.b16 %v2874
    %v2958 = vunpack.c.h.b16 %v2874
    %v2959 = vunpack.c.l.b16 %v2875
    %v2960 = vunpack.c.h.b16 %v2875
    %v2961 = vunpack.c.l.b16 %v2876
    %v2962 = vunpack.c.h.b16 %v2876
    %v2963 = vunpack.c.l.b16 %v2877
    %v2964 = vunpack.c.h.b16 %v2877
    %v2965 = vunpack.c.l.b16 %v2878
    %v2966 = vunpack.c.h.b16 %v2878
    %v2967 = vunpack.c.l.b16 %v2879
    %v2968 = vunpack.c.h.b16 %v2879
    %v2969 = vunpack.c.l.b16 %v2880
    %v2970 = vunpack.c.h.b16 %v2880
    %v2971 = vunpack.c.l.b16 %v2881
    %v2972 = vunpack.c.h.b16 %v2881
    %v2973 = vunpack.c.l.b16 %v2882
    %v2974 = vunpack.c.h.b16 %v2882
    %v2975 = vunpack.c.l.b16 %v2883
    %v2976 = vunpack.c.h.b16 %v2883
    %v2977 = vunpack.c.l.b16 %v2884
    %v2978 = vunpack.c.h.b16 %v2884
    %v2979 = vunpack.c.l.b16 %v2885
    %v2980 = vunpack.c.h.b16 %v2885
    %v2981 = vunpack.c.l.b16 %v2886
    %v2982 = vunpack.c.h.b16 %v2886
    %v2983 = vpack.c.b16 %v2923, %v2919
    %v2984 = vpack.c.b16 %v2924, %v2920
    %v2985 = vpack.c.b16 %v2925, %v2921
    %v2986 = vpack.c.b16 %v2926, %v2922
    %v2987 = vpack.c.b16 %v2931, %v2927
    %v2988 = vpack.c.b16 %v2932, %v2928
    %v2989 = vpack.c.b16 %v2933, %v2929
    %v2990 = vpack.c.b16 %v2934, %v2930
    %v2991 = vpack.c.b16 %v2939, %v2935
    %v2992 = vpack.c.b16 %v2940, %v2936
    %v2993 = vpack.c.b16 %v2941, %v2937
    %v2994 = vpack.c.b16 %v2942, %v2938
    %v2995 = vpack.c.b16 %v2947, %v2943
    %v2996 = vpack.c.b16 %v2948, %v2944
    %v2997 = vpack.c.b16 %v2949, %v2945
    %v2998 = vpack.c.b16 %v2950, %v2946
    %v2999 = vpack.c.b16 %v2955, %v2951
    %v3000 = vpack.c.b16 %v2956, %v2952
    %v3001 = vpack.c.b16 %v2957, %v2953
    %v3002 = vpack.c.b16 %v2958, %v2954
    %v3003 = vpack.c.b16 %v2963, %v2959
    %v3004 = vpack.c.b16 %v2964, %v2960
    %v3005 = vpack.c.b16 %v2965, %v2961
    %v3006 = vpack.c.b16 %v2966, %v2962
    %v3007 = vpack.c.b16 %v2971, %v2967
    %v3008 = vpack.c.b16 %v2972, %v2968
    %v3009 = vpack.c.b16 %v2973, %v2969
    %v3010 = vpack.c.b16 %v2974, %v2970
    %v3011 = vpack.c.b16 %v2979, %v2975
    %v3012 = vpack.c.b16 %v2980, %v2976
    %v3013 = vpack.c.b16 %v2981, %v2977
    %v3014 = vpack.c.b16 %v2982, %v2978
    %3047 = vmatprep.subr.bf16.mxu0 %v2984
    %3048 = vmatpush1.bf16.msra.mxu0 %v2983
    %3049 = vmatprep.subr.bf16.mxu0 %v2988
    %3050 = vmatpush1.bf16.msra.mxu0 %v2987
    %3051 = vmatprep.subr.bf16.mxu0 %v2992
    %3052 = vmatpush1.bf16.msra.mxu0 %v2991
    %3053 = vmatprep.subr.bf16.mxu0 %v2996
    %3054 = vmatpush1.bf16.msra.mxu0 %v2995
    %3055 = vmatprep.subr.bf16.mxu0 %v3000
    %3056 = vmatpush1.bf16.msra.mxu0 %v2999
    %3057 = vmatprep.subr.bf16.mxu0 %v3004
    %3058 = vmatpush1.bf16.msra.mxu0 %v3003
    %3059 = vmatprep.subr.bf16.mxu0 %v3008
    %3060 = vmatpush1.bf16.msra.mxu0 %v3007
    %3061 = vmatprep.subr.bf16.mxu0 %v3012
    %3062 = vmatpush1.bf16.msra.mxu0 %v3011
    %3063 = vmatprep.subr.bf16.mxu0 0
    %3064 = vmatpush1.bf16.msra.mxu0 0
    %3065 = vmatprep.subr.bf16.mxu0 0
    %3066 = vmatpush1.bf16.msra.mxu0 0
    %3067 = vmatprep.subr.bf16.mxu0 0
    %3068 = vmatpush1.bf16.msra.mxu0 0
    %3069 = vmatprep.subr.bf16.mxu0 0
    %3070 = vmatpush1.bf16.msra.mxu0 0
    %3071 = vmatprep.subr.bf16.mxu0 0
    %3072 = vmatpush1.bf16.msra.mxu0 0
    %3073 = vmatprep.subr.bf16.mxu0 0
    %3074 = vmatpush1.bf16.msra.mxu0 0
    %3075 = vmatprep.subr.bf16.mxu0 0
    %3076 = vmatpush1.bf16.msra.mxu0 0
    %3077 = vmatprep.subr.bf16.mxu0 0
    %3078 = vmatpush1.bf16.msra.mxu0 0
    %3079 = vmatprep.mubr.bf16.mxu0 0
    %3080 = vmatmul.mubr.bf16.gmra.mrb[0].mxu0 %v2854
    %v3081 = vpop.f32.mrb[0].mxu0
    %v3082 = vadd.f32 0.0, %v3081
    %v3083 = vpop.f32.mrb[0].mxu0
    %v3084 = vadd.f32 0.0, %v3083
    %v3085 = vpop.f32.mrb[0].mxu0
    %v3086 = vpop.f32.mrb[0].mxu0
    %3087 = vdwg.mxu0
    %3088 = vmatprep.subr.bf16.mxu0 %v2986
    %3089 = vmatpush1.bf16.msra.mxu0 %v2985
    %3090 = vmatprep.subr.bf16.mxu0 %v2990
    %3091 = vmatpush1.bf16.msra.mxu0 %v2989
    %3092 = vmatprep.subr.bf16.mxu0 %v2994
    %3093 = vmatpush1.bf16.msra.mxu0 %v2993
    %3094 = vmatprep.subr.bf16.mxu0 %v2998
    %3095 = vmatpush1.bf16.msra.mxu0 %v2997
    %3096 = vmatprep.subr.bf16.mxu0 %v3002
    %3097 = vmatpush1.bf16.msra.mxu0 %v3001
    %3098 = vmatprep.subr.bf16.mxu0 %v3006
    %3099 = vmatpush1.bf16.msra.mxu0 %v3005
    %3100 = vmatprep.subr.bf16.mxu0 %v3010
    %3101 = vmatpush1.bf16.msra.mxu0 %v3009
    %3102 = vmatprep.subr.bf16.mxu0 %v3014
    %3103 = vmatpush1.bf16.msra.mxu0 %v3013
    %3104 = vmatprep.subr.bf16.mxu0 0
    %3105 = vmatpush1.bf16.msra.mxu0 0
    %3106 = vmatprep.subr.bf16.mxu0 0
    %3107 = vmatpush1.bf16.msra.mxu0 0
    %3108 = vmatprep.subr.bf16.mxu0 0
    %3109 = vmatpush1.bf16.msra.mxu0 0
    %3110 = vmatprep.subr.bf16.mxu0 0
    %3111 = vmatpush1.bf16.msra.mxu0 0
    %3112 = vmatprep.subr.bf16.mxu0 0
    %3113 = vmatpush1.bf16.msra.mxu0 0
    %3114 = vmatprep.subr.bf16.mxu0 0
    %3115 = vmatpush1.bf16.msra.mxu0 0
    %3116 = vmatprep.subr.bf16.mxu0 0
    %3117 = vmatpush1.bf16.msra.mxu0 0
    %3118 = vmatprep.subr.bf16.mxu0 0
    %3119 = vmatpush1.bf16.msra.mxu0 0
    %3120 = vmatprep.mubr.bf16.mxu0 0
    %3121 = vmatmul.mubr.bf16.gmra.mrb[0].mxu0 %v2854
    %v3122 = vpop.f32.mrb[0].mxu0
    %v3123 = vadd.f32 0.0, %v3122
    %v3124 = vpop.f32.mrb[0].mxu0
    %v3125 = vadd.f32 0.0, %v3124
    %v3126 = vpop.f32.mrb[0].mxu0
    %v3127 = vpop.f32.mrb[0].mxu0
    %3128 = vdwg.mxu0
    %v3129 = vadd.f32 %v2850, %v3082
    %v3130 = vadd.f32 %v2851, %v3084
    %v3131 = vadd.f32 %v2852, %v3123
    %v3132 = vadd.f32 %v2853, %v3125
    %v3133 = vxor.u32 %v3129, 2147483648
    %v3134 = vmul.f32 %v3133, 1.442695
    %v3135 = vpow.pop %v3134
    %v3136 = vadd.f32 %v3135, 1.0
    %v3137 = vrcp.pop %v3136
    %v3138 = vmul.f32 1.0, %v3137
    %v3139 = vxor.u32 %v3130, 2147483648
    %v3140 = vmul.f32 %v3139, 1.442695
    %v3141 = vpow.pop %v3140
    %v3142 = vadd.f32 %v3141, 1.0
    %v3143 = vrcp.pop %v3142
    %v3144 = vmul.f32 1.0, %v3143
    %v3145 = vxor.u32 %v3131, 2147483648
    %v3146 = vmul.f32 %v3145, 1.442695
    %v3147 = vpow.pop %v3146
    %v3148 = vadd.f32 %v3147, 1.0
    %v3149 = vrcp.pop %v3148
    %v3150 = vmul.f32 1.0, %v3149
    %v3151 = vtanh.pop %v3132
    %v3152 = vmul.f32 %v3138, %v2842
    %v3153 = vmul.f32 %v3144, %v3151
    %v3154 = vadd.f32 %v3152, %v3153
    %v3155 = vtanh.pop %v3154
    %v3156 = vmul.f32 %v3150, %v3155
    %s3157 = scalar_lea.vmem [#allocation3], 56
    %3158 = vst [vmem:[%s3157] sm:$0xff] %v3156
    // Predicated region
    $region26: #{lstm_forward.1} parent=1 // pred_check
      _
    $region27: #{lstm_forward.1} parent=1 // pred_check_branch
      %3160 = sbr.rel (0) target = $region29
    $region28: #{lstm_forward.1} parent=1 // pred_region
      %s3162 = ssub.s32 1024, 1024
      %3163 = vsyncadd [#allocation4], %s3162
      %s3164 = sshll.u32 [#allocation3], 4
      %s3165 = int_to_ptr.vmem [resolvable:$true] %s3164
      %3170 = dma.vmem_to_hbm [thread:$0]  %s3165, 1024, %s6, [#allocation4], 128, 128, 8
    $region29: #{lstm_forward.1} parent=1 // pred_fallthru
      _
    // Predicated region
    $region30: #{lstm_forward.1} parent=1 // pred_check
      _
    $region31: #{lstm_forward.1} parent=1 // pred_check_branch
      %3172 = sbr.rel (0) target = $region33
    $region32: #{lstm_forward.1} parent=1 // pred_region
      %3173 = dma.done [#allocation4], 1024
    $region33: #{lstm_forward.1} parent=1 // pred_fallthru
      _
    %3174 = vsyncpa [#allocation4], 1

</llo_original>
